<compile_context>
chip_gen: v6e
topology: v6e:2x2x1
jax: 0.10.0
libtpu: 0.0.40
codegen_flags: <defaults>
</compile_context>

<pallas_src>
import functools

import jax
import jax.numpy as jnp
from jax.experimental import pallas as pl
from jax.experimental.pallas import tpu as pltpu


# -----------------------------------------------------------------------------
# Pallas kernel: one batch-tile (TB batch elements, row-folded) per grid step.
# -----------------------------------------------------------------------------
def _lstner_kernel(tok_ref, adjn_ref,
                   wp_w_ref, bq_ref, lbl_ref,
                   gcn_w_ref, gcn_b_ref,
                   wpr_w_ref, br_ref,
                   cls_w_ref, cls_b_ref, aux_w_ref, aux_b_ref,
                   logits_ref, aux_ref, enh_ref, *, tb, seq, cdt):
    f32 = jnp.float32
    rows = tb * seq

    x = tok_ref[...]                                             # [rows, H]  cdt

    # Row-folded projection: q = Wp(x) + (Wp.bias + bp) — one big MXU matmul.
    q = jnp.dot(x, wp_w_ref[...],
                preferred_element_type=f32) + bq_ref[...]        # [rows, D] f32

    D = q.shape[1]
    L = lbl_ref.shape[0]
    q3 = q.astype(cdt).reshape(tb, seq, D)                       # [tb, S, D] cdt

    # ---- label attention, batched over the batch tile (no Python unroll) ----
    lbl3 = jnp.broadcast_to(lbl_ref[...], (tb, L, D))            # [tb, L, D] cdt
    scores = jnp.einsum('bld,bsd->bls', lbl3, q3,
                        preferred_element_type=f32)              # [tb, L, S] f32
    alpha = jax.nn.softmax(scores, axis=-1)                      # softmax over seq
    comps = jnp.einsum('bls,bsd->bld', alpha.astype(cdt), q3,
                       preferred_element_type=f32)               # [tb, L, D] f32

    # ---- GCN: folded projection matmul + batched adjacency mix --------------
    support = jnp.dot(comps.reshape(tb * L, D).astype(cdt), gcn_w_ref[...],
                      preferred_element_type=f32).reshape(tb, L, D)
    adj3 = jnp.broadcast_to(adjn_ref[...], (tb, L, L))           # pre-normalized, cdt
    enh_c = jnp.einsum('blm,bmd->bld', adj3, support.astype(cdt),
                       preferred_element_type=f32) + gcn_b_ref[...]  # [tb, L, D]
    enh_c_c = enh_c.astype(cdt)

    # ---- beta = softmax over the LABEL axis (lane axis of [tb, S, L]) -------
    beta_scores = jnp.einsum('bsd,bld->bsl', q3, enh_c_c,
                             preferred_element_type=f32)         # [tb, S, L]
    beta = jax.nn.softmax(beta_scores, axis=-1)
    weighted = jnp.einsum('bsl,bld->bsd', beta.astype(cdt), enh_c_c,
                          preferred_element_type=f32)            # [tb, S, D] f32

    # ---- row-folded re-projection (f32 residual) + lane-dense classifiers ---
    enhanced = (x.astype(f32)
                + jnp.dot(weighted.reshape(rows, D).astype(cdt), wpr_w_ref[...],
                          preferred_element_type=f32)
                + br_ref[...])                                   # [rows, H] f32
    logits = jnp.dot(enhanced.astype(cdt), cls_w_ref[...],
                     preferred_element_type=f32) + cls_b_ref[...]  # [rows, LP]

    H = enhanced.shape[1]
    avg = jnp.mean(enhanced.reshape(tb, seq, H), axis=1)         # [tb, H] f32
    aux = jnp.dot(avg.astype(cdt), aux_w_ref[...],
                  preferred_element_type=f32) + aux_b_ref[...]   # [tb, LP]

    logits_ref[...] = logits
    enh_ref[...] = enhanced
    aux_ref[...] = aux[:, None, :]


# -----------------------------------------------------------------------------
# Batch-tile heuristic: ~1024 rows/step, >=2 grid steps (v7x megacore), TB*S % 8.
# -----------------------------------------------------------------------------
def _pick_batch_tile(batch, seq):
    target = max(1, 1024 // max(seq, 1))
    best = batch                          # single full tile always satisfies tiling
    for tb in range(min(batch, target), 0, -1):
        if batch % tb:
            continue
        if (tb * seq) % 8:
            continue
        if batch // tb >= 2:
            return tb
        best = tb
    return best


# -----------------------------------------------------------------------------
# Wrapper: hoists batch-invariant work, pads classifier lanes, builds specs.
# -----------------------------------------------------------------------------
def lstner_forward(token_embeds, source_graph, params, *, batch_tile=None,
                   use_bf16=True, single_buffer_weights=True):
    f32 = jnp.float32
    cdt = jnp.bfloat16 if use_bf16 else f32

    B, S, H = token_embeds.shape
    L, D = params["lbl"].shape
    LP = ((L + 127) // 128) * 128                      # lane-dense classifier width

    TB = _pick_batch_tile(B, S) if batch_tile is None else batch_tile
    assert B % TB == 0, "batch_tile must divide the batch"
    n_tiles = B // TB
    rows = TB * S
    assert n_tiles == 1 or rows % 8 == 0, (
        "TB*S must be a multiple of 8 when the batch is tiled (sublane tiling)")

    # ---- one-time, batch-invariant precompute (hoisted out of the kernel) ----
    sg = source_graph.astype(f32)
    adj = jnp.where(sg == jnp.inf, 0.0, sg) + jnp.eye(L, dtype=f32)
    rowsum = adj.sum(axis=1)
    dinv = jnp.where(rowsum > 0, rowsum ** -0.5, 0.0)
    adj_norm = (adj * dinv[:, None] * dinv[None, :]).astype(cdt)  # D^-1/2 A D^-1/2

    bq = (params["wp_b"] + params["bp"]).reshape(1, D).astype(f32)
    br = (params["wpr_b"] + params["b_prime"]).reshape(1, H).astype(f32)
    gcn_b = params["gcn_b"].reshape(1, D).astype(f32)

    def _pad_cols(w, b):
        wpad = jnp.zeros((w.shape[0], LP), f32).at[:, :L].set(w.astype(f32))
        bpad = jnp.zeros((1, LP), f32).at[:, :L].set(b.reshape(1, L).astype(f32))
        return wpad.astype(cdt), bpad

    cls_w, cls_b = _pad_cols(params["cls_w"], params["cls_b"])
    aux_w, aux_b = _pad_cols(params["aux_w"], params["aux_b"])

    wp_w = params["wp_w"].astype(cdt)
    lbl = params["lbl"].astype(cdt)
    gcn_w = params["gcn_w"].astype(cdt)
    wpr_w = params["wpr_w"].astype(cdt)
    tok_flat = token_embeds.reshape(B * S, H).astype(cdt)        # row-fold batch*seq

    # ---- VMEM budget: invariant weights + double-buffered row slabs ----------
    isz = jnp.dtype(cdt).itemsize
    weight_bytes = (H * D + D * D + D * H + 2 * H * LP + L * D + L * L) * isz
    bias_bytes = (2 * D + H + 2 * LP) * 4
    slab_bytes = rows * (H * isz + H * 4 + LP * 4) + TB * LP * 4
    inter_bytes = rows * (3 * D + LP) * 4 + TB * L * (S + 3 * D) * 4
    est = 2 * (weight_bytes + bias_bytes) + 2 * slab_bytes + inter_bytes
    vmem_limit = int(min(128 * 1024 * 1024, max(32 * 1024 * 1024, int(est * 1.3))))

    out_shape = (
        jax.ShapeDtypeStruct((B * S, LP), f32),     # logits (lane-padded)
        jax.ShapeDtypeStruct((B, 1, LP), f32),      # aux logits (lane-padded)
        jax.ShapeDtypeStruct((B * S, H), f32),      # enhanced embeddings
    )
    kern = functools.partial(_lstner_kernel, tb=TB, seq=S, cdt=cdt)

    def _call(single_buffer):
        def _inv(shape):
            nd = len(shape)
            idx = lambda i, _n=nd: (0,) * _n
            if single_buffer:
                # Grid-invariant block: double-buffering it is pure VMEM waste.
                return pl.BlockSpec(shape, idx, pipeline_mode=pl.Buffered(1))
            return pl.BlockSpec(shape, idx)

        in_specs = [
            pl.BlockSpec((rows, H), lambda i: (i, 0)),          # token rows
            _inv((L, L)),                                       # normalized adjacency
            _inv((H, D)), _inv((1, D)), _inv((L, D)),           # Wp, (Wp.b+bp), labels
            _inv((D, D)), _inv((1, D)),                         # gcn_w, gcn_b
            _inv((D, H)), _inv((1, H)),                         # W', (W'.b+b')
            _inv((H, LP)), _inv((1, LP)),                       # classifier (padded)
            _inv((H, LP)), _inv((1, LP)),                       # aux classifier (padded)
        ]
        out_specs = (
            pl.BlockSpec((rows, LP), lambda i: (i, 0)),         # logits (lane-dense)
            pl.BlockSpec((TB, 1, LP), lambda i: (i, 0, 0)),     # aux logits
            pl.BlockSpec((rows, H), lambda i: (i, 0)),          # enhanced embeddings
        )
        return pl.pallas_call(
            kern,
            grid=(n_tiles,),
            in_specs=in_specs,
            out_specs=out_specs,
            out_shape=out_shape,
            compiler_params=pltpu.CompilerParams(
                dimension_semantics=("parallel",),              # batch tiles independent
                vmem_limit_bytes=vmem_limit),
        )(tok_flat, adj_norm,
          wp_w, bq, lbl,
          gcn_w, gcn_b,
          wpr_w, br,
          cls_w, cls_b, aux_w, aux_b)

    try:
        logits_p, aux_p, enh_flat = _call(single_buffer_weights)
    except Exception:  # pl.Buffered(1) unsupported on this JAX version -> double buffer
        logits_p, aux_p, enh_flat = _call(False)

    return {
        "logits": logits_p[:, :L].reshape(B, S, L),
        "aux_logits": aux_p[:, 0, :L],
        "enhanced_embeds": enh_flat.reshape(B, S, H),
    }


# -----------------------------------------------------------------------------
# Pure-JAX reference (mirrors the PyTorch forward).  `compute_dtype` mirrors the
# kernel's MXU-operand casts so the bf16 path can be checked tightly as well.
# -----------------------------------------------------------------------------
def lstner_reference(token_embeds, source_graph, params, compute_dtype=jnp.float32):
    f32 = jnp.float32
    cdt = compute_dtype
    L = params["lbl"].shape[0]

    sg = source_graph.astype(f32)
    adj = jnp.where(sg == jnp.inf, 0.0, sg) + jnp.eye(L, dtype=f32)
    rowsum = adj.sum(axis=1)
    dinv = jnp.where(rowsum > 0, rowsum ** -0.5, 0.0)
    adj_n = (adj * dinv[:, None] * dinv[None, :]).astype(cdt)

    wp_w = params["wp_w"].astype(cdt)
    lbl = params["lbl"].astype(cdt)
    gcn_w = params["gcn_w"].astype(cdt)
    wpr_w = params["wpr_w"].astype(cdt)
    cls_w = params["cls_w"].astype(cdt)
    aux_w = params["aux_w"].astype(cdt)
    bq = (params["wp_b"] + params["bp"]).astype(f32)
    br = (params["wpr_b"] + params["b_prime"]).astype(f32)

    def per_batch(x):
        x_c = x.astype(cdt)
        q = jnp.dot(x_c, wp_w, preferred_element_type=f32) + bq            # [S, D]
        q_c = q.astype(cdt)
        scores = jnp.dot(q_c, lbl.T, preferred_element_type=f32)           # [S, L]
        alpha = jax.nn.softmax(scores, axis=0)                             # over seq
        comps = jnp.dot(alpha.T.astype(cdt), q_c, preferred_element_type=f32)  # [L, D]
        support = jnp.dot(comps.astype(cdt), gcn_w, preferred_element_type=f32)
        enh_c = jnp.dot(adj_n, support.astype(cdt),
                        preferred_element_type=f32) + params["gcn_b"]      # [L, D]
        beta_scores = jnp.dot(q_c, enh_c.astype(cdt).T, preferred_element_type=f32)
        beta = jax.nn.softmax(beta_scores, axis=-1)                        # over labels
        weighted = jnp.dot(beta.astype(cdt), enh_c.astype(cdt),
                           preferred_element_type=f32)                     # [S, D]
        enhanced = (x_c.astype(f32)
                    + jnp.dot(weighted.astype(cdt), wpr_w, preferred_element_type=f32)
                    + br)
        logits = jnp.dot(enhanced.astype(cdt), cls_w,
                         preferred_element_type=f32) + params["cls_b"]
        avg = jnp.mean(enhanced, axis=0, keepdims=True)
        aux = jnp.dot(avg.astype(cdt), aux_w,
                      preferred_element_type=f32) + params["aux_b"]
        return logits, aux[0], enhanced

    lg, ax, et = jax.vmap(per_batch)(token_embeds)
    return {"logits": lg, "aux_logits": ax, "enhanced_embeds": et}


if __name__ == "__main__":
    B, S, H, L = 2, 8, 32, 9          # hidden_dim == dp_dim == H, num_labels == L
    D = H

    key = jax.random.PRNGKey(0)
    ks = jax.random.split(key, 16)

    token_embeds = jax.random.normal(ks[0], (B, S, H), jnp.float32)
    source_graph = jax.random.uniform(ks[1], (L, L), jnp.float32)

    def init_w(k, shape, fan_in):
        return jax.random.normal(k, shape, jnp.float32) / jnp.sqrt(fan_in)

    params = {
        "wp_w": init_w(ks[2], (H, D), H),
        "wp_b": init_w(ks[3], (1, D), D),
        "bp": init_w(ks[4], (1, D), D),
        "lbl": jax.random.normal(ks[5], (L, D), jnp.float32),
        "gcn_w": init_w(ks[6], (D, D), D),
        "gcn_b": init_w(ks[7], (1, D), D),
        "wpr_w": init_w(ks[8], (D, H), D),
        "wpr_b": init_w(ks[9], (1, H), H),
        "b_prime": init_w(ks[10], (1, H), H),
        "cls_w": init_w(ks[11], (H, L), H),
        "cls_b": init_w(ks[12], (1, L), L),
        "aux_w": init_w(ks[13], (H, L), H),
        "aux_b": init_w(ks[14], (1, L), L),
    }

    names = ("logits", "aux_logits", "enhanced_embeds")

    # Exact-structure check in f32.
    out32 = jax.block_until_ready(
        lstner_forward(token_embeds, source_graph, params, use_bf16=False))
    ref32 = jax.block_until_ready(
        lstner_reference(token_embeds, source_graph, params, jnp.float32))
    for n in names:
        assert out32[n].shape == ref32[n].shape, n
        assert jnp.allclose(out32[n], ref32[n], rtol=1e-4, atol=1e-4), n

    # Default bf16-MXU path, checked against a reference with matching casts.
    out16 = jax.block_until_ready(
        lstner_forward(token_embeds, source_graph, params))
    ref16 = jax.block_until_ready(
        lstner_reference(token_embeds, source_graph, params, jnp.bfloat16))
    for n in names:
        assert out16[n].shape == ref16[n].shape, n
        assert jnp.allclose(out16[n], ref16[n], rtol=5e-3, atol=5e-3), n

    print("KERNEL_OK")
</pallas_src>

<mosaic_0001>
module attributes {stable_mosaic.version = 11 : i64} {
  func.func @_lstner_kernel(%arg0: i32, %arg1: memref<8x32xf32, #tpu.memory_space<vmem>>, %arg2: memref<9x9xf32, #tpu.memory_space<vmem>>, %arg3: memref<32x32xf32, #tpu.memory_space<vmem>>, %arg4: memref<1x32xf32, #tpu.memory_space<vmem>>, %arg5: memref<9x32xf32, #tpu.memory_space<vmem>>, %arg6: memref<32x32xf32, #tpu.memory_space<vmem>>, %arg7: memref<1x32xf32, #tpu.memory_space<vmem>>, %arg8: memref<32x32xf32, #tpu.memory_space<vmem>>, %arg9: memref<1x32xf32, #tpu.memory_space<vmem>>, %arg10: memref<32x128xf32, #tpu.memory_space<vmem>>, %arg11: memref<1x128xf32, #tpu.memory_space<vmem>>, %arg12: memref<32x128xf32, #tpu.memory_space<vmem>>, %arg13: memref<1x128xf32, #tpu.memory_space<vmem>>, %arg14: memref<8x128xf32, #tpu.memory_space<vmem>>, %arg15: memref<1x1x128xf32, #tpu.memory_space<vmem>>, %arg16: memref<8x32xf32, #tpu.memory_space<vmem>>) attributes {dimension_semantics = [#tpu.dimension_semantics<parallel>], iteration_bounds = array<i64: 2>, scalar_prefetch = 0 : i64, scratch_operands = 0 : i64, tpu.core_type = #tpu.core_type<tc>, window_params = [{transform_indices = @transform_0, window_bounds = array<i64: 8, 32>}, {pipeline_mode = #tpu.pipeline_mode<synchronous>, transform_indices = @transform_1, window_bounds = array<i64: 9, 9>}, {pipeline_mode = #tpu.pipeline_mode<synchronous>, transform_indices = @transform_2, window_bounds = array<i64: 32, 32>}, {pipeline_mode = #tpu.pipeline_mode<synchronous>, transform_indices = @transform_3, window_bounds = array<i64: 1, 32>}, {pipeline_mode = #tpu.pipeline_mode<synchronous>, transform_indices = @transform_4, window_bounds = array<i64: 9, 32>}, {pipeline_mode = #tpu.pipeline_mode<synchronous>, transform_indices = @transform_5, window_bounds = array<i64: 32, 32>}, {pipeline_mode = #tpu.pipeline_mode<synchronous>, transform_indices = @transform_6, window_bounds = array<i64: 1, 32>}, {pipeline_mode = #tpu.pipeline_mode<synchronous>, transform_indices = @transform_7, window_bounds = array<i64: 32, 32>}, {pipeline_mode = #tpu.pipeline_mode<synchronous>, transform_indices = @transform_8, window_bounds = array<i64: 1, 32>}, {pipeline_mode = #tpu.pipeline_mode<synchronous>, transform_indices = @transform_9, window_bounds = array<i64: 32, 128>}, {pipeline_mode = #tpu.pipeline_mode<synchronous>, transform_indices = @transform_10, window_bounds = array<i64: 1, 128>}, {pipeline_mode = #tpu.pipeline_mode<synchronous>, transform_indices = @transform_11, window_bounds = array<i64: 32, 128>}, {pipeline_mode = #tpu.pipeline_mode<synchronous>, transform_indices = @transform_12, window_bounds = array<i64: 1, 128>}, {transform_indices = @transform_13, window_bounds = array<i64: 8, 128>}, {transform_indices = @transform_14, window_bounds = array<i64: 1, 1, 128>}, {transform_indices = @transform_15, window_bounds = array<i64: 8, 32>}]} {
    %c0 = arith.constant 0 : index
    %c0_0 = arith.constant 0 : index
    %0 = vector.load %arg1[%c0, %c0_0] : memref<8x32xf32, #tpu.memory_space<vmem>>, vector<8x32xf32>
    %c0_1 = arith.constant 0 : index
    %c0_2 = arith.constant 0 : index
    %1 = vector.load %arg3[%c0_1, %c0_2] : memref<32x32xf32, #tpu.memory_space<vmem>>, vector<32x32xf32>
    %cst = arith.constant dense<0.000000e+00> : vector<8x32xf32>
    %2 = tpu.matmul %0, %1, %cst {dimension_numbers = #tpu.dot_dimension_numbers<[1], [0], [0], [1], [0, 0, 1, 1], [], []>} : vector<8x32xf32>, vector<32x32xf32>, vector<8x32xf32> -> vector<8x32xf32>
    %c0_3 = arith.constant 0 : index
    %c0_4 = arith.constant 0 : index
    %3 = vector.load %arg4[%c0_3, %c0_4] : memref<1x32xf32, #tpu.memory_space<vmem>>, vector<1x32xf32>
    %4 = vector.broadcast %3 : vector<1x32xf32> to vector<8x32xf32>
    %5 = arith.addf %2, %4 : vector<8x32xf32>
    %6 = vector.shape_cast %5 : vector<8x32xf32> to vector<1x8x32xf32>
    %c0_5 = arith.constant 0 : index
    %c0_6 = arith.constant 0 : index
    %7 = vector.load %arg5[%c0_5, %c0_6] : memref<9x32xf32, #tpu.memory_space<vmem>>, vector<9x32xf32>
    %8 = vector.shape_cast %7 : vector<9x32xf32> to vector<1x9x32xf32>
    "tpu.trace_start"() <{level = 10 : i32, message = "bld,bsd->bls"}> : () -> ()
    %cst_7 = arith.constant dense<0.000000e+00> : vector<1x9x8xf32>
    %9 = tpu.matmul %8, %6, %cst_7 {dimension_numbers = #tpu.dot_dimension_numbers<[2], [2], [1], [1], [0, 0, 0, 1, 1, 1], [0], [0]>} : vector<1x9x32xf32>, vector<1x8x32xf32>, vector<1x9x8xf32> -> vector<1x9x8xf32>
    "tpu.trace_stop"() : () -> ()
    %cst_8 = arith.constant dense<0xFF800000> : vector<1x9xf32>
    %10 = vector.multi_reduction <maximumf>, %9, %cst_8 [2] : vector<1x9x8xf32> to vector<1x9xf32>
    %cst_9 = arith.constant 0xFF800000 : f32
    %11 = vector.broadcast %cst_9 : f32 to vector<1x9xf32>
    %12 = arith.maximumf %11, %10 : vector<1x9xf32>
    %13 = vector.shape_cast %12 : vector<1x9xf32> to vector<1x9x1xf32>
    %14 = vector.broadcast %13 : vector<1x9x1xf32> to vector<1x9x8xf32>
    %15 = arith.subf %9, %14 : vector<1x9x8xf32>
    %16 = math.exp %15 : vector<1x9x8xf32>
    %cst_10 = arith.constant dense<0.000000e+00> : vector<1x9xf32>
    %17 = vector.multi_reduction <add>, %16, %cst_10 [2] : vector<1x9x8xf32> to vector<1x9xf32>
    %18 = vector.shape_cast %17 : vector<1x9xf32> to vector<1x9x1xf32>
    %19 = vector.broadcast %18 : vector<1x9x1xf32> to vector<1x9x8xf32>
    %20 = arith.divf %16, %19 : vector<1x9x8xf32>
    "tpu.trace_start"() <{level = 10 : i32, message = "bls,bsd->bld"}> : () -> ()
    %cst_11 = arith.constant dense<0.000000e+00> : vector<1x9x32xf32>
    %21 = tpu.matmul %20, %6, %cst_11 {dimension_numbers = #tpu.dot_dimension_numbers<[2], [1], [1], [2], [0, 0, 0, 1, 1, 2], [0], [0]>} : vector<1x9x8xf32>, vector<1x8x32xf32>, vector<1x9x32xf32> -> vector<1x9x32xf32>
    "tpu.trace_stop"() : () -> ()
    %22 = vector.shape_cast %21 : vector<1x9x32xf32> to vector<9x32xf32>
    %c0_12 = arith.constant 0 : index
    %c0_13 = arith.constant 0 : index
    %23 = vector.load %arg6[%c0_12, %c0_13] : memref<32x32xf32, #tpu.memory_space<vmem>>, vector<32x32xf32>
    %cst_14 = arith.constant dense<0.000000e+00> : vector<9x32xf32>
    %24 = tpu.matmul %22, %23, %cst_14 {dimension_numbers = #tpu.dot_dimension_numbers<[1], [0], [0], [1], [0, 0, 1, 1], [], []>} : vector<9x32xf32>, vector<32x32xf32>, vector<9x32xf32> -> vector<9x32xf32>
    %25 = vector.shape_cast %24 : vector<9x32xf32> to vector<1x9x32xf32>
    %c0_15 = arith.constant 0 : index
    %c0_16 = arith.constant 0 : index
    %26 = vector.load %arg2[%c0_15, %c0_16] : memref<9x9xf32, #tpu.memory_space<vmem>>, vector<9x9xf32>
    %27 = vector.shape_cast %26 : vector<9x9xf32> to vector<1x9x9xf32>
    "tpu.trace_start"() <{level = 10 : i32, message = "blm,bmd->bld"}> : () -> ()
    %cst_17 = arith.constant dense<0.000000e+00> : vector<1x9x32xf32>
    %28 = tpu.matmul %27, %25, %cst_17 {dimension_numbers = #tpu.dot_dimension_numbers<[2], [1], [1], [2], [0, 0, 0, 1, 1, 2], [0], [0]>} : vector<1x9x9xf32>, vector<1x9x32xf32>, vector<1x9x32xf32> -> vector<1x9x32xf32>
    "tpu.trace_stop"() : () -> ()
    %c0_18 = arith.constant 0 : index
    %c0_19 = arith.constant 0 : index
    %29 = vector.load %arg7[%c0_18, %c0_19] : memref<1x32xf32, #tpu.memory_space<vmem>>, vector<1x32xf32>
    %30 = vector.shape_cast %29 : vector<1x32xf32> to vector<1x1x32xf32>
    %31 = vector.broadcast %30 : vector<1x1x32xf32> to vector<1x9x32xf32>
    %32 = arith.addf %28, %31 : vector<1x9x32xf32>
    "tpu.trace_start"() <{level = 10 : i32, message = "bsd,bld->bsl"}> : () -> ()
    %cst_20 = arith.constant dense<0.000000e+00> : vector<1x8x9xf32>
    %33 = tpu.matmul %6, %32, %cst_20 {dimension_numbers = #tpu.dot_dimension_numbers<[2], [2], [1], [1], [0, 0, 0, 1, 1, 1], [0], [0]>} : vector<1x8x32xf32>, vector<1x9x32xf32>, vector<1x8x9xf32> -> vector<1x8x9xf32>
    "tpu.trace_stop"() : () -> ()
    %cst_21 = arith.constant dense<0xFF800000> : vector<1x8xf32>
    %34 = vector.multi_reduction <maximumf>, %33, %cst_21 [2] : vector<1x8x9xf32> to vector<1x8xf32>
    %cst_22 = arith.constant 0xFF800000 : f32
    %35 = vector.broadcast %cst_22 : f32 to vector<1x8xf32>
    %36 = arith.maximumf %35, %34 : vector<1x8xf32>
    %37 = vector.shape_cast %36 : vector<1x8xf32> to vector<1x8x1xf32>
    %38 = vector.broadcast %37 : vector<1x8x1xf32> to vector<1x8x9xf32>
    %39 = arith.subf %33, %38 : vector<1x8x9xf32>
    %40 = math.exp %39 : vector<1x8x9xf32>
    %cst_23 = arith.constant dense<0.000000e+00> : vector<1x8xf32>
    %41 = vector.multi_reduction <add>, %40, %cst_23 [2] : vector<1x8x9xf32> to vector<1x8xf32>
    %42 = vector.shape_cast %41 : vector<1x8xf32> to vector<1x8x1xf32>
    %43 = vector.broadcast %42 : vector<1x8x1xf32> to vector<1x8x9xf32>
    %44 = arith.divf %40, %43 : vector<1x8x9xf32>
    "tpu.trace_start"() <{level = 10 : i32, message = "bsl,bld->bsd"}> : () -> ()
    %cst_24 = arith.constant dense<0.000000e+00> : vector<1x8x32xf32>
    %45 = tpu.matmul %44, %32, %cst_24 {dimension_numbers = #tpu.dot_dimension_numbers<[2], [1], [1], [2], [0, 0, 0, 1, 1, 2], [0], [0]>} : vector<1x8x9xf32>, vector<1x9x32xf32>, vector<1x8x32xf32> -> vector<1x8x32xf32>
    "tpu.trace_stop"() : () -> ()
    %46 = vector.shape_cast %45 : vector<1x8x32xf32> to vector<8x32xf32>
    %c0_25 = arith.constant 0 : index
    %c0_26 = arith.constant 0 : index
    %47 = vector.load %arg8[%c0_25, %c0_26] : memref<32x32xf32, #tpu.memory_space<vmem>>, vector<32x32xf32>
    %cst_27 = arith.constant dense<0.000000e+00> : vector<8x32xf32>
    %48 = tpu.matmul %46, %47, %cst_27 {dimension_numbers = #tpu.dot_dimension_numbers<[1], [0], [0], [1], [0, 0, 1, 1], [], []>} : vector<8x32xf32>, vector<32x32xf32>, vector<8x32xf32> -> vector<8x32xf32>
    %49 = arith.addf %0, %48 : vector<8x32xf32>
    %c0_28 = arith.constant 0 : index
    %c0_29 = arith.constant 0 : index
    %50 = vector.load %arg9[%c0_28, %c0_29] : memref<1x32xf32, #tpu.memory_space<vmem>>, vector<1x32xf32>
    %51 = vector.broadcast %50 : vector<1x32xf32> to vector<8x32xf32>
    %52 = arith.addf %49, %51 : vector<8x32xf32>
    %c0_30 = arith.constant 0 : index
    %c0_31 = arith.constant 0 : index
    %53 = vector.load %arg10[%c0_30, %c0_31] : memref<32x128xf32, #tpu.memory_space<vmem>>, vector<32x128xf32>
    %cst_32 = arith.constant dense<0.000000e+00> : vector<8x128xf32>
    %54 = tpu.matmul %52, %53, %cst_32 {dimension_numbers = #tpu.dot_dimension_numbers<[1], [0], [0], [1], [0, 0, 1, 1], [], []>} : vector<8x32xf32>, vector<32x128xf32>, vector<8x128xf32> -> vector<8x128xf32>
    %c0_33 = arith.constant 0 : index
    %c0_34 = arith.constant 0 : index
    %55 = vector.load %arg11[%c0_33, %c0_34] : memref<1x128xf32, #tpu.memory_space<vmem>>, vector<1x128xf32>
    %56 = vector.broadcast %55 : vector<1x128xf32> to vector<8x128xf32>
    %57 = arith.addf %54, %56 : vector<8x128xf32>
    %58 = vector.shape_cast %52 : vector<8x32xf32> to vector<1x8x32xf32>
    %cst_35 = arith.constant dense<0.000000e+00> : vector<1x32xf32>
    %59 = vector.multi_reduction <add>, %58, %cst_35 [1] : vector<1x8x32xf32> to vector<1x32xf32>
    %cst_36 = arith.constant 8.000000e+00 : f32
    %60 = vector.broadcast %cst_36 : f32 to vector<1x32xf32>
    %61 = arith.divf %59, %60 : vector<1x32xf32>
    %c0_37 = arith.constant 0 : index
    %c0_38 = arith.constant 0 : index
    %62 = vector.load %arg12[%c0_37, %c0_38] : memref<32x128xf32, #tpu.memory_space<vmem>>, vector<32x128xf32>
    %cst_39 = arith.constant dense<0.000000e+00> : vector<1x128xf32>
    %63 = tpu.matmul %61, %62, %cst_39 {dimension_numbers = #tpu.dot_dimension_numbers<[1], [0], [0], [1], [0, 0, 1, 1], [], []>} : vector<1x32xf32>, vector<32x128xf32>, vector<1x128xf32> -> vector<1x128xf32>
    %c0_40 = arith.constant 0 : index
    %c0_41 = arith.constant 0 : index
    %64 = vector.load %arg13[%c0_40, %c0_41] : memref<1x128xf32, #tpu.memory_space<vmem>>, vector<1x128xf32>
    %65 = arith.addf %63, %64 : vector<1x128xf32>
    %c0_42 = arith.constant 0 : index
    %c0_43 = arith.constant 0 : index
    %66 = vector.load %arg14[%c0_42, %c0_43] : memref<8x128xf32, #tpu.memory_space<vmem>>, vector<8x128xf32>
    tpu.vector_store %arg14[%c0_42, %c0_43], %57 {strides = array<i32>} : memref<8x128xf32, #tpu.memory_space<vmem>>, vector<8x128xf32>,
    %c0_44 = arith.constant 0 : index
    %c0_45 = arith.constant 0 : index
    %67 = vector.load %arg16[%c0_44, %c0_45] : memref<8x32xf32, #tpu.memory_space<vmem>>, vector<8x32xf32>
    tpu.vector_store %arg16[%c0_44, %c0_45], %52 {strides = array<i32>} : memref<8x32xf32, #tpu.memory_space<vmem>>, vector<8x32xf32>,
    %68 = vector.shape_cast %65 : vector<1x128xf32> to vector<1x1x128xf32>
    %c0_46 = arith.constant 0 : index
    %c0_47 = arith.constant 0 : index
    %c0_48 = arith.constant 0 : index
    %69 = vector.load %arg15[%c0_46, %c0_47, %c0_48] : memref<1x1x128xf32, #tpu.memory_space<vmem>>, vector<1x1x128xf32>
    tpu.vector_store %arg15[%c0_46, %c0_47, %c0_48], %68 {strides = array<i32>} : memref<1x1x128xf32, #tpu.memory_space<vmem>>, vector<1x1x128xf32>,
    return
  }
  func.func @transform_0(%arg0: i32) -> (i32, i32) {
    %c0_i32 = arith.constant 0 : i32
    %c0_i32_0 = arith.constant 0 : i32
    return %arg0, %c0_i32 : i32, i32
  }
  func.func @transform_1(%arg0: i32) -> (i32, i32) {
    %c0_i32 = arith.constant 0 : i32
    %c0_i32_0 = arith.constant 0 : i32
    %c0_i32_1 = arith.constant 0 : i32
    return %c0_i32, %c0_i32_0 : i32, i32
  }
  func.func @transform_2(%arg0: i32) -> (i32, i32) {
    %c0_i32 = arith.constant 0 : i32
    %c0_i32_0 = arith.constant 0 : i32
    %c0_i32_1 = arith.constant 0 : i32
    return %c0_i32, %c0_i32_0 : i32, i32
  }
  func.func @transform_3(%arg0: i32) -> (i32, i32) {
    %c0_i32 = arith.constant 0 : i32
    %c0_i32_0 = arith.constant 0 : i32
    %c0_i32_1 = arith.constant 0 : i32
    return %c0_i32, %c0_i32_0 : i32, i32
  }
  func.func @transform_4(%arg0: i32) -> (i32, i32) {
    %c0_i32 = arith.constant 0 : i32
    %c0_i32_0 = arith.constant 0 : i32
    %c0_i32_1 = arith.constant 0 : i32
    return %c0_i32, %c0_i32_0 : i32, i32
  }
  func.func @transform_5(%arg0: i32) -> (i32, i32) {
    %c0_i32 = arith.constant 0 : i32
    %c0_i32_0 = arith.constant 0 : i32
    %c0_i32_1 = arith.constant 0 : i32
    return %c0_i32, %c0_i32_0 : i32, i32
  }
  func.func @transform_6(%arg0: i32) -> (i32, i32) {
    %c0_i32 = arith.constant 0 : i32
    %c0_i32_0 = arith.constant 0 : i32
    %c0_i32_1 = arith.constant 0 : i32
    return %c0_i32, %c0_i32_0 : i32, i32
  }
  func.func @transform_7(%arg0: i32) -> (i32, i32) {
    %c0_i32 = arith.constant 0 : i32
    %c0_i32_0 = arith.constant 0 : i32
    %c0_i32_1 = arith.constant 0 : i32
    return %c0_i32, %c0_i32_0 : i32, i32
  }
  func.func @transform_8(%arg0: i32) -> (i32, i32) {
    %c0_i32 = arith.constant 0 : i32
    %c0_i32_0 = arith.constant 0 : i32
    %c0_i32_1 = arith.constant 0 : i32
    return %c0_i32, %c0_i32_0 : i32, i32
  }
  func.func @transform_9(%arg0: i32) -> (i32, i32) {
    %c0_i32 = arith.constant 0 : i32
    %c0_i32_0 = arith.constant 0 : i32
    %c0_i32_1 = arith.constant 0 : i32
    return %c0_i32, %c0_i32_0 : i32, i32
  }
  func.func @transform_10(%arg0: i32) -> (i32, i32) {
    %c0_i32 = arith.constant 0 : i32
    %c0_i32_0 = arith.constant 0 : i32
    %c0_i32_1 = arith.constant 0 : i32
    return %c0_i32, %c0_i32_0 : i32, i32
  }
  func.func @transform_11(%arg0: i32) -> (i32, i32) {
    %c0_i32 = arith.constant 0 : i32
    %c0_i32_0 = arith.constant 0 : i32
    %c0_i32_1 = arith.constant 0 : i32
    return %c0_i32, %c0_i32_0 : i32, i32
  }
  func.func @transform_12(%arg0: i32) -> (i32, i32) {
    %c0_i32 = arith.constant 0 : i32
    %c0_i32_0 = arith.constant 0 : i32
    %c0_i32_1 = arith.constant 0 : i32
    return %c0_i32, %c0_i32_0 : i32, i32
  }
  func.func @transform_13(%arg0: i32) -> (i32, i32) {
    %c0_i32 = arith.constant 0 : i32
    %c0_i32_0 = arith.constant 0 : i32
    return %arg0, %c0_i32 : i32, i32
  }
  func.func @transform_14(%arg0: i32) -> (i32, i32, i32) {
    %c0_i32 = arith.constant 0 : i32
    %c0_i32_0 = arith.constant 0 : i32
    %c0_i32_1 = arith.constant 0 : i32
    return %arg0, %c0_i32, %c0_i32_0 : i32, i32, i32
  }
  func.func @transform_15(%arg0: i32) -> (i32, i32) {
    %c0_i32 = arith.constant 0 : i32
    %c0_i32_0 = arith.constant 0 : i32
    return %arg0, %c0_i32 : i32, i32
  }
}

module attributes {stable_mosaic.version = 11 : i64} {
  func.func @_lstner_kernel(%arg0: i32, %arg1: memref<8x32xf32, #tpu.memory_space<vmem>>, %arg2: memref<9x9xf32, #tpu.memory_space<vmem>>, %arg3: memref<32x32xf32, #tpu.memory_space<vmem>>, %arg4: memref<1x32xf32, #tpu.memory_space<vmem>>, %arg5: memref<9x32xf32, #tpu.memory_space<vmem>>, %arg6: memref<32x32xf32, #tpu.memory_space<vmem>>, %arg7: memref<1x32xf32, #tpu.memory_space<vmem>>, %arg8: memref<32x32xf32, #tpu.memory_space<vmem>>, %arg9: memref<1x32xf32, #tpu.memory_space<vmem>>, %arg10: memref<32x128xf32, #tpu.memory_space<vmem>>, %arg11: memref<1x128xf32, #tpu.memory_space<vmem>>, %arg12: memref<32x128xf32, #tpu.memory_space<vmem>>, %arg13: memref<1x128xf32, #tpu.memory_space<vmem>>, %arg14: memref<8x128xf32, #tpu.memory_space<vmem>>, %arg15: memref<1x1x128xf32, #tpu.memory_space<vmem>>, %arg16: memref<8x32xf32, #tpu.memory_space<vmem>>) attributes {dimension_semantics = [#tpu.dimension_semantics<parallel>], iteration_bounds = array<i64: 2>, scalar_prefetch = 0 : i64, scratch_operands = 0 : i64, tpu.core_type = #tpu.core_type<tc>, window_params = [{transform_indices = @transform_0, window_bounds = array<i64: 8, 32>}, {pipeline_mode = #tpu.pipeline_mode<synchronous>, transform_indices = @transform_1, window_bounds = array<i64: 9, 9>}, {pipeline_mode = #tpu.pipeline_mode<synchronous>, transform_indices = @transform_2, window_bounds = array<i64: 32, 32>}, {pipeline_mode = #tpu.pipeline_mode<synchronous>, transform_indices = @transform_3, window_bounds = array<i64: 1, 32>}, {pipeline_mode = #tpu.pipeline_mode<synchronous>, transform_indices = @transform_4, window_bounds = array<i64: 9, 32>}, {pipeline_mode = #tpu.pipeline_mode<synchronous>, transform_indices = @transform_5, window_bounds = array<i64: 32, 32>}, {pipeline_mode = #tpu.pipeline_mode<synchronous>, transform_indices = @transform_6, window_bounds = array<i64: 1, 32>}, {pipeline_mode = #tpu.pipeline_mode<synchronous>, transform_indices = @transform_7, window_bounds = array<i64: 32, 32>}, {pipeline_mode = #tpu.pipeline_mode<synchronous>, transform_indices = @transform_8, window_bounds = array<i64: 1, 32>}, {pipeline_mode = #tpu.pipeline_mode<synchronous>, transform_indices = @transform_9, window_bounds = array<i64: 32, 128>}, {pipeline_mode = #tpu.pipeline_mode<synchronous>, transform_indices = @transform_10, window_bounds = array<i64: 1, 128>}, {pipeline_mode = #tpu.pipeline_mode<synchronous>, transform_indices = @transform_11, window_bounds = array<i64: 32, 128>}, {pipeline_mode = #tpu.pipeline_mode<synchronous>, transform_indices = @transform_12, window_bounds = array<i64: 1, 128>}, {transform_indices = @transform_13, window_bounds = array<i64: 8, 128>}, {transform_indices = @transform_14, window_bounds = array<i64: 1, 1, 128>}, {transform_indices = @transform_15, window_bounds = array<i64: 8, 32>}]} {
    %c0 = arith.constant 0 : index
    %c0_0 = arith.constant 0 : index
    %0 = vector.load %arg1[%c0, %c0_0] : memref<8x32xf32, #tpu.memory_space<vmem>>, vector<8x32xf32>
    %c0_1 = arith.constant 0 : index
    %c0_2 = arith.constant 0 : index
    %1 = vector.load %arg3[%c0_1, %c0_2] : memref<32x32xf32, #tpu.memory_space<vmem>>, vector<32x32xf32>
    %cst = arith.constant dense<0.000000e+00> : vector<8x32xf32>
    %2 = tpu.matmul %0, %1, %cst {dimension_numbers = #tpu.dot_dimension_numbers<[1], [0], [0], [1], [0, 0, 1, 1], [], []>} : vector<8x32xf32>, vector<32x32xf32>, vector<8x32xf32> -> vector<8x32xf32>
    %c0_3 = arith.constant 0 : index
    %c0_4 = arith.constant 0 : index
    %3 = vector.load %arg4[%c0_3, %c0_4] : memref<1x32xf32, #tpu.memory_space<vmem>>, vector<1x32xf32>
    %4 = vector.broadcast %3 : vector<1x32xf32> to vector<8x32xf32>
    %5 = arith.addf %2, %4 : vector<8x32xf32>
    %6 = vector.shape_cast %5 : vector<8x32xf32> to vector<1x8x32xf32>
    %c0_5 = arith.constant 0 : index
    %c0_6 = arith.constant 0 : index
    %7 = vector.load %arg5[%c0_5, %c0_6] : memref<9x32xf32, #tpu.memory_space<vmem>>, vector<9x32xf32>
    %8 = vector.shape_cast %7 : vector<9x32xf32> to vector<1x9x32xf32>
    "tpu.trace_start"() <{level = 10 : i32, message = "bld,bsd->bls"}> : () -> ()
    %cst_7 = arith.constant dense<0.000000e+00> : vector<1x9x8xf32>
    %9 = tpu.matmul %8, %6, %cst_7 {dimension_numbers = #tpu.dot_dimension_numbers<[2], [2], [1], [1], [0, 0, 0, 1, 1, 1], [0], [0]>} : vector<1x9x32xf32>, vector<1x8x32xf32>, vector<1x9x8xf32> -> vector<1x9x8xf32>
    "tpu.trace_stop"() : () -> ()
    %cst_8 = arith.constant dense<0xFF800000> : vector<1x9xf32>
    %10 = vector.multi_reduction <maximumf>, %9, %cst_8 [2] : vector<1x9x8xf32> to vector<1x9xf32>
    %cst_9 = arith.constant 0xFF800000 : f32
    %11 = vector.broadcast %cst_9 : f32 to vector<1x9xf32>
    %12 = arith.maximumf %11, %10 : vector<1x9xf32>
    %13 = vector.shape_cast %12 : vector<1x9xf32> to vector<1x9x1xf32>
    %14 = vector.broadcast %13 : vector<1x9x1xf32> to vector<1x9x8xf32>
    %15 = arith.subf %9, %14 : vector<1x9x8xf32>
    %16 = math.exp %15 : vector<1x9x8xf32>
    %cst_10 = arith.constant dense<0.000000e+00> : vector<1x9xf32>
    %17 = vector.multi_reduction <add>, %16, %cst_10 [2] : vector<1x9x8xf32> to vector<1x9xf32>
    %18 = vector.shape_cast %17 : vector<1x9xf32> to vector<1x9x1xf32>
    %19 = vector.broadcast %18 : vector<1x9x1xf32> to vector<1x9x8xf32>
    %20 = arith.divf %16, %19 : vector<1x9x8xf32>
    "tpu.trace_start"() <{level = 10 : i32, message = "bls,bsd->bld"}> : () -> ()
    %cst_11 = arith.constant dense<0.000000e+00> : vector<1x9x32xf32>
    %21 = tpu.matmul %20, %6, %cst_11 {dimension_numbers = #tpu.dot_dimension_numbers<[2], [1], [1], [2], [0, 0, 0, 1, 1, 2], [0], [0]>} : vector<1x9x8xf32>, vector<1x8x32xf32>, vector<1x9x32xf32> -> vector<1x9x32xf32>
    "tpu.trace_stop"() : () -> ()
    %22 = vector.shape_cast %21 : vector<1x9x32xf32> to vector<9x32xf32>
    %c0_12 = arith.constant 0 : index
    %c0_13 = arith.constant 0 : index
    %23 = vector.load %arg6[%c0_12, %c0_13] : memref<32x32xf32, #tpu.memory_space<vmem>>, vector<32x32xf32>
    %cst_14 = arith.constant dense<0.000000e+00> : vector<9x32xf32>
    %24 = tpu.matmul %22, %23, %cst_14 {dimension_numbers = #tpu.dot_dimension_numbers<[1], [0], [0], [1], [0, 0, 1, 1], [], []>} : vector<9x32xf32>, vector<32x32xf32>, vector<9x32xf32> -> vector<9x32xf32>
    %25 = vector.shape_cast %24 : vector<9x32xf32> to vector<1x9x32xf32>
    %c0_15 = arith.constant 0 : index
    %c0_16 = arith.constant 0 : index
    %26 = vector.load %arg2[%c0_15, %c0_16] : memref<9x9xf32, #tpu.memory_space<vmem>>, vector<9x9xf32>
    %27 = vector.shape_cast %26 : vector<9x9xf32> to vector<1x9x9xf32>
    "tpu.trace_start"() <{level = 10 : i32, message = "blm,bmd->bld"}> : () -> ()
    %cst_17 = arith.constant dense<0.000000e+00> : vector<1x9x32xf32>
    %28 = tpu.matmul %27, %25, %cst_17 {dimension_numbers = #tpu.dot_dimension_numbers<[2], [1], [1], [2], [0, 0, 0, 1, 1, 2], [0], [0]>} : vector<1x9x9xf32>, vector<1x9x32xf32>, vector<1x9x32xf32> -> vector<1x9x32xf32>
    "tpu.trace_stop"() : () -> ()
    %c0_18 = arith.constant 0 : index
    %c0_19 = arith.constant 0 : index
    %29 = vector.load %arg7[%c0_18, %c0_19] : memref<1x32xf32, #tpu.memory_space<vmem>>, vector<1x32xf32>
    %30 = vector.shape_cast %29 : vector<1x32xf32> to vector<1x1x32xf32>
    %31 = vector.broadcast %30 : vector<1x1x32xf32> to vector<1x9x32xf32>
    %32 = arith.addf %28, %31 : vector<1x9x32xf32>
    "tpu.trace_start"() <{level = 10 : i32, message = "bsd,bld->bsl"}> : () -> ()
    %cst_20 = arith.constant dense<0.000000e+00> : vector<1x8x9xf32>
    %33 = tpu.matmul %6, %32, %cst_20 {dimension_numbers = #tpu.dot_dimension_numbers<[2], [2], [1], [1], [0, 0, 0, 1, 1, 1], [0], [0]>} : vector<1x8x32xf32>, vector<1x9x32xf32>, vector<1x8x9xf32> -> vector<1x8x9xf32>
    "tpu.trace_stop"() : () -> ()
    %cst_21 = arith.constant dense<0xFF800000> : vector<1x8xf32>
    %34 = vector.multi_reduction <maximumf>, %33, %cst_21 [2] : vector<1x8x9xf32> to vector<1x8xf32>
    %cst_22 = arith.constant 0xFF800000 : f32
    %35 = vector.broadcast %cst_22 : f32 to vector<1x8xf32>
    %36 = arith.maximumf %35, %34 : vector<1x8xf32>
    %37 = vector.shape_cast %36 : vector<1x8xf32> to vector<1x8x1xf32>
    %38 = vector.broadcast %37 : vector<1x8x1xf32> to vector<1x8x9xf32>
    %39 = arith.subf %33, %38 : vector<1x8x9xf32>
    %40 = math.exp %39 : vector<1x8x9xf32>
    %cst_23 = arith.constant dense<0.000000e+00> : vector<1x8xf32>
    %41 = vector.multi_reduction <add>, %40, %cst_23 [2] : vector<1x8x9xf32> to vector<1x8xf32>
    %42 = vector.shape_cast %41 : vector<1x8xf32> to vector<1x8x1xf32>
    %43 = vector.broadcast %42 : vector<1x8x1xf32> to vector<1x8x9xf32>
    %44 = arith.divf %40, %43 : vector<1x8x9xf32>
    "tpu.trace_start"() <{level = 10 : i32, message = "bsl,bld->bsd"}> : () -> ()
    %cst_24 = arith.constant dense<0.000000e+00> : vector<1x8x32xf32>
    %45 = tpu.matmul %44, %32, %cst_24 {dimension_numbers = #tpu.dot_dimension_numbers<[2], [1], [1], [2], [0, 0, 0, 1, 1, 2], [0], [0]>} : vector<1x8x9xf32>, vector<1x9x32xf32>, vector<1x8x32xf32> -> vector<1x8x32xf32>
    "tpu.trace_stop"() : () -> ()
    %46 = vector.shape_cast %45 : vector<1x8x32xf32> to vector<8x32xf32>
    %c0_25 = arith.constant 0 : index
    %c0_26 = arith.constant 0 : index
    %47 = vector.load %arg8[%c0_25, %c0_26] : memref<32x32xf32, #tpu.memory_space<vmem>>, vector<32x32xf32>
    %cst_27 = arith.constant dense<0.000000e+00> : vector<8x32xf32>
    %48 = tpu.matmul %46, %47, %cst_27 {dimension_numbers = #tpu.dot_dimension_numbers<[1], [0], [0], [1], [0, 0, 1, 1], [], []>} : vector<8x32xf32>, vector<32x32xf32>, vector<8x32xf32> -> vector<8x32xf32>
    %49 = arith.addf %0, %48 : vector<8x32xf32>
    %c0_28 = arith.constant 0 : index
    %c0_29 = arith.constant 0 : index
    %50 = vector.load %arg9[%c0_28, %c0_29] : memref<1x32xf32, #tpu.memory_space<vmem>>, vector<1x32xf32>
    %51 = vector.broadcast %50 : vector<1x32xf32> to vector<8x32xf32>
    %52 = arith.addf %49, %51 : vector<8x32xf32>
    %c0_30 = arith.constant 0 : index
    %c0_31 = arith.constant 0 : index
    %53 = vector.load %arg10[%c0_30, %c0_31] : memref<32x128xf32, #tpu.memory_space<vmem>>, vector<32x128xf32>
    %cst_32 = arith.constant dense<0.000000e+00> : vector<8x128xf32>
    %54 = tpu.matmul %52, %53, %cst_32 {dimension_numbers = #tpu.dot_dimension_numbers<[1], [0], [0], [1], [0, 0, 1, 1], [], []>} : vector<8x32xf32>, vector<32x128xf32>, vector<8x128xf32> -> vector<8x128xf32>
    %c0_33 = arith.constant 0 : index
    %c0_34 = arith.constant 0 : index
    %55 = vector.load %arg11[%c0_33, %c0_34] : memref<1x128xf32, #tpu.memory_space<vmem>>, vector<1x128xf32>
    %56 = vector.broadcast %55 : vector<1x128xf32> to vector<8x128xf32>
    %57 = arith.addf %54, %56 : vector<8x128xf32>
    %58 = vector.shape_cast %52 : vector<8x32xf32> to vector<1x8x32xf32>
    %cst_35 = arith.constant dense<0.000000e+00> : vector<1x32xf32>
    %59 = vector.multi_reduction <add>, %58, %cst_35 [1] : vector<1x8x32xf32> to vector<1x32xf32>
    %cst_36 = arith.constant 8.000000e+00 : f32
    %60 = vector.broadcast %cst_36 : f32 to vector<1x32xf32>
    %61 = arith.divf %59, %60 : vector<1x32xf32>
    %c0_37 = arith.constant 0 : index
    %c0_38 = arith.constant 0 : index
    %62 = vector.load %arg12[%c0_37, %c0_38] : memref<32x128xf32, #tpu.memory_space<vmem>>, vector<32x128xf32>
    %cst_39 = arith.constant dense<0.000000e+00> : vector<1x128xf32>
    %63 = tpu.matmul %61, %62, %cst_39 {dimension_numbers = #tpu.dot_dimension_numbers<[1], [0], [0], [1], [0, 0, 1, 1], [], []>} : vector<1x32xf32>, vector<32x128xf32>, vector<1x128xf32> -> vector<1x128xf32>
    %c0_40 = arith.constant 0 : index
    %c0_41 = arith.constant 0 : index
    %64 = vector.load %arg13[%c0_40, %c0_41] : memref<1x128xf32, #tpu.memory_space<vmem>>, vector<1x128xf32>
    %65 = arith.addf %63, %64 : vector<1x128xf32>
    %c0_42 = arith.constant 0 : index
    %c0_43 = arith.constant 0 : index
    %66 = vector.load %arg14[%c0_42, %c0_43] : memref<8x128xf32, #tpu.memory_space<vmem>>, vector<8x128xf32>
    tpu.vector_store %arg14[%c0_42, %c0_43], %57 {strides = array<i32>} : memref<8x128xf32, #tpu.memory_space<vmem>>, vector<8x128xf32>,
    %c0_44 = arith.constant 0 : index
    %c0_45 = arith.constant 0 : index
    %67 = vector.load %arg16[%c0_44, %c0_45] : memref<8x32xf32, #tpu.memory_space<vmem>>, vector<8x32xf32>
    tpu.vector_store %arg16[%c0_44, %c0_45], %52 {strides = array<i32>} : memref<8x32xf32, #tpu.memory_space<vmem>>, vector<8x32xf32>,
    %68 = vector.shape_cast %65 : vector<1x128xf32> to vector<1x1x128xf32>
    %c0_46 = arith.constant 0 : index
    %c0_47 = arith.constant 0 : index
    %c0_48 = arith.constant 0 : index
    %69 = vector.load %arg15[%c0_46, %c0_47, %c0_48] : memref<1x1x128xf32, #tpu.memory_space<vmem>>, vector<1x1x128xf32>
    tpu.vector_store %arg15[%c0_46, %c0_47, %c0_48], %68 {strides = array<i32>} : memref<1x1x128xf32, #tpu.memory_space<vmem>>, vector<1x1x128xf32>,
    return
  }
  func.func @transform_0(%arg0: i32) -> (i32, i32) {
    %c0_i32 = arith.constant 0 : i32
    %c0_i32_0 = arith.constant 0 : i32
    return %arg0, %c0_i32 : i32, i32
  }
  func.func @transform_1(%arg0: i32) -> (i32, i32) {
    %c0_i32 = arith.constant 0 : i32
    %c0_i32_0 = arith.constant 0 : i32
    %c0_i32_1 = arith.constant 0 : i32
    return %c0_i32, %c0_i32_0 : i32, i32
  }
  func.func @transform_2(%arg0: i32) -> (i32, i32) {
    %c0_i32 = arith.constant 0 : i32
    %c0_i32_0 = arith.constant 0 : i32
    %c0_i32_1 = arith.constant 0 : i32
    return %c0_i32, %c0_i32_0 : i32, i32
  }
  func.func @transform_3(%arg0: i32) -> (i32, i32) {
    %c0_i32 = arith.constant 0 : i32
    %c0_i32_0 = arith.constant 0 : i32
    %c0_i32_1 = arith.constant 0 : i32
    return %c0_i32, %c0_i32_0 : i32, i32
  }
  func.func @transform_4(%arg0: i32) -> (i32, i32) {
    %c0_i32 = arith.constant 0 : i32
    %c0_i32_0 = arith.constant 0 : i32
    %c0_i32_1 = arith.constant 0 : i32
    return %c0_i32, %c0_i32_0 : i32, i32
  }
  func.func @transform_5(%arg0: i32) -> (i32, i32) {
    %c0_i32 = arith.constant 0 : i32
    %c0_i32_0 = arith.constant 0 : i32
    %c0_i32_1 = arith.constant 0 : i32
    return %c0_i32, %c0_i32_0 : i32, i32
  }
  func.func @transform_6(%arg0: i32) -> (i32, i32) {
    %c0_i32 = arith.constant 0 : i32
    %c0_i32_0 = arith.constant 0 : i32
    %c0_i32_1 = arith.constant 0 : i32
    return %c0_i32, %c0_i32_0 : i32, i32
  }
  func.func @transform_7(%arg0: i32) -> (i32, i32) {
    %c0_i32 = arith.constant 0 : i32
    %c0_i32_0 = arith.constant 0 : i32
    %c0_i32_1 = arith.constant 0 : i32
    return %c0_i32, %c0_i32_0 : i32, i32
  }
  func.func @transform_8(%arg0: i32) -> (i32, i32) {
    %c0_i32 = arith.constant 0 : i32
    %c0_i32_0 = arith.constant 0 : i32
    %c0_i32_1 = arith.constant 0 : i32
    return %c0_i32, %c0_i32_0 : i32, i32
  }
  func.func @transform_9(%arg0: i32) -> (i32, i32) {
    %c0_i32 = arith.constant 0 : i32
    %c0_i32_0 = arith.constant 0 : i32
    %c0_i32_1 = arith.constant 0 : i32
    return %c0_i32, %c0_i32_0 : i32, i32
  }
  func.func @transform_10(%arg0: i32) -> (i32, i32) {
    %c0_i32 = arith.constant 0 : i32
    %c0_i32_0 = arith.constant 0 : i32
    %c0_i32_1 = arith.constant 0 : i32
    return %c0_i32, %c0_i32_0 : i32, i32
  }
  func.func @transform_11(%arg0: i32) -> (i32, i32) {
    %c0_i32 = arith.constant 0 : i32
    %c0_i32_0 = arith.constant 0 : i32
    %c0_i32_1 = arith.constant 0 : i32
    return %c0_i32, %c0_i32_0 : i32, i32
  }
  func.func @transform_12(%arg0: i32) -> (i32, i32) {
    %c0_i32 = arith.constant 0 : i32
    %c0_i32_0 = arith.constant 0 : i32
    %c0_i32_1 = arith.constant 0 : i32
    return %c0_i32, %c0_i32_0 : i32, i32
  }
  func.func @transform_13(%arg0: i32) -> (i32, i32) {
    %c0_i32 = arith.constant 0 : i32
    %c0_i32_0 = arith.constant 0 : i32
    return %arg0, %c0_i32 : i32, i32
  }
  func.func @transform_14(%arg0: i32) -> (i32, i32, i32) {
    %c0_i32 = arith.constant 0 : i32
    %c0_i32_0 = arith.constant 0 : i32
    %c0_i32_1 = arith.constant 0 : i32
    return %arg0, %c0_i32, %c0_i32_0 : i32, i32, i32
  }
  func.func @transform_15(%arg0: i32) -> (i32, i32) {
    %c0_i32 = arith.constant 0 : i32
    %c0_i32_0 = arith.constant 0 : i32
    return %arg0, %c0_i32 : i32, i32
  }
}

</mosaic_0001>

<llo_original>
// kernel: tpu_custom_call.1
$region0: #{tpu_custom_call.1}
  #allocation0 [shape = 'u32[]', space=smem, size = 0x4, offset = 0x4, fixed_abs, tag = 'smem constant byte address 0x4 - core index']
  #allocation1 [shape = 'u32[144,128]{1,0:T(1,128)}', space=vmem, size = 0x12000, scoped, tag = 'internal scratch']
  %s0 = inlined_call_operand.hbm [shape: f32[16,32], index: 0, kind: input, shape index: {}]
  %s1 = inlined_call_operand.hbm [shape: f32[9,9], index: 1, kind: input, shape index: {}]
  %s2 = inlined_call_operand.hbm [shape: f32[32,32], index: 2, kind: input, shape index: {}]
  %s3 = inlined_call_operand.vmem [shape: f32[1,32], index: 3, kind: input, shape index: {}]
  %s4 = inlined_call_operand.hbm [shape: f32[9,32], index: 4, kind: input, shape index: {}]
  %s5 = inlined_call_operand.hbm [shape: f32[32,32], index: 5, kind: input, shape index: {}]
  %s6 = inlined_call_operand.vmem [shape: f32[1,32], index: 6, kind: input, shape index: {}]
  %s7 = inlined_call_operand.hbm [shape: f32[32,32], index: 7, kind: input, shape index: {}]
  %s8 = inlined_call_operand.vmem [shape: f32[1,32], index: 8, kind: input, shape index: {}]
  %s9 = inlined_call_operand.hbm [shape: f32[32,128], index: 9, kind: input, shape index: {}]
  %s10 = inlined_call_operand.vmem [shape: f32[1,128], index: 10, kind: input, shape index: {}]
  %s11 = inlined_call_operand.hbm [shape: f32[32,128], index: 11, kind: input, shape index: {}]
  %s12 = inlined_call_operand.vmem [shape: f32[1,128], index: 12, kind: input, shape index: {}]
  %s13 = inlined_call_operand.hbm [shape: f32[16,128], index: 13, kind: output, shape index: {0}]
  %s14 = inlined_call_operand.hbm [shape: f32[2,1,128], index: 14, kind: output, shape index: {1}]
  %s15 = inlined_call_operand.hbm [shape: f32[16,32], index: 15, kind: output, shape index: {2}]
  %16 = xla_tuple %s13, %s14, %s15
  %s17 = sld [smem:[#allocation0]]
  $region133: #{tpu_custom_call.1} parent=0
    _
  %s19 = ssub.s32 1, %s17
  %s20 = scalar_select 0, %s19, %s17
  $region1: #{tpu_custom_call.1} parent=0
    #allocation2 [shape = 'u8[8192]{0}', space=vmem, size = 0x2000, scoped, tag = 'input window, operand 0']
    #allocation3 [shape = 's32[2]{0}', space=sflag, size = 0x8, scoped, tag = 'scoped memory for tpu_custom_call.1']
    #allocation4 [shape = 's32[2]{0}', space=sflag, size = 0x8, scoped, tag = 'scoped memory for tpu_custom_call.1']
    #allocation5 [shape = 'u8[8192]{0}', space=vmem, size = 0x2000, scoped, tag = 'input window, operand 1, single buffered']
    #allocation6 [shape = 's32[1]{0}', space=sflag, size = 0x4, scoped, tag = 'scoped memory for tpu_custom_call.1']
    #allocation7 [shape = 'u8[16384]{0}', space=vmem, size = 0x4000, scoped, tag = 'input window, operand 2, single buffered']
    #allocation8 [shape = 'u8[8192]{0}', space=vmem, size = 0x2000, scoped, tag = 'input window, operand 4, single buffered']
    #allocation9 [shape = 's32[1]{0}', space=sflag, size = 0x4, scoped, tag = 'scoped memory for tpu_custom_call.1']
    #allocation10 [shape = 'u8[16384]{0}', space=vmem, size = 0x4000, scoped, tag = 'input window, operand 5, single buffered']
    #allocation11 [shape = 'u8[16384]{0}', space=vmem, size = 0x4000, scoped, tag = 'input window, operand 7, single buffered']
    #allocation12 [shape = 's32[1]{0}', space=sflag, size = 0x4, scoped, tag = 'scoped memory for tpu_custom_call.1']
    #allocation13 [shape = 'u8[16384]{0}', space=vmem, size = 0x4000, scoped, tag = 'input window, operand 9, single buffered']
    #allocation14 [shape = 'u8[16384]{0}', space=vmem, size = 0x4000, scoped, tag = 'input window, operand 11, single buffered']
    #allocation15 [shape = 's32[1]{0}', space=sflag, size = 0x4, scoped, tag = 'scoped memory for tpu_custom_call.1']
    #allocation16 [shape = 'u8[8192]{0}', space=vmem, size = 0x2000, scoped, tag = 'output window, operand 0']
    #allocation17 [shape = 'u8[1024]{0}', space=vmem, size = 0x400, scoped, tag = 'output window, operand 1']
    #allocation18 [shape = 's32[2]{0}', space=sflag, size = 0x8, scoped, tag = 'scoped memory for tpu_custom_call.1']
    #allocation19 [shape = 'u8[8192]{0}', space=vmem, size = 0x2000, scoped, tag = 'output window, operand 2']
    %21 = vsyncpa [#allocation3], 0
    %s22 = scalar_lea.sflag [#allocation3], 1
    %23 = vsyncpa %s22, 0
    %24 = vsyncpa [#allocation6], 0
    %25 = vsyncpa [#allocation9], 0
    %26 = vsyncpa [#allocation12], 0
    %27 = vsyncpa [#allocation15], 0
    %28 = vsyncpa [#allocation4], 0
    %s29 = scalar_lea.sflag [#allocation4], 1
    %30 = vsyncpa %s29, 0
    %31 = vsyncpa [#allocation18], 0
    %s32 = scalar_lea.sflag [#allocation18], 1
    %33 = vsyncpa %s32, 0
    loop: start=0, step=1, limit=4
    $region2: #{tpu_custom_call.1} parent=1 // loop_pre_header
      _
    $region3: #{tpu_custom_call.1} parent=1 // loop_header
      %s35 = sphi 0, %s39
      %p36 = scmp.ge.s32.totalorder %s35, 4
      %s45 = sphi 0, %s47
      %s48 = sphi 0, %s45
      %s49 = sphi 0, %s48
      %s65 = sphi 0, %s49
      %s69 = sphi 0, %s69
      %s71 = sphi 0, %s69
      %s72 = sphi 0, %s71
      %s86 = sphi 0, %s72
      %s90 = sphi 0, %s90
      %s92 = sphi 0, %s90
      %s93 = sphi 0, %s92
      %s107 = sphi 0, %s93
      %s111 = sphi 0, %s111
      %s113 = sphi 0, %s111
      %s114 = sphi 0, %s113
      %s128 = sphi 0, %s114
      %s132 = sphi 0, %s132
      %s134 = sphi 0, %s132
      %s135 = sphi 0, %s134
      %s149 = sphi 0, %s135
      %s153 = sphi 0, %s153
      %s155 = sphi 0, %s153
      %s156 = sphi 0, %s155
      %s170 = sphi 0, %s156
      %s174 = sphi 0, %s174
      %s176 = sphi 0, %s174
      %s177 = sphi 0, %s176
      %s191 = sphi 0, %s177
      %s195 = sphi 0, %s195
      %s197 = sphi 0, %s195
      %s198 = sphi 0, %s197
      %s212 = sphi 0, %s198
      %s216 = sphi 0, %s216
      %s218 = sphi 0, %s216
      %s219 = sphi 0, %s218
      %s233 = sphi 0, %s219
      %s237 = sphi 0, %s237
      %s239 = sphi 0, %s237
      %s240 = sphi 0, %s239
      %s254 = sphi 0, %s240
      %s258 = sphi 0, %s258
      %s260 = sphi 0, %s258
      %s261 = sphi 0, %s260
      %s275 = sphi 0, %s261
      %s279 = sphi 0, %s279
      %s281 = sphi 0, %s279
      %s282 = sphi 0, %s281
      %s296 = sphi 0, %s282
      %s300 = sphi 0, %s300
      %s302 = sphi 0, %s300
      %s303 = sphi 0, %s302
      %s317 = sphi 0, %s303
      %s323 = sphi 0, %s325
      %s326 = sphi 0, %s323
      %s327 = sphi 0, %s326
      %s343 = sphi 0, %s327
      %s349 = sphi 0, %s351
      %s352 = sphi 0, %s349
      %s353 = sphi 0, %s352
      %s369 = sphi 0, %s353
      %s375 = sphi 0, %s377
      %s378 = sphi 0, %s375
      %s379 = sphi 0, %s378
      %s395 = sphi 0, %s379
    $region4: #{tpu_custom_call.1} parent=1 // loop_header_branch
      %38 = sbr.rel (%p36) target = $region8
    $region5: #{tpu_custom_call.1} parent=1 // loop_body
      %s40 = ssub.s32 %s35, 1
      %s41 = ssub.s32 %s35, 2
      %s42 = sadd.s32 %s35, 1
      %s43 = ssub.s32 %s35, %s42
      %p44 = scmp.eq.s32.totalorder %s43, 0
      %s46 = sadd.s32 %s45, 1
      %s47 = scalar_select %p44, %s45, %s46
      %p50 = pneg %p44
      %p51 = scmp.eq.s32.totalorder %s35, 1
      %p52 = por %p50, %p51
      %p53 = scmp.ne.s32.totalorder %s45, %s48
      %p54 = scmp.eq.s32.totalorder %s35, 0
      %p55 = por %p53, %p54
      %p56 = scmp.ne.s32.totalorder %s45, %s48
      %p57 = scmp.eq.s32.totalorder %s40, 1
      %p58 = por %p56, %p57
      %p59 = scmp.ne.s32.totalorder %s48, %s49
      %p60 = scmp.eq.s32.totalorder %s40, 0
      %p61 = por %p59, %p60
      %p62 = scmp.ne.s32.totalorder %s48, %s49
      %p63 = scmp.eq.s32.totalorder %s41, 1
      %p64 = por %p62, %p63
      %p66 = scmp.ne.s32.totalorder %s49, %s65
      %p67 = scmp.eq.s32.totalorder %s41, 0
      %p68 = por %p66, %p67
      %s70 = sadd.s32 %s69, 1
      %p73 = scmp.eq.s32.totalorder %s35, 1
      %p74 = scmp.ne.s32.totalorder %s69, %s71
      %p75 = scmp.eq.s32.totalorder %s35, 0
      %p76 = por %p74, %p75
      %p77 = scmp.ne.s32.totalorder %s69, %s71
      %p78 = scmp.eq.s32.totalorder %s40, 1
      %p79 = por %p77, %p78
      %p80 = scmp.ne.s32.totalorder %s71, %s72
      %p81 = scmp.eq.s32.totalorder %s40, 0
      %p82 = por %p80, %p81
      %p83 = scmp.ne.s32.totalorder %s71, %s72
      %p84 = scmp.eq.s32.totalorder %s41, 1
      %p85 = por %p83, %p84
      %p87 = scmp.ne.s32.totalorder %s72, %s86
      %p88 = scmp.eq.s32.totalorder %s41, 0
      %p89 = por %p87, %p88
      %s91 = sadd.s32 %s90, 1
      %p94 = scmp.eq.s32.totalorder %s35, 1
      %p95 = scmp.ne.s32.totalorder %s90, %s92
      %p96 = scmp.eq.s32.totalorder %s35, 0
      %p97 = por %p95, %p96
      %p98 = scmp.ne.s32.totalorder %s90, %s92
      %p99 = scmp.eq.s32.totalorder %s40, 1
      %p100 = por %p98, %p99
      %p101 = scmp.ne.s32.totalorder %s92, %s93
      %p102 = scmp.eq.s32.totalorder %s40, 0
      %p103 = por %p101, %p102
      %p104 = scmp.ne.s32.totalorder %s92, %s93
      %p105 = scmp.eq.s32.totalorder %s41, 1
      %p106 = por %p104, %p105
      %p108 = scmp.ne.s32.totalorder %s93, %s107
      %p109 = scmp.eq.s32.totalorder %s41, 0
      %p110 = por %p108, %p109
      %s112 = sadd.s32 %s111, 1
      %p115 = scmp.eq.s32.totalorder %s35, 1
      %p116 = scmp.ne.s32.totalorder %s111, %s113
      %p117 = scmp.eq.s32.totalorder %s35, 0
      %p118 = por %p116, %p117
      %p119 = scmp.ne.s32.totalorder %s111, %s113
      %p120 = scmp.eq.s32.totalorder %s40, 1
      %p121 = por %p119, %p120
      %p122 = scmp.ne.s32.totalorder %s113, %s114
      %p123 = scmp.eq.s32.totalorder %s40, 0
      %p124 = por %p122, %p123
      %p125 = scmp.ne.s32.totalorder %s113, %s114
      %p126 = scmp.eq.s32.totalorder %s41, 1
      %p127 = por %p125, %p126
      %p129 = scmp.ne.s32.totalorder %s114, %s128
      %p130 = scmp.eq.s32.totalorder %s41, 0
      %p131 = por %p129, %p130
      %s133 = sadd.s32 %s132, 1
      %p136 = scmp.eq.s32.totalorder %s35, 1
      %p137 = scmp.ne.s32.totalorder %s132, %s134
      %p138 = scmp.eq.s32.totalorder %s35, 0
      %p139 = por %p137, %p138
      %p140 = scmp.ne.s32.totalorder %s132, %s134
      %p141 = scmp.eq.s32.totalorder %s40, 1
      %p142 = por %p140, %p141
      %p143 = scmp.ne.s32.totalorder %s134, %s135
      %p144 = scmp.eq.s32.totalorder %s40, 0
      %p145 = por %p143, %p144
      %p146 = scmp.ne.s32.totalorder %s134, %s135
      %p147 = scmp.eq.s32.totalorder %s41, 1
      %p148 = por %p146, %p147
      %p150 = scmp.ne.s32.totalorder %s135, %s149
      %p151 = scmp.eq.s32.totalorder %s41, 0
      %p152 = por %p150, %p151
      %s154 = sadd.s32 %s153, 1
      %p157 = scmp.eq.s32.totalorder %s35, 1
      %p158 = scmp.ne.s32.totalorder %s153, %s155
      %p159 = scmp.eq.s32.totalorder %s35, 0
      %p160 = por %p158, %p159
      %p161 = scmp.ne.s32.totalorder %s153, %s155
      %p162 = scmp.eq.s32.totalorder %s40, 1
      %p163 = por %p161, %p162
      %p164 = scmp.ne.s32.totalorder %s155, %s156
      %p165 = scmp.eq.s32.totalorder %s40, 0
      %p166 = por %p164, %p165
      %p167 = scmp.ne.s32.totalorder %s155, %s156
      %p168 = scmp.eq.s32.totalorder %s41, 1
      %p169 = por %p167, %p168
      %p171 = scmp.ne.s32.totalorder %s156, %s170
      %p172 = scmp.eq.s32.totalorder %s41, 0
      %p173 = por %p171, %p172
      %s175 = sadd.s32 %s174, 1
      %p178 = scmp.eq.s32.totalorder %s35, 1
      %p179 = scmp.ne.s32.totalorder %s174, %s176
      %p180 = scmp.eq.s32.totalorder %s35, 0
      %p181 = por %p179, %p180
      %p182 = scmp.ne.s32.totalorder %s174, %s176
      %p183 = scmp.eq.s32.totalorder %s40, 1
      %p184 = por %p182, %p183
      %p185 = scmp.ne.s32.totalorder %s176, %s177
      %p186 = scmp.eq.s32.totalorder %s40, 0
      %p187 = por %p185, %p186
      %p188 = scmp.ne.s32.totalorder %s176, %s177
      %p189 = scmp.eq.s32.totalorder %s41, 1
      %p190 = por %p188, %p189
      %p192 = scmp.ne.s32.totalorder %s177, %s191
      %p193 = scmp.eq.s32.totalorder %s41, 0
      %p194 = por %p192, %p193
      %s196 = sadd.s32 %s195, 1
      %p199 = scmp.eq.s32.totalorder %s35, 1
      %p200 = scmp.ne.s32.totalorder %s195, %s197
      %p201 = scmp.eq.s32.totalorder %s35, 0
      %p202 = por %p200, %p201
      %p203 = scmp.ne.s32.totalorder %s195, %s197
      %p204 = scmp.eq.s32.totalorder %s40, 1
      %p205 = por %p203, %p204
      %p206 = scmp.ne.s32.totalorder %s197, %s198
      %p207 = scmp.eq.s32.totalorder %s40, 0
      %p208 = por %p206, %p207
      %p209 = scmp.ne.s32.totalorder %s197, %s198
      %p210 = scmp.eq.s32.totalorder %s41, 1
      %p211 = por %p209, %p210
      %p213 = scmp.ne.s32.totalorder %s198, %s212
      %p214 = scmp.eq.s32.totalorder %s41, 0
      %p215 = por %p213, %p214
      %s217 = sadd.s32 %s216, 1
      %p220 = scmp.eq.s32.totalorder %s35, 1
      %p221 = scmp.ne.s32.totalorder %s216, %s218
      %p222 = scmp.eq.s32.totalorder %s35, 0
      %p223 = por %p221, %p222
      %p224 = scmp.ne.s32.totalorder %s216, %s218
      %p225 = scmp.eq.s32.totalorder %s40, 1
      %p226 = por %p224, %p225
      %p227 = scmp.ne.s32.totalorder %s218, %s219
      %p228 = scmp.eq.s32.totalorder %s40, 0
      %p229 = por %p227, %p228
      %p230 = scmp.ne.s32.totalorder %s218, %s219
      %p231 = scmp.eq.s32.totalorder %s41, 1
      %p232 = por %p230, %p231
      %p234 = scmp.ne.s32.totalorder %s219, %s233
      %p235 = scmp.eq.s32.totalorder %s41, 0
      %p236 = por %p234, %p235
      %s238 = sadd.s32 %s237, 1
      %p241 = scmp.eq.s32.totalorder %s35, 1
      %p242 = scmp.ne.s32.totalorder %s237, %s239
      %p243 = scmp.eq.s32.totalorder %s35, 0
      %p244 = por %p242, %p243
      %p245 = scmp.ne.s32.totalorder %s237, %s239
      %p246 = scmp.eq.s32.totalorder %s40, 1
      %p247 = por %p245, %p246
      %p248 = scmp.ne.s32.totalorder %s239, %s240
      %p249 = scmp.eq.s32.totalorder %s40, 0
      %p250 = por %p248, %p249
      %p251 = scmp.ne.s32.totalorder %s239, %s240
      %p252 = scmp.eq.s32.totalorder %s41, 1
      %p253 = por %p251, %p252
      %p255 = scmp.ne.s32.totalorder %s240, %s254
      %p256 = scmp.eq.s32.totalorder %s41, 0
      %p257 = por %p255, %p256
      %s259 = sadd.s32 %s258, 1
      %p262 = scmp.eq.s32.totalorder %s35, 1
      %p263 = scmp.ne.s32.totalorder %s258, %s260
      %p264 = scmp.eq.s32.totalorder %s35, 0
      %p265 = por %p263, %p264
      %p266 = scmp.ne.s32.totalorder %s258, %s260
      %p267 = scmp.eq.s32.totalorder %s40, 1
      %p268 = por %p266, %p267
      %p269 = scmp.ne.s32.totalorder %s260, %s261
      %p270 = scmp.eq.s32.totalorder %s40, 0
      %p271 = por %p269, %p270
      %p272 = scmp.ne.s32.totalorder %s260, %s261
      %p273 = scmp.eq.s32.totalorder %s41, 1
      %p274 = por %p272, %p273
      %p276 = scmp.ne.s32.totalorder %s261, %s275
      %p277 = scmp.eq.s32.totalorder %s41, 0
      %p278 = por %p276, %p277
      %s280 = sadd.s32 %s279, 1
      %p283 = scmp.eq.s32.totalorder %s35, 1
      %p284 = scmp.ne.s32.totalorder %s279, %s281
      %p285 = scmp.eq.s32.totalorder %s35, 0
      %p286 = por %p284, %p285
      %p287 = scmp.ne.s32.totalorder %s279, %s281
      %p288 = scmp.eq.s32.totalorder %s40, 1
      %p289 = por %p287, %p288
      %p290 = scmp.ne.s32.totalorder %s281, %s282
      %p291 = scmp.eq.s32.totalorder %s40, 0
      %p292 = por %p290, %p291
      %p293 = scmp.ne.s32.totalorder %s281, %s282
      %p294 = scmp.eq.s32.totalorder %s41, 1
      %p295 = por %p293, %p294
      %p297 = scmp.ne.s32.totalorder %s282, %s296
      %p298 = scmp.eq.s32.totalorder %s41, 0
      %p299 = por %p297, %p298
      %s301 = sadd.s32 %s300, 1
      %p304 = scmp.eq.s32.totalorder %s35, 1
      %p305 = scmp.ne.s32.totalorder %s300, %s302
      %p306 = scmp.eq.s32.totalorder %s35, 0
      %p307 = por %p305, %p306
      %p308 = scmp.ne.s32.totalorder %s300, %s302
      %p309 = scmp.eq.s32.totalorder %s40, 1
      %p310 = por %p308, %p309
      %p311 = scmp.ne.s32.totalorder %s302, %s303
      %p312 = scmp.eq.s32.totalorder %s40, 0
      %p313 = por %p311, %p312
      %p314 = scmp.ne.s32.totalorder %s302, %s303
      %p315 = scmp.eq.s32.totalorder %s41, 1
      %p316 = por %p314, %p315
      %p318 = scmp.ne.s32.totalorder %s303, %s317
      %p319 = scmp.eq.s32.totalorder %s41, 0
      %p320 = por %p318, %p319
      %s321 = ssub.s32 %s35, %s42
      %p322 = scmp.eq.s32.totalorder %s321, 0
      %s324 = sadd.s32 %s323, 1
      %s325 = scalar_select %p322, %s323, %s324
      %p328 = pneg %p322
      %p329 = scmp.eq.s32.totalorder %s35, 1
      %p330 = por %p328, %p329
      %p331 = scmp.ne.s32.totalorder %s323, %s326
      %p332 = scmp.eq.s32.totalorder %s35, 0
      %p333 = por %p331, %p332
      %p334 = scmp.ne.s32.totalorder %s323, %s326
      %p335 = scmp.eq.s32.totalorder %s40, 1
      %p336 = por %p334, %p335
      %p337 = scmp.ne.s32.totalorder %s326, %s327
      %p338 = scmp.eq.s32.totalorder %s40, 0
      %p339 = por %p337, %p338
      %p340 = scmp.ne.s32.totalorder %s326, %s327
      %p341 = scmp.eq.s32.totalorder %s41, 1
      %p342 = por %p340, %p341
      %p344 = scmp.ne.s32.totalorder %s327, %s343
      %p345 = scmp.eq.s32.totalorder %s41, 0
      %p346 = por %p344, %p345
      %s347 = ssub.s32 %s35, %s42
      %p348 = scmp.eq.s32.totalorder %s347, 0
      %s350 = sadd.s32 %s349, 1
      %s351 = scalar_select %p348, %s349, %s350
      %p354 = pneg %p348
      %p355 = scmp.eq.s32.totalorder %s35, 1
      %p356 = por %p354, %p355
      %p357 = scmp.ne.s32.totalorder %s349, %s352
      %p358 = scmp.eq.s32.totalorder %s35, 0
      %p359 = por %p357, %p358
      %p360 = scmp.ne.s32.totalorder %s349, %s352
      %p361 = scmp.eq.s32.totalorder %s40, 1
      %p362 = por %p360, %p361
      %p363 = scmp.ne.s32.totalorder %s352, %s353
      %p364 = scmp.eq.s32.totalorder %s40, 0
      %p365 = por %p363, %p364
      %p366 = scmp.ne.s32.totalorder %s352, %s353
      %p367 = scmp.eq.s32.totalorder %s41, 1
      %p368 = por %p366, %p367
      %p370 = scmp.ne.s32.totalorder %s353, %s369
      %p371 = scmp.eq.s32.totalorder %s41, 0
      %p372 = por %p370, %p371
      %s373 = ssub.s32 %s35, %s42
      %p374 = scmp.eq.s32.totalorder %s373, 0
      %s376 = sadd.s32 %s375, 1
      %s377 = scalar_select %p374, %s375, %s376
      %p380 = pneg %p374
      %p381 = scmp.eq.s32.totalorder %s35, 1
      %p382 = por %p380, %p381
      %p383 = scmp.ne.s32.totalorder %s375, %s378
      %p384 = scmp.eq.s32.totalorder %s35, 0
      %p385 = por %p383, %p384
      %p386 = scmp.ne.s32.totalorder %s375, %s378
      %p387 = scmp.eq.s32.totalorder %s40, 1
      %p388 = por %p386, %p387
      %p389 = scmp.ne.s32.totalorder %s378, %s379
      %p390 = scmp.eq.s32.totalorder %s40, 0
      %p391 = por %p389, %p390
      %p392 = scmp.ne.s32.totalorder %s378, %s379
      %p393 = scmp.eq.s32.totalorder %s41, 1
      %p394 = por %p392, %p393
      %p396 = scmp.ne.s32.totalorder %s379, %s395
      %p397 = scmp.eq.s32.totalorder %s41, 0
      %p398 = por %p396, %p397
      %p399 = scmp.le.s32.totalorder 1, %s35
      %p400 = scmp.lt.s32.totalorder %s35, 3
      %p401 = pnand %p399, %p400
      %p402 = pneg %p401
      // Predicated region
      $region9: #{tpu_custom_call.1} parent=5 // pred_check
        _
      $region10: #{tpu_custom_call.1} parent=5 // pred_check_branch
        %404 = sbr.rel (%p401) target = $region12
      $region11: #{tpu_custom_call.1} parent=5 // pred_region
        %s405 = ssub.s32 %s35, 1
        // Predicated region
        $region13: #{tpu_custom_call.1} parent=11 // pred_check
          %p406 = pneg %p82
        $region14: #{tpu_custom_call.1} parent=11 // pred_check_branch
          %408 = sbr.rel (%p406) target = $region16
        $region15: #{tpu_custom_call.1} parent=11 // pred_region
          %s410 = ssub.s32 256, 256
          %411 = vsyncadd [#allocation6], %s410
          %s412 = sshll.u32 [#allocation5], 4
          %s413 = int_to_ptr.vmem [resolvable:$true] %s412
          %418 = dma.hbm_to_vmem [thread:$0]  %s1, 256, %s413, [#allocation6], 128, 128, 8
        $region16: #{tpu_custom_call.1} parent=11 // pred_fallthru
          _
        // Predicated region
        $region17: #{tpu_custom_call.1} parent=11 // pred_check
          %p419 = pneg %p103
        $region18: #{tpu_custom_call.1} parent=11 // pred_check_branch
          %421 = sbr.rel (%p419) target = $region20
        $region19: #{tpu_custom_call.1} parent=11 // pred_region
          %s423 = ssub.s32 512, 512
          %424 = vsyncadd [#allocation6], %s423
          %s425 = sshll.u32 [#allocation7], 4
          %s426 = int_to_ptr.vmem [resolvable:$true] %s425
          %431 = dma.hbm_to_vmem [thread:$0]  %s2, 512, %s426, [#allocation6], 128, 128, 8
        $region20: #{tpu_custom_call.1} parent=11 // pred_fallthru
          _
        // Predicated region
        $region21: #{tpu_custom_call.1} parent=11 // pred_check
          %p432 = pneg %p124
        $region22: #{tpu_custom_call.1} parent=11 // pred_check_branch
          %434 = sbr.rel (%p432) target = $region24
        $region23: #{tpu_custom_call.1} parent=11 // pred_region
          _
        $region24: #{tpu_custom_call.1} parent=11 // pred_fallthru
          _
        // Predicated region
        $region25: #{tpu_custom_call.1} parent=11 // pred_check
          %p435 = pneg %p145
        $region26: #{tpu_custom_call.1} parent=11 // pred_check_branch
          %437 = sbr.rel (%p435) target = $region28
        $region27: #{tpu_custom_call.1} parent=11 // pred_region
          %s439 = ssub.s32 256, 256
          %440 = vsyncadd [#allocation9], %s439
          %s441 = sshll.u32 [#allocation8], 4
          %s442 = int_to_ptr.vmem [resolvable:$true] %s441
          %447 = dma.hbm_to_vmem [thread:$0]  %s4, 256, %s442, [#allocation9], 128, 128, 8
        $region28: #{tpu_custom_call.1} parent=11 // pred_fallthru
          _
        // Predicated region
        $region29: #{tpu_custom_call.1} parent=11 // pred_check
          %p448 = pneg %p166
        $region30: #{tpu_custom_call.1} parent=11 // pred_check_branch
          %450 = sbr.rel (%p448) target = $region32
        $region31: #{tpu_custom_call.1} parent=11 // pred_region
          %s452 = ssub.s32 512, 512
          %453 = vsyncadd [#allocation9], %s452
          %s454 = sshll.u32 [#allocation10], 4
          %s455 = int_to_ptr.vmem [resolvable:$true] %s454
          %460 = dma.hbm_to_vmem [thread:$0]  %s5, 512, %s455, [#allocation9], 128, 128, 8
        $region32: #{tpu_custom_call.1} parent=11 // pred_fallthru
          _
        // Predicated region
        $region33: #{tpu_custom_call.1} parent=11 // pred_check
          %p461 = pneg %p187
        $region34: #{tpu_custom_call.1} parent=11 // pred_check_branch
          %463 = sbr.rel (%p461) target = $region36
        $region35: #{tpu_custom_call.1} parent=11 // pred_region
          _
        $region36: #{tpu_custom_call.1} parent=11 // pred_fallthru
          _
        // Predicated region
        $region37: #{tpu_custom_call.1} parent=11 // pred_check
          %p464 = pneg %p208
        $region38: #{tpu_custom_call.1} parent=11 // pred_check_branch
          %466 = sbr.rel (%p464) target = $region40
        $region39: #{tpu_custom_call.1} parent=11 // pred_region
          %s468 = ssub.s32 512, 512
          %469 = vsyncadd [#allocation12], %s468
          %s470 = sshll.u32 [#allocation11], 4
          %s471 = int_to_ptr.vmem [resolvable:$true] %s470
          %476 = dma.hbm_to_vmem [thread:$0]  %s7, 512, %s471, [#allocation12], 128, 128, 8
        $region40: #{tpu_custom_call.1} parent=11 // pred_fallthru
          _
        // Predicated region
        $region41: #{tpu_custom_call.1} parent=11 // pred_check
          %p477 = pneg %p229
        $region42: #{tpu_custom_call.1} parent=11 // pred_check_branch
          %479 = sbr.rel (%p477) target = $region44
        $region43: #{tpu_custom_call.1} parent=11 // pred_region
          _
        $region44: #{tpu_custom_call.1} parent=11 // pred_fallthru
          _
        // Predicated region
        $region45: #{tpu_custom_call.1} parent=11 // pred_check
          %p480 = pneg %p250
        $region46: #{tpu_custom_call.1} parent=11 // pred_check_branch
          %482 = sbr.rel (%p480) target = $region48
        $region47: #{tpu_custom_call.1} parent=11 // pred_region
          %s484 = ssub.s32 512, 512
          %485 = vsyncadd [#allocation12], %s484
          %s486 = sshll.u32 [#allocation13], 4
          %s487 = int_to_ptr.vmem [resolvable:$true] %s486
          %492 = dma.hbm_to_vmem [thread:$0]  %s9, 512, %s487, [#allocation12], 128, 128, 8
        $region48: #{tpu_custom_call.1} parent=11 // pred_fallthru
          _
        // Predicated region
        $region49: #{tpu_custom_call.1} parent=11 // pred_check
          %p493 = pneg %p271
        $region50: #{tpu_custom_call.1} parent=11 // pred_check_branch
          %495 = sbr.rel (%p493) target = $region52
        $region51: #{tpu_custom_call.1} parent=11 // pred_region
          _
        $region52: #{tpu_custom_call.1} parent=11 // pred_fallthru
          _
        // Predicated region
        $region53: #{tpu_custom_call.1} parent=11 // pred_check
          %p496 = pneg %p292
        $region54: #{tpu_custom_call.1} parent=11 // pred_check_branch
          %498 = sbr.rel (%p496) target = $region56
        $region55: #{tpu_custom_call.1} parent=11 // pred_region
          %s500 = ssub.s32 512, 512
          %501 = vsyncadd [#allocation15], %s500
          %s502 = sshll.u32 [#allocation14], 4
          %s503 = int_to_ptr.vmem [resolvable:$true] %s502
          %508 = dma.hbm_to_vmem [thread:$0]  %s11, 512, %s503, [#allocation15], 128, 128, 8
        $region56: #{tpu_custom_call.1} parent=11 // pred_fallthru
          _
        // Predicated region
        $region57: #{tpu_custom_call.1} parent=11 // pred_check
          %p509 = pneg %p313
        $region58: #{tpu_custom_call.1} parent=11 // pred_check_branch
          %511 = sbr.rel (%p509) target = $region60
        $region59: #{tpu_custom_call.1} parent=11 // pred_region
          _
        $region60: #{tpu_custom_call.1} parent=11 // pred_fallthru
          _
      $region12: #{tpu_custom_call.1} parent=5 // pred_fallthru
        _
      %p512 = scmp.lt.s32.totalorder %s35, 2
      // Predicated region
      $region61: #{tpu_custom_call.1} parent=5 // pred_check
        %p513 = pneg %p512
      $region62: #{tpu_custom_call.1} parent=5 // pred_check_branch
        %515 = sbr.rel (%p513) target = $region64
      $region63: #{tpu_custom_call.1} parent=5 // pred_region
        // Predicated region
        $region65: #{tpu_custom_call.1} parent=63 // pred_check
          %p516 = pneg %p55
        $region66: #{tpu_custom_call.1} parent=63 // pred_check_branch
          %518 = sbr.rel (%p516) target = $region68
        $region67: #{tpu_custom_call.1} parent=63 // pred_region
          %s519 = sand.u32 %s45, 1
          %s520 = scalar_lea.sflag [#allocation3], %s519
          %s521 = sand.u32 %s45, 1
          %s522 = smul.addr %s521, 8
          %s523 = scalar_lea.vmem [#allocation2], %s522
          %s525 = ssub.s32 128, 128
          %526 = vsyncadd %s520, %s525
          %s527 = smul.addr %s35, 128
          %s528 = scalar_lea.hbm %s0, %s527
          %s530 = sshll.u32 %s523, 4
          %s531 = int_to_ptr.vmem [resolvable:$true] %s530
          %533 = dma.hbm_to_vmem [thread:$0]  %s528, 128, %s531, %s520
        $region68: #{tpu_custom_call.1} parent=63 // pred_fallthru
          _
      $region64: #{tpu_custom_call.1} parent=5 // pred_fallthru
        _
      %p534 = scmp.le.s32.totalorder 1, %s35
      %p535 = scmp.lt.s32.totalorder %s35, 3
      %p536 = pnand %p534, %p535
      %p537 = pneg %p536
      // Predicated region
      $region69: #{tpu_custom_call.1} parent=5 // pred_check
        _
      $region70: #{tpu_custom_call.1} parent=5 // pred_check_branch
        %539 = sbr.rel (%p536) target = $region72
      $region71: #{tpu_custom_call.1} parent=5 // pred_region
        %s540 = ssub.s32 %s35, 1
        %s541 = sand.u32 %s48, 1
        %s542 = scalar_lea.sflag [#allocation3], %s541
        %s543 = sand.u32 %s48, 1
        %s544 = smul.addr %s543, 8
        %s545 = scalar_lea.vmem [#allocation2], %s544
        // Predicated region
        $region73: #{tpu_custom_call.1} parent=71 // pred_check
          %p546 = pneg %p61
        $region74: #{tpu_custom_call.1} parent=71 // pred_check_branch
          %548 = sbr.rel (%p546) target = $region76
        $region75: #{tpu_custom_call.1} parent=71 // pred_region
          %549 = dma.done %s542, 128
        $region76: #{tpu_custom_call.1} parent=71 // pred_fallthru
          _
        // Predicated region
        $region77: #{tpu_custom_call.1} parent=71 // pred_check
          %p550 = pneg %p82
        $region78: #{tpu_custom_call.1} parent=71 // pred_check_branch
          %552 = sbr.rel (%p550) target = $region80
        $region79: #{tpu_custom_call.1} parent=71 // pred_region
          %553 = dma.done [#allocation6], 256
        $region80: #{tpu_custom_call.1} parent=71 // pred_fallthru
          _
        // Predicated region
        $region81: #{tpu_custom_call.1} parent=71 // pred_check
          %p554 = pneg %p103
        $region82: #{tpu_custom_call.1} parent=71 // pred_check_branch
          %556 = sbr.rel (%p554) target = $region84
        $region83: #{tpu_custom_call.1} parent=71 // pred_region
          %557 = dma.done [#allocation6], 512
        $region84: #{tpu_custom_call.1} parent=71 // pred_fallthru
          _
        // Predicated region
        $region85: #{tpu_custom_call.1} parent=71 // pred_check
          %p558 = pneg %p145
        $region86: #{tpu_custom_call.1} parent=71 // pred_check_branch
          %560 = sbr.rel (%p558) target = $region88
        $region87: #{tpu_custom_call.1} parent=71 // pred_region
          %561 = dma.done [#allocation9], 256
        $region88: #{tpu_custom_call.1} parent=71 // pred_fallthru
          _
        // Predicated region
        $region89: #{tpu_custom_call.1} parent=71 // pred_check
          %p562 = pneg %p166
        $region90: #{tpu_custom_call.1} parent=71 // pred_check_branch
          %564 = sbr.rel (%p562) target = $region92
        $region91: #{tpu_custom_call.1} parent=71 // pred_region
          %565 = dma.done [#allocation9], 512
        $region92: #{tpu_custom_call.1} parent=71 // pred_fallthru
          _
        // Predicated region
        $region93: #{tpu_custom_call.1} parent=71 // pred_check
          %p566 = pneg %p208
        $region94: #{tpu_custom_call.1} parent=71 // pred_check_branch
          %568 = sbr.rel (%p566) target = $region96
        $region95: #{tpu_custom_call.1} parent=71 // pred_region
          %569 = dma.done [#allocation12], 512
        $region96: #{tpu_custom_call.1} parent=71 // pred_fallthru
          _
        // Predicated region
        $region97: #{tpu_custom_call.1} parent=71 // pred_check
          %p570 = pneg %p250
        $region98: #{tpu_custom_call.1} parent=71 // pred_check_branch
          %572 = sbr.rel (%p570) target = $region100
        $region99: #{tpu_custom_call.1} parent=71 // pred_region
          %573 = dma.done [#allocation12], 512
        $region100: #{tpu_custom_call.1} parent=71 // pred_fallthru
          _
        // Predicated region
        $region101: #{tpu_custom_call.1} parent=71 // pred_check
          %p574 = pneg %p292
        $region102: #{tpu_custom_call.1} parent=71 // pred_check_branch
          %576 = sbr.rel (%p574) target = $region104
        $region103: #{tpu_custom_call.1} parent=71 // pred_region
          %577 = dma.done [#allocation15], 512
        $region104: #{tpu_custom_call.1} parent=71 // pred_fallthru
          _
        %s578 = sand.u32 %s48, 1
        %s579 = scalar_lea.sflag [#allocation3], %s578
        %s580 = sand.u32 %s48, 1
        %s581 = smul.addr %s580, 8
        %s582 = scalar_lea.vmem [#allocation2], %s581
        %p583 = pneg %p61
        %p584 = pneg %p58
        %p585 = pneg %p82
        %p586 = pneg %p79
        %p587 = pneg %p103
        %p588 = pneg %p100
        %p589 = pneg %p124
        %p590 = pneg %p121
        %p591 = pneg %p145
        %p592 = pneg %p142
        %p593 = pneg %p166
        %p594 = pneg %p163
        %p595 = pneg %p187
        %p596 = pneg %p184
        %p597 = pneg %p208
        %p598 = pneg %p205
        %p599 = pneg %p229
        %p600 = pneg %p226
        %p601 = pneg %p250
        %p602 = pneg %p247
        %p603 = pneg %p271
        %p604 = pneg %p268
        %p605 = pneg %p292
        %p606 = pneg %p289
        %p607 = pneg %p313
        %p608 = pneg %p310
        %p609 = pneg %p339
        %p610 = pneg %p336
        %s611 = sand.u32 %s326, 1
        %s612 = scalar_lea.sflag [#allocation4], %s611
        %s613 = sand.u32 %s326, 1
        %s614 = smul.addr %s613, 8
        %s615 = scalar_lea.vmem [#allocation16], %s614
        %p616 = pneg %p365
        %p617 = pneg %p362
        %s618 = sand.u32 %s40, 1
        %s619 = scalar_lea.sflag [#allocation18], %s618
        %s620 = sand.u32 %s352, 1
        %s621 = scalar_lea.vmem [#allocation17], %s620
        %p622 = pneg %p391
        %p623 = pneg %p388
        %s624 = sand.u32 %s40, 1
        %s625 = scalar_lea.sflag [#allocation18], %s624
        %s626 = sand.u32 %s378, 1
        %s627 = smul.addr %s626, 8
        %s628 = scalar_lea.vmem [#allocation19], %s627
        %v629 = vld [vmem:[%s545] sm:$0xff]
        %v630 = vld [vmem:[#allocation7] sm:$0xff]
        %v631 = vld [vmem:[#allocation7 + $0x8] sm:$0xff]
        %v632 = vld [vmem:[#allocation7 + $0x10] sm:$0xff]
        %v633 = vld [vmem:[#allocation7 + $0x18] sm:$0xff]
        %v634 = vld [vmem:[%s3] sm:$0x1]
        %v636 = vlaneseq
        %v637 = vshrl.u32 %v636, 7
        %v638 = vsub.s32 0, %v637
        %v639 = vrot.slane %v634, %v638
        %vm641 = vcmask 261120
        %v643 = vsel %vm641, %v629, 0
        %645 = vmatprep.subr.mxu0 0.0
        %646 = vmatpush1.msra.mxu0 0.0
        %647 = vmatprep.subr.mxu0 0.0
        %648 = vmatpush1.msra.mxu0 0.0
        %649 = vmatprep.subr.mxu0 0.0
        %650 = vmatpush1.msra.mxu0 0.0
        %651 = vmatprep.subr.mxu0 0.0
        %652 = vmatpush1.msra.mxu0 0.0
        %653 = vmatprep.subr.mxu0 0.0
        %654 = vmatpush1.msra.mxu0 0.0
        %655 = vmatprep.subr.mxu0 0.0
        %656 = vmatpush1.msra.mxu0 0.0
        %657 = vmatprep.subr.mxu0 0.0
        %658 = vmatpush1.msra.mxu0 0.0
        %659 = vmatprep.subr.mxu0 0.0
        %660 = vmatpush1.msra.mxu0 0.0
        %661 = vmatprep.subr.mxu0 0.0
        %662 = vmatpush1.msra.mxu0 0.0
        %663 = vmatprep.subr.mxu0 0.0
        %664 = vmatpush1.msra.mxu0 0.0
        %665 = vmatprep.subr.mxu0 0.0
        %666 = vmatpush1.msra.mxu0 0.0
        %667 = vmatprep.subr.mxu0 0.0
        %668 = vmatpush1.msra.mxu0 0.0
        %669 = vmatprep.subr.mxu0 0.0
        %670 = vmatpush1.msra.mxu0 %v633
        %671 = vmatprep.subr.mxu0 0.0
        %672 = vmatpush1.msra.mxu0 %v632
        %673 = vmatprep.subr.mxu0 0.0
        %674 = vmatpush1.msra.mxu0 %v631
        %675 = vmatprep.subr.mxu0 0.0
        %676 = vmatpush1.msra.mxu0 %v630
        %677 = vmatprep.subr.mxu0 0.0
        %678 = vmatpush2.msra.mxu0 0.0
        %679 = vmatprep.subr.mxu0 0.0
        %680 = vmatpush2.msra.mxu0 0.0
        %681 = vmatprep.subr.mxu0 0.0
        %682 = vmatpush2.msra.mxu0 0.0
        %683 = vmatprep.subr.mxu0 0.0
        %684 = vmatpush2.msra.mxu0 0.0
        %685 = vmatprep.subr.mxu0 0.0
        %686 = vmatpush2.msra.mxu0 0.0
        %687 = vmatprep.subr.mxu0 0.0
        %688 = vmatpush2.msra.mxu0 0.0
        %689 = vmatprep.subr.mxu0 0.0
        %690 = vmatpush2.msra.mxu0 0.0
        %691 = vmatprep.subr.mxu0 0.0
        %692 = vmatpush2.msra.mxu0 0.0
        %693 = vmatprep.subr.mxu0 0.0
        %694 = vmatpush2.msra.mxu0 0.0
        %695 = vmatprep.subr.mxu0 0.0
        %696 = vmatpush2.msra.mxu0 0.0
        %697 = vmatprep.subr.mxu0 0.0
        %698 = vmatpush2.msra.mxu0 0.0
        %699 = vmatprep.subr.mxu0 0.0
        %700 = vmatpush2.msra.mxu0 0.0
        %701 = vmatprep.subr.mxu0 0.0
        %702 = vmatpush2.msra.mxu0 0.0
        %703 = vmatprep.subr.mxu0 0.0
        %704 = vmatpush2.msra.mxu0 0.0
        %705 = vmatprep.subr.mxu0 0.0
        %706 = vmatpush2.msra.mxu0 0.0
        %707 = vmatprep.subr.mxu0 0.0
        %708 = vmatpush2.msra.mxu0 0.0
        %709 = vmatprep.mubr.f32.mxu0 0.0
        %710 = vmatmul.mubr.f32.gmra.mxu0 %v643
        %v711 = vpop.f32.mrf.mxu0
        %v712 = vadd.f32 %v639, %v711
        %v713 = vpop.f32.mrf.mxu0
        %714 = vdwg.mxu0
        %v715 = vld [vmem:[#allocation8] sm:$0xff]
        %v716 = vld [vmem:[#allocation8 + $0x8] sm:$0x1]
        %v718 = vsel %vm641, %v715, 0
        %v721 = vsel %vm641, %v716, 0
        %v724 = vsel %vm641, %v712, 0
        %726 = vmatprep.subr.mxu0 0.0
        %727 = vmatpush1.xpose.msra.mxu0 0.0
        %728 = vmatprep.subr.mxu0 0.0
        %729 = vmatpush1.xpose.msra.mxu0 0.0
        %730 = vmatprep.subr.mxu0 0.0
        %731 = vmatpush1.xpose.msra.mxu0 0.0
        %732 = vmatprep.subr.mxu0 0.0
        %733 = vmatpush1.xpose.msra.mxu0 0.0
        %734 = vmatprep.subr.mxu0 0.0
        %735 = vmatpush1.xpose.msra.mxu0 0.0
        %736 = vmatprep.subr.mxu0 0.0
        %737 = vmatpush1.xpose.msra.mxu0 0.0
        %738 = vmatprep.subr.mxu0 0.0
        %739 = vmatpush1.xpose.msra.mxu0 0.0
        %740 = vmatprep.subr.mxu0 0.0
        %741 = vmatpush1.xpose.msra.mxu0 0.0
        %742 = vmatprep.subr.mxu0 0.0
        %743 = vmatpush1.xpose.msra.mxu0 0.0
        %744 = vmatprep.subr.mxu0 0.0
        %745 = vmatpush1.xpose.msra.mxu0 0.0
        %746 = vmatprep.subr.mxu0 0.0
        %747 = vmatpush1.xpose.msra.mxu0 0.0
        %748 = vmatprep.subr.mxu0 0.0
        %749 = vmatpush1.xpose.msra.mxu0 0.0
        %750 = vmatprep.subr.mxu0 0.0
        %751 = vmatpush1.xpose.msra.mxu0 0.0
        %752 = vmatprep.subr.mxu0 0.0
        %753 = vmatpush1.xpose.msra.mxu0 0.0
        %754 = vmatprep.subr.mxu0 0.0
        %755 = vmatpush1.xpose.msra.mxu0 0.0
        %756 = vmatprep.subr.mxu0 0.0
        %757 = vmatpush1.xpose.msra.mxu0 %v724
        %758 = vmatprep.subr.mxu0 0.0
        %759 = vmatpush2.xpose.msra.mxu0 0.0
        %760 = vmatprep.subr.mxu0 0.0
        %761 = vmatpush2.xpose.msra.mxu0 0.0
        %762 = vmatprep.subr.mxu0 0.0
        %763 = vmatpush2.xpose.msra.mxu0 0.0
        %764 = vmatprep.subr.mxu0 0.0
        %765 = vmatpush2.xpose.msra.mxu0 0.0
        %766 = vmatprep.subr.mxu0 0.0
        %767 = vmatpush2.xpose.msra.mxu0 0.0
        %768 = vmatprep.subr.mxu0 0.0
        %769 = vmatpush2.xpose.msra.mxu0 0.0
        %770 = vmatprep.subr.mxu0 0.0
        %771 = vmatpush2.xpose.msra.mxu0 0.0
        %772 = vmatprep.subr.mxu0 0.0
        %773 = vmatpush2.xpose.msra.mxu0 0.0
        %774 = vmatprep.subr.mxu0 0.0
        %775 = vmatpush2.xpose.msra.mxu0 0.0
        %776 = vmatprep.subr.mxu0 0.0
        %777 = vmatpush2.xpose.msra.mxu0 0.0
        %778 = vmatprep.subr.mxu0 0.0
        %779 = vmatpush2.xpose.msra.mxu0 0.0
        %780 = vmatprep.subr.mxu0 0.0
        %781 = vmatpush2.xpose.msra.mxu0 0.0
        %782 = vmatprep.subr.mxu0 0.0
        %783 = vmatpush2.xpose.msra.mxu0 0.0
        %784 = vmatprep.subr.mxu0 0.0
        %785 = vmatpush2.xpose.msra.mxu0 0.0
        %786 = vmatprep.subr.mxu0 0.0
        %787 = vmatpush2.xpose.msra.mxu0 0.0
        %788 = vmatprep.subr.mxu0 0.0
        %789 = vmatpush2.xpose.msra.mxu0 0.0
        %790 = vmatprep.mubr.f32.mxu0 0.0
        %791 = vmatmul.mubr.f32.gmra.mxu0 %v718
        %v792 = vpop.f32.mrf.mxu0
        %v793 = vadd.f32 0.0, %v792
        %v794 = vpop.f32.mrf.mxu0
        %795 = vmatprep.mubr.f32.mxu0 0.0
        %796 = vmatmul.mubr.f32.gmra.mxu0 %v721
        %v797 = vpop.f32.mrf.mxu0
        %v798 = vadd.f32 0.0, %v797
        %v799 = vpop.f32.mrf.mxu0
        %800 = vdwg.mxu0
        %vm801 = vcmask 64512
        %v802 = vsel %vm801, %v793, -inf
        %803 = vmax.xlane.f32.xlu0 %v802
        %v804 = vpop.xlane.xlu0 %803
        %vm805 = vcmask 57344
        %v806 = vsel %vm805, %v798, -inf
        %807 = vmax.xlane.f32.xlu0 %v806
        %v808 = vpop.xlane.xlu0 %807
        %v809 = vsub.f32 %v793, %v804
        %v810 = vsub.f32 %v798, %v808
        %v811 = vmul.f32 %v809, 1.442695
        %v812 = vpow.pop %v811
        %v813 = vmul.f32 %v810, 1.442695
        %v814 = vpow.pop %v813
        %v815 = vsel %vm801, %v812, 0.0
        %816 = vadd.xlane.f32.xlu0 %v815
        %v817 = vpop.xlane.xlu0 %816
        %v818 = vsel %vm805, %v814, 0.0
        %819 = vadd.xlane.f32.xlu0 %v818
        %v820 = vpop.xlane.xlu0 %819
        %v821 = vrcp.pop %v817
        %v822 = vmul.f32 %v812, %v821
        %v823 = vrcp.pop %v820
        %v824 = vmul.f32 %v814, %v823
        %v826 = vsel %vm801, %v822, 0
        %v829 = vsel %vm801, %v824, 0
        %831 = vmatprep.subr.mxu0 0.0
        %832 = vmatpush1.msra.mxu0 0.0
        %833 = vmatprep.subr.mxu0 0.0
        %834 = vmatpush1.msra.mxu0 0.0
        %835 = vmatprep.subr.mxu0 0.0
        %836 = vmatpush1.msra.mxu0 0.0
        %837 = vmatprep.subr.mxu0 0.0
        %838 = vmatpush1.msra.mxu0 0.0
        %839 = vmatprep.subr.mxu0 0.0
        %840 = vmatpush1.msra.mxu0 0.0
        %841 = vmatprep.subr.mxu0 0.0
        %842 = vmatpush1.msra.mxu0 0.0
        %843 = vmatprep.subr.mxu0 0.0
        %844 = vmatpush1.msra.mxu0 0.0
        %845 = vmatprep.subr.mxu0 0.0
        %846 = vmatpush1.msra.mxu0 0.0
        %847 = vmatprep.subr.mxu0 0.0
        %848 = vmatpush1.msra.mxu0 0.0
        %849 = vmatprep.subr.mxu0 0.0
        %850 = vmatpush1.msra.mxu0 0.0
        %851 = vmatprep.subr.mxu0 0.0
        %852 = vmatpush1.msra.mxu0 0.0
        %853 = vmatprep.subr.mxu0 0.0
        %854 = vmatpush1.msra.mxu0 0.0
        %855 = vmatprep.subr.mxu0 0.0
        %856 = vmatpush1.msra.mxu0 0.0
        %857 = vmatprep.subr.mxu0 0.0
        %858 = vmatpush1.msra.mxu0 0.0
        %859 = vmatprep.subr.mxu0 0.0
        %860 = vmatpush1.msra.mxu0 0.0
        %861 = vmatprep.subr.mxu0 0.0
        %862 = vmatpush1.msra.mxu0 %v712
        %863 = vmatprep.subr.mxu0 0.0
        %864 = vmatpush2.msra.mxu0 0.0
        %865 = vmatprep.subr.mxu0 0.0
        %866 = vmatpush2.msra.mxu0 0.0
        %867 = vmatprep.subr.mxu0 0.0
        %868 = vmatpush2.msra.mxu0 0.0
        %869 = vmatprep.subr.mxu0 0.0
        %870 = vmatpush2.msra.mxu0 0.0
        %871 = vmatprep.subr.mxu0 0.0
        %872 = vmatpush2.msra.mxu0 0.0
        %873 = vmatprep.subr.mxu0 0.0
        %874 = vmatpush2.msra.mxu0 0.0
        %875 = vmatprep.subr.mxu0 0.0
        %876 = vmatpush2.msra.mxu0 0.0
        %877 = vmatprep.subr.mxu0 0.0
        %878 = vmatpush2.msra.mxu0 0.0
        %879 = vmatprep.subr.mxu0 0.0
        %880 = vmatpush2.msra.mxu0 0.0
        %881 = vmatprep.subr.mxu0 0.0
        %882 = vmatpush2.msra.mxu0 0.0
        %883 = vmatprep.subr.mxu0 0.0
        %884 = vmatpush2.msra.mxu0 0.0
        %885 = vmatprep.subr.mxu0 0.0
        %886 = vmatpush2.msra.mxu0 0.0
        %887 = vmatprep.subr.mxu0 0.0
        %888 = vmatpush2.msra.mxu0 0.0
        %889 = vmatprep.subr.mxu0 0.0
        %890 = vmatpush2.msra.mxu0 0.0
        %891 = vmatprep.subr.mxu0 0.0
        %892 = vmatpush2.msra.mxu0 0.0
        %893 = vmatprep.subr.mxu0 0.0
        %894 = vmatpush2.msra.mxu0 0.0
        %895 = vmatprep.mubr.f32.mxu0 0.0
        %896 = vmatmul.mubr.f32.gmra.mxu0 %v826
        %v897 = vpop.f32.mrf.mxu0
        %v898 = vadd.f32 0.0, %v897
        %v899 = vpop.f32.mrf.mxu0
        %900 = vmatprep.mubr.f32.mxu0 0.0
        %901 = vmatmul.mubr.f32.gmra.mxu0 %v829
        %v902 = vpop.f32.mrf.mxu0
        %v903 = vadd.f32 0.0, %v902
        %v904 = vpop.f32.mrf.mxu0
        %905 = vdwg.mxu0
        %v906 = vld [vmem:[#allocation10] sm:$0xff]
        %v907 = vld [vmem:[#allocation10 + $0x8] sm:$0xff]
        %v908 = vld [vmem:[#allocation10 + $0x10] sm:$0xff]
        %v909 = vld [vmem:[#allocation10 + $0x18] sm:$0xff]
        %v911 = vsel %vm641, %v898, 0
        %v914 = vsel %vm641, %v903, 0
        %916 = vmatprep.subr.mxu0 0.0
        %917 = vmatpush1.msra.mxu0 0.0
        %918 = vmatprep.subr.mxu0 0.0
        %919 = vmatpush1.msra.mxu0 0.0
        %920 = vmatprep.subr.mxu0 0.0
        %921 = vmatpush1.msra.mxu0 0.0
        %922 = vmatprep.subr.mxu0 0.0
        %923 = vmatpush1.msra.mxu0 0.0
        %924 = vmatprep.subr.mxu0 0.0
        %925 = vmatpush1.msra.mxu0 0.0
        %926 = vmatprep.subr.mxu0 0.0
        %927 = vmatpush1.msra.mxu0 0.0
        %928 = vmatprep.subr.mxu0 0.0
        %929 = vmatpush1.msra.mxu0 0.0
        %930 = vmatprep.subr.mxu0 0.0
        %931 = vmatpush1.msra.mxu0 0.0
        %932 = vmatprep.subr.mxu0 0.0
        %933 = vmatpush1.msra.mxu0 0.0
        %934 = vmatprep.subr.mxu0 0.0
        %935 = vmatpush1.msra.mxu0 0.0
        %936 = vmatprep.subr.mxu0 0.0
        %937 = vmatpush1.msra.mxu0 0.0
        %938 = vmatprep.subr.mxu0 0.0
        %939 = vmatpush1.msra.mxu0 0.0
        %940 = vmatprep.subr.mxu0 0.0
        %941 = vmatpush1.msra.mxu0 %v909
        %942 = vmatprep.subr.mxu0 0.0
        %943 = vmatpush1.msra.mxu0 %v908
        %944 = vmatprep.subr.mxu0 0.0
        %945 = vmatpush1.msra.mxu0 %v907
        %946 = vmatprep.subr.mxu0 0.0
        %947 = vmatpush1.msra.mxu0 %v906
        %948 = vmatprep.subr.mxu0 0.0
        %949 = vmatpush2.msra.mxu0 0.0
        %950 = vmatprep.subr.mxu0 0.0
        %951 = vmatpush2.msra.mxu0 0.0
        %952 = vmatprep.subr.mxu0 0.0
        %953 = vmatpush2.msra.mxu0 0.0
        %954 = vmatprep.subr.mxu0 0.0
        %955 = vmatpush2.msra.mxu0 0.0
        %956 = vmatprep.subr.mxu0 0.0
        %957 = vmatpush2.msra.mxu0 0.0
        %958 = vmatprep.subr.mxu0 0.0
        %959 = vmatpush2.msra.mxu0 0.0
        %960 = vmatprep.subr.mxu0 0.0
        %961 = vmatpush2.msra.mxu0 0.0
        %962 = vmatprep.subr.mxu0 0.0
        %963 = vmatpush2.msra.mxu0 0.0
        %964 = vmatprep.subr.mxu0 0.0
        %965 = vmatpush2.msra.mxu0 0.0
        %966 = vmatprep.subr.mxu0 0.0
        %967 = vmatpush2.msra.mxu0 0.0
        %968 = vmatprep.subr.mxu0 0.0
        %969 = vmatpush2.msra.mxu0 0.0
        %970 = vmatprep.subr.mxu0 0.0
        %971 = vmatpush2.msra.mxu0 0.0
        %972 = vmatprep.subr.mxu0 0.0
        %973 = vmatpush2.msra.mxu0 0.0
        %974 = vmatprep.subr.mxu0 0.0
        %975 = vmatpush2.msra.mxu0 0.0
        %976 = vmatprep.subr.mxu0 0.0
        %977 = vmatpush2.msra.mxu0 0.0
        %978 = vmatprep.subr.mxu0 0.0
        %979 = vmatpush2.msra.mxu0 0.0
        %980 = vmatprep.mubr.f32.mxu0 0.0
        %981 = vmatmul.mubr.f32.gmra.mxu0 %v911
        %v982 = vpop.f32.mrf.mxu0
        %v983 = vadd.f32 0.0, %v982
        %v984 = vpop.f32.mrf.mxu0
        %985 = vmatprep.mubr.f32.mxu0 0.0
        %986 = vmatmul.mubr.f32.gmra.mxu0 %v914
        %v987 = vpop.f32.mrf.mxu0
        %v988 = vadd.f32 0.0, %v987
        %v989 = vpop.f32.mrf.mxu0
        %990 = vdwg.mxu0
        %v991 = vld [vmem:[#allocation5] sm:$0xff]
        %v992 = vld [vmem:[#allocation5 + $0x8] sm:$0x1]
        %v993 = vld [vmem:[%s6] sm:$0x1]
        %v995 = vlaneseq
        %v996 = vshrl.u32 %v995, 7
        %v997 = vsub.s32 0, %v996
        %v998 = vrot.slane %v993, %v997
        %vm1000 = vcmask 72704
        %v1002 = vsel %vm1000, %v991, 0
        %v1005 = vsel %vm1000, %v992, 0
        %vm1007 = vcmask 1040384
        %v1009 = vsel %vm1007, %v988, 0
        %1011 = vmatprep.subr.mxu0 0.0
        %1012 = vmatpush1.msra.mxu0 0.0
        %1013 = vmatprep.subr.mxu0 0.0
        %1014 = vmatpush1.msra.mxu0 0.0
        %1015 = vmatprep.subr.mxu0 0.0
        %1016 = vmatpush1.msra.mxu0 0.0
        %1017 = vmatprep.subr.mxu0 0.0
        %1018 = vmatpush1.msra.mxu0 0.0
        %1019 = vmatprep.subr.mxu0 0.0
        %1020 = vmatpush1.msra.mxu0 0.0
        %1021 = vmatprep.subr.mxu0 0.0
        %1022 = vmatpush1.msra.mxu0 0.0
        %1023 = vmatprep.subr.mxu0 0.0
        %1024 = vmatpush1.msra.mxu0 0.0
        %1025 = vmatprep.subr.mxu0 0.0
        %1026 = vmatpush1.msra.mxu0 0.0
        %1027 = vmatprep.subr.mxu0 0.0
        %1028 = vmatpush1.msra.mxu0 0.0
        %1029 = vmatprep.subr.mxu0 0.0
        %1030 = vmatpush1.msra.mxu0 0.0
        %1031 = vmatprep.subr.mxu0 0.0
        %1032 = vmatpush1.msra.mxu0 0.0
        %1033 = vmatprep.subr.mxu0 0.0
        %1034 = vmatpush1.msra.mxu0 0.0
        %1035 = vmatprep.subr.mxu0 0.0
        %1036 = vmatpush1.msra.mxu0 0.0
        %1037 = vmatprep.subr.mxu0 0.0
        %1038 = vmatpush1.msra.mxu0 0.0
        %1039 = vmatprep.subr.mxu0 0.0
        %1040 = vmatpush1.msra.mxu0 %v1009
        %1041 = vmatprep.subr.mxu0 0.0
        %1042 = vmatpush1.msra.mxu0 %v983
        %1043 = vmatprep.subr.mxu0 0.0
        %1044 = vmatpush2.msra.mxu0 0.0
        %1045 = vmatprep.subr.mxu0 0.0
        %1046 = vmatpush2.msra.mxu0 0.0
        %1047 = vmatprep.subr.mxu0 0.0
        %1048 = vmatpush2.msra.mxu0 0.0
        %1049 = vmatprep.subr.mxu0 0.0
        %1050 = vmatpush2.msra.mxu0 0.0
        %1051 = vmatprep.subr.mxu0 0.0
        %1052 = vmatpush2.msra.mxu0 0.0
        %1053 = vmatprep.subr.mxu0 0.0
        %1054 = vmatpush2.msra.mxu0 0.0
        %1055 = vmatprep.subr.mxu0 0.0
        %1056 = vmatpush2.msra.mxu0 0.0
        %1057 = vmatprep.subr.mxu0 0.0
        %1058 = vmatpush2.msra.mxu0 0.0
        %1059 = vmatprep.subr.mxu0 0.0
        %1060 = vmatpush2.msra.mxu0 0.0
        %1061 = vmatprep.subr.mxu0 0.0
        %1062 = vmatpush2.msra.mxu0 0.0
        %1063 = vmatprep.subr.mxu0 0.0
        %1064 = vmatpush2.msra.mxu0 0.0
        %1065 = vmatprep.subr.mxu0 0.0
        %1066 = vmatpush2.msra.mxu0 0.0
        %1067 = vmatprep.subr.mxu0 0.0
        %1068 = vmatpush2.msra.mxu0 0.0
        %1069 = vmatprep.subr.mxu0 0.0
        %1070 = vmatpush2.msra.mxu0 0.0
        %1071 = vmatprep.subr.mxu0 0.0
        %1072 = vmatpush2.msra.mxu0 0.0
        %1073 = vmatprep.subr.mxu0 0.0
        %1074 = vmatpush2.msra.mxu0 0.0
        %1075 = vmatprep.mubr.f32.mxu0 0.0
        %1076 = vmatmul.mubr.f32.gmra.mxu0 %v1002
        %v1077 = vpop.f32.mrf.mxu0
        %v1078 = vadd.f32 %v998, %v1077
        %v1079 = vpop.f32.mrf.mxu0
        %1080 = vmatprep.mubr.f32.mxu0 0.0
        %1081 = vmatmul.mubr.f32.gmra.mxu0 %v1005
        %v1082 = vpop.f32.mrf.mxu0
        %v1083 = vadd.f32 %v998, %v1082
        %v1084 = vpop.f32.mrf.mxu0
        %1085 = vdwg.mxu0
        %v1087 = vsel %vm641, %v1078, 0
        %v1090 = vsel %vm641, %v1083, 0
        %1092 = vmatprep.subr.mxu0 0.0
        %1093 = vmatpush1.xpose.msra.mxu0 0.0
        %1094 = vmatprep.subr.mxu0 0.0
        %1095 = vmatpush1.xpose.msra.mxu0 0.0
        %1096 = vmatprep.subr.mxu0 0.0
        %1097 = vmatpush1.xpose.msra.mxu0 0.0
        %1098 = vmatprep.subr.mxu0 0.0
        %1099 = vmatpush1.xpose.msra.mxu0 0.0
        %1100 = vmatprep.subr.mxu0 0.0
        %1101 = vmatpush1.xpose.msra.mxu0 0.0
        %1102 = vmatprep.subr.mxu0 0.0
        %1103 = vmatpush1.xpose.msra.mxu0 0.0
        %1104 = vmatprep.subr.mxu0 0.0
        %1105 = vmatpush1.xpose.msra.mxu0 0.0
        %1106 = vmatprep.subr.mxu0 0.0
        %1107 = vmatpush1.xpose.msra.mxu0 0.0
        %1108 = vmatprep.subr.mxu0 0.0
        %1109 = vmatpush1.xpose.msra.mxu0 0.0
        %1110 = vmatprep.subr.mxu0 0.0
        %1111 = vmatpush1.xpose.msra.mxu0 0.0
        %1112 = vmatprep.subr.mxu0 0.0
        %1113 = vmatpush1.xpose.msra.mxu0 0.0
        %1114 = vmatprep.subr.mxu0 0.0
        %1115 = vmatpush1.xpose.msra.mxu0 0.0
        %1116 = vmatprep.subr.mxu0 0.0
        %1117 = vmatpush1.xpose.msra.mxu0 0.0
        %1118 = vmatprep.subr.mxu0 0.0
        %1119 = vmatpush1.xpose.msra.mxu0 0.0
        %1120 = vmatprep.subr.mxu0 0.0
        %1121 = vmatpush1.xpose.msra.mxu0 %v1090
        %1122 = vmatprep.subr.mxu0 0.0
        %1123 = vmatpush1.xpose.msra.mxu0 %v1087
        %1124 = vmatprep.subr.mxu0 0.0
        %1125 = vmatpush2.xpose.msra.mxu0 0.0
        %1126 = vmatprep.subr.mxu0 0.0
        %1127 = vmatpush2.xpose.msra.mxu0 0.0
        %1128 = vmatprep.subr.mxu0 0.0
        %1129 = vmatpush2.xpose.msra.mxu0 0.0
        %1130 = vmatprep.subr.mxu0 0.0
        %1131 = vmatpush2.xpose.msra.mxu0 0.0
        %1132 = vmatprep.subr.mxu0 0.0
        %1133 = vmatpush2.xpose.msra.mxu0 0.0
        %1134 = vmatprep.subr.mxu0 0.0
        %1135 = vmatpush2.xpose.msra.mxu0 0.0
        %1136 = vmatprep.subr.mxu0 0.0
        %1137 = vmatpush2.xpose.msra.mxu0 0.0
        %1138 = vmatprep.subr.mxu0 0.0
        %1139 = vmatpush2.xpose.msra.mxu0 0.0
        %1140 = vmatprep.subr.mxu0 0.0
        %1141 = vmatpush2.xpose.msra.mxu0 0.0
        %1142 = vmatprep.subr.mxu0 0.0
        %1143 = vmatpush2.xpose.msra.mxu0 0.0
        %1144 = vmatprep.subr.mxu0 0.0
        %1145 = vmatpush2.xpose.msra.mxu0 0.0
        %1146 = vmatprep.subr.mxu0 0.0
        %1147 = vmatpush2.xpose.msra.mxu0 0.0
        %1148 = vmatprep.subr.mxu0 0.0
        %1149 = vmatpush2.xpose.msra.mxu0 0.0
        %1150 = vmatprep.subr.mxu0 0.0
        %1151 = vmatpush2.xpose.msra.mxu0 0.0
        %1152 = vmatprep.subr.mxu0 0.0
        %1153 = vmatpush2.xpose.msra.mxu0 0.0
        %1154 = vmatprep.subr.mxu0 0.0
        %1155 = vmatpush2.xpose.msra.mxu0 0.0
        %1156 = vmatprep.mubr.f32.mxu0 0.0
        %1157 = vmatmul.mubr.f32.gmra.mxu0 %v724
        %v1158 = vpop.f32.mrf.mxu0
        %v1159 = vadd.f32 0.0, %v1158
        %v1160 = vpop.f32.mrf.mxu0
        %1161 = vdwg.mxu0
        %v1162 = vsel %vm1000, %v1159, -inf
        %1163 = vmax.xlane.f32.xlu0 %v1162
        %v1164 = vpop.xlane.xlu0 %1163
        %v1165 = vsub.f32 %v1159, %v1164
        %v1166 = vmul.f32 %v1165, 1.442695
        %v1167 = vpow.pop %v1166
        %v1168 = vsel %vm1000, %v1167, 0.0
        %1169 = vadd.xlane.f32.xlu0 %v1168
        %v1170 = vpop.xlane.xlu0 %1169
        %v1171 = vrcp.pop %v1170
        %v1172 = vmul.f32 %v1167, %v1171
        %v1174 = vsel %vm1000, %v1172, 0
        %v1176 = vsel %vm1007, %v1083, 0
        %1178 = vmatprep.subr.mxu0 0.0
        %1179 = vmatpush1.msra.mxu0 0.0
        %1180 = vmatprep.subr.mxu0 0.0
        %1181 = vmatpush1.msra.mxu0 0.0
        %1182 = vmatprep.subr.mxu0 0.0
        %1183 = vmatpush1.msra.mxu0 0.0
        %1184 = vmatprep.subr.mxu0 0.0
        %1185 = vmatpush1.msra.mxu0 0.0
        %1186 = vmatprep.subr.mxu0 0.0
        %1187 = vmatpush1.msra.mxu0 0.0
        %1188 = vmatprep.subr.mxu0 0.0
        %1189 = vmatpush1.msra.mxu0 0.0
        %1190 = vmatprep.subr.mxu0 0.0
        %1191 = vmatpush1.msra.mxu0 0.0
        %1192 = vmatprep.subr.mxu0 0.0
        %1193 = vmatpush1.msra.mxu0 0.0
        %1194 = vmatprep.subr.mxu0 0.0
        %1195 = vmatpush1.msra.mxu0 0.0
        %1196 = vmatprep.subr.mxu0 0.0
        %1197 = vmatpush1.msra.mxu0 0.0
        %1198 = vmatprep.subr.mxu0 0.0
        %1199 = vmatpush1.msra.mxu0 0.0
        %1200 = vmatprep.subr.mxu0 0.0
        %1201 = vmatpush1.msra.mxu0 0.0
        %1202 = vmatprep.subr.mxu0 0.0
        %1203 = vmatpush1.msra.mxu0 0.0
        %1204 = vmatprep.subr.mxu0 0.0
        %1205 = vmatpush1.msra.mxu0 0.0
        %1206 = vmatprep.subr.mxu0 0.0
        %1207 = vmatpush1.msra.mxu0 %v1176
        %1208 = vmatprep.subr.mxu0 0.0
        %1209 = vmatpush1.msra.mxu0 %v1078
        %1210 = vmatprep.subr.mxu0 0.0
        %1211 = vmatpush2.msra.mxu0 0.0
        %1212 = vmatprep.subr.mxu0 0.0
        %1213 = vmatpush2.msra.mxu0 0.0
        %1214 = vmatprep.subr.mxu0 0.0
        %1215 = vmatpush2.msra.mxu0 0.0
        %1216 = vmatprep.subr.mxu0 0.0
        %1217 = vmatpush2.msra.mxu0 0.0
        %1218 = vmatprep.subr.mxu0 0.0
        %1219 = vmatpush2.msra.mxu0 0.0
        %1220 = vmatprep.subr.mxu0 0.0
        %1221 = vmatpush2.msra.mxu0 0.0
        %1222 = vmatprep.subr.mxu0 0.0
        %1223 = vmatpush2.msra.mxu0 0.0
        %1224 = vmatprep.subr.mxu0 0.0
        %1225 = vmatpush2.msra.mxu0 0.0
        %1226 = vmatprep.subr.mxu0 0.0
        %1227 = vmatpush2.msra.mxu0 0.0
        %1228 = vmatprep.subr.mxu0 0.0
        %1229 = vmatpush2.msra.mxu0 0.0
        %1230 = vmatprep.subr.mxu0 0.0
        %1231 = vmatpush2.msra.mxu0 0.0
        %1232 = vmatprep.subr.mxu0 0.0
        %1233 = vmatpush2.msra.mxu0 0.0
        %1234 = vmatprep.subr.mxu0 0.0
        %1235 = vmatpush2.msra.mxu0 0.0
        %1236 = vmatprep.subr.mxu0 0.0
        %1237 = vmatpush2.msra.mxu0 0.0
        %1238 = vmatprep.subr.mxu0 0.0
        %1239 = vmatpush2.msra.mxu0 0.0
        %1240 = vmatprep.subr.mxu0 0.0
        %1241 = vmatpush2.msra.mxu0 0.0
        %1242 = vmatprep.mubr.f32.mxu0 0.0
        %1243 = vmatmul.mubr.f32.gmra.mxu0 %v1174
        %v1244 = vpop.f32.mrf.mxu0
        %v1245 = vadd.f32 0.0, %v1244
        %v1246 = vpop.f32.mrf.mxu0
        %1247 = vdwg.mxu0
        %v1248 = vld [vmem:[#allocation11] sm:$0xff]
        %v1249 = vld [vmem:[#allocation11 + $0x8] sm:$0xff]
        %v1250 = vld [vmem:[#allocation11 + $0x10] sm:$0xff]
        %v1251 = vld [vmem:[#allocation11 + $0x18] sm:$0xff]
        %v1253 = vsel %vm641, %v1245, 0
        %1255 = vmatprep.subr.mxu0 0.0
        %1256 = vmatpush1.msra.mxu0 0.0
        %1257 = vmatprep.subr.mxu0 0.0
        %1258 = vmatpush1.msra.mxu0 0.0
        %1259 = vmatprep.subr.mxu0 0.0
        %1260 = vmatpush1.msra.mxu0 0.0
        %1261 = vmatprep.subr.mxu0 0.0
        %1262 = vmatpush1.msra.mxu0 0.0
        %1263 = vmatprep.subr.mxu0 0.0
        %1264 = vmatpush1.msra.mxu0 0.0
        %1265 = vmatprep.subr.mxu0 0.0
        %1266 = vmatpush1.msra.mxu0 0.0
        %1267 = vmatprep.subr.mxu0 0.0
        %1268 = vmatpush1.msra.mxu0 0.0
        %1269 = vmatprep.subr.mxu0 0.0
        %1270 = vmatpush1.msra.mxu0 0.0
        %1271 = vmatprep.subr.mxu0 0.0
        %1272 = vmatpush1.msra.mxu0 0.0
        %1273 = vmatprep.subr.mxu0 0.0
        %1274 = vmatpush1.msra.mxu0 0.0
        %1275 = vmatprep.subr.mxu0 0.0
        %1276 = vmatpush1.msra.mxu0 0.0
        %1277 = vmatprep.subr.mxu0 0.0
        %1278 = vmatpush1.msra.mxu0 0.0
        %1279 = vmatprep.subr.mxu0 0.0
        %1280 = vmatpush1.msra.mxu0 %v1251
        %1281 = vmatprep.subr.mxu0 0.0
        %1282 = vmatpush1.msra.mxu0 %v1250
        %1283 = vmatprep.subr.mxu0 0.0
        %1284 = vmatpush1.msra.mxu0 %v1249
        %1285 = vmatprep.subr.mxu0 0.0
        %1286 = vmatpush1.msra.mxu0 %v1248
        %1287 = vmatprep.subr.mxu0 0.0
        %1288 = vmatpush2.msra.mxu0 0.0
        %1289 = vmatprep.subr.mxu0 0.0
        %1290 = vmatpush2.msra.mxu0 0.0
        %1291 = vmatprep.subr.mxu0 0.0
        %1292 = vmatpush2.msra.mxu0 0.0
        %1293 = vmatprep.subr.mxu0 0.0
        %1294 = vmatpush2.msra.mxu0 0.0
        %1295 = vmatprep.subr.mxu0 0.0
        %1296 = vmatpush2.msra.mxu0 0.0
        %1297 = vmatprep.subr.mxu0 0.0
        %1298 = vmatpush2.msra.mxu0 0.0
        %1299 = vmatprep.subr.mxu0 0.0
        %1300 = vmatpush2.msra.mxu0 0.0
        %1301 = vmatprep.subr.mxu0 0.0
        %1302 = vmatpush2.msra.mxu0 0.0
        %1303 = vmatprep.subr.mxu0 0.0
        %1304 = vmatpush2.msra.mxu0 0.0
        %1305 = vmatprep.subr.mxu0 0.0
        %1306 = vmatpush2.msra.mxu0 0.0
        %1307 = vmatprep.subr.mxu0 0.0
        %1308 = vmatpush2.msra.mxu0 0.0
        %1309 = vmatprep.subr.mxu0 0.0
        %1310 = vmatpush2.msra.mxu0 0.0
        %1311 = vmatprep.subr.mxu0 0.0
        %1312 = vmatpush2.msra.mxu0 0.0
        %1313 = vmatprep.subr.mxu0 0.0
        %1314 = vmatpush2.msra.mxu0 0.0
        %1315 = vmatprep.subr.mxu0 0.0
        %1316 = vmatpush2.msra.mxu0 0.0
        %1317 = vmatprep.subr.mxu0 0.0
        %1318 = vmatpush2.msra.mxu0 0.0
        %1319 = vmatprep.mubr.f32.mxu0 0.0
        %1320 = vmatmul.mubr.f32.gmra.mxu0 %v1253
        %v1321 = vpop.f32.mrf.mxu0
        %v1322 = vadd.f32 0.0, %v1321
        %v1323 = vpop.f32.mrf.mxu0
        %1324 = vdwg.mxu0
        %v1325 = vadd.f32 %v629, %v1322
        %v1326 = vld [vmem:[%s8] sm:$0x1]
        %v1328 = vlaneseq
        %v1329 = vshrl.u32 %v1328, 7
        %v1330 = vsub.s32 0, %v1329
        %v1331 = vrot.slane %v1326, %v1330
        %v1333 = vadd.f32 %v1325, %v1331
        %v1334 = vld [vmem:[#allocation13] sm:$0xff]
        %v1335 = vld [vmem:[#allocation13 + $0x8] sm:$0xff]
        %v1336 = vld [vmem:[#allocation13 + $0x10] sm:$0xff]
        %v1337 = vld [vmem:[#allocation13 + $0x18] sm:$0xff]
        %v1338 = vld [vmem:[%s10] sm:$0x1]
        %v1340 = vlaneseq
        %v1341 = vshrl.u32 %v1340, 7
        %v1342 = vsub.s32 0, %v1341
        %v1343 = vrot.slane %v1338, %v1342
        %v1346 = vsel %vm641, %v1333, 0
        %1348 = vmatprep.subr.mxu0 0.0
        %1349 = vmatpush1.msra.mxu0 0.0
        %1350 = vmatprep.subr.mxu0 0.0
        %1351 = vmatpush1.msra.mxu0 0.0
        %1352 = vmatprep.subr.mxu0 0.0
        %1353 = vmatpush1.msra.mxu0 0.0
        %1354 = vmatprep.subr.mxu0 0.0
        %1355 = vmatpush1.msra.mxu0 0.0
        %1356 = vmatprep.subr.mxu0 0.0
        %1357 = vmatpush1.msra.mxu0 0.0
        %1358 = vmatprep.subr.mxu0 0.0
        %1359 = vmatpush1.msra.mxu0 0.0
        %1360 = vmatprep.subr.mxu0 0.0
        %1361 = vmatpush1.msra.mxu0 0.0
        %1362 = vmatprep.subr.mxu0 0.0
        %1363 = vmatpush1.msra.mxu0 0.0
        %1364 = vmatprep.subr.mxu0 0.0
        %1365 = vmatpush1.msra.mxu0 0.0
        %1366 = vmatprep.subr.mxu0 0.0
        %1367 = vmatpush1.msra.mxu0 0.0
        %1368 = vmatprep.subr.mxu0 0.0
        %1369 = vmatpush1.msra.mxu0 0.0
        %1370 = vmatprep.subr.mxu0 0.0
        %1371 = vmatpush1.msra.mxu0 0.0
        %1372 = vmatprep.subr.mxu0 0.0
        %1373 = vmatpush1.msra.mxu0 %v1337
        %1374 = vmatprep.subr.mxu0 0.0
        %1375 = vmatpush1.msra.mxu0 %v1336
        %1376 = vmatprep.subr.mxu0 0.0
        %1377 = vmatpush1.msra.mxu0 %v1335
        %1378 = vmatprep.subr.mxu0 0.0
        %1379 = vmatpush1.msra.mxu0 %v1334
        %1380 = vmatprep.subr.mxu0 0.0
        %1381 = vmatpush2.msra.mxu0 0.0
        %1382 = vmatprep.subr.mxu0 0.0
        %1383 = vmatpush2.msra.mxu0 0.0
        %1384 = vmatprep.subr.mxu0 0.0
        %1385 = vmatpush2.msra.mxu0 0.0
        %1386 = vmatprep.subr.mxu0 0.0
        %1387 = vmatpush2.msra.mxu0 0.0
        %1388 = vmatprep.subr.mxu0 0.0
        %1389 = vmatpush2.msra.mxu0 0.0
        %1390 = vmatprep.subr.mxu0 0.0
        %1391 = vmatpush2.msra.mxu0 0.0
        %1392 = vmatprep.subr.mxu0 0.0
        %1393 = vmatpush2.msra.mxu0 0.0
        %1394 = vmatprep.subr.mxu0 0.0
        %1395 = vmatpush2.msra.mxu0 0.0
        %1396 = vmatprep.subr.mxu0 0.0
        %1397 = vmatpush2.msra.mxu0 0.0
        %1398 = vmatprep.subr.mxu0 0.0
        %1399 = vmatpush2.msra.mxu0 0.0
        %1400 = vmatprep.subr.mxu0 0.0
        %1401 = vmatpush2.msra.mxu0 0.0
        %1402 = vmatprep.subr.mxu0 0.0
        %1403 = vmatpush2.msra.mxu0 0.0
        %1404 = vmatprep.subr.mxu0 0.0
        %1405 = vmatpush2.msra.mxu0 0.0
        %1406 = vmatprep.subr.mxu0 0.0
        %1407 = vmatpush2.msra.mxu0 0.0
        %1408 = vmatprep.subr.mxu0 0.0
        %1409 = vmatpush2.msra.mxu0 0.0
        %1410 = vmatprep.subr.mxu0 0.0
        %1411 = vmatpush2.msra.mxu0 0.0
        %1412 = vmatprep.mubr.f32.mxu0 0.0
        %1413 = vmatmul.mubr.f32.gmra.mxu0 %v1346
        %v1414 = vpop.f32.mrf.mxu0
        %v1415 = vadd.f32 %v1343, %v1414
        %v1416 = vpop.f32.mrf.mxu0
        %1417 = vdwg.mxu0
        %v1418 = vsel %vm641, %v1333, 0.0
        %v1419 = vrot.slane %v1418, 4
        %v1420 = vadd.f32 %v1418, %v1419
        %v1421 = vrot.slane %v1420, 2
        %v1422 = vadd.f32 %v1420, %v1421
        %v1423 = vrot.slane %v1422, 1
        %v1424 = vadd.f32 %v1422, %v1423
        %v1425 = vrcp.pop 8.0
        %v1426 = vmul.f32 %v1424, %v1425
        %v1427 = vld [vmem:[#allocation14] sm:$0xff]
        %v1428 = vld [vmem:[#allocation14 + $0x8] sm:$0xff]
        %v1429 = vld [vmem:[#allocation14 + $0x10] sm:$0xff]
        %v1430 = vld [vmem:[#allocation14 + $0x18] sm:$0xff]
        %v1431 = vld [vmem:[%s12] sm:$0x1]
        %v1433 = vsel %vm641, %v1426, 0
        %1435 = vmatprep.subr.mxu0 0.0
        %1436 = vmatpush1.msra.mxu0 0.0
        %1437 = vmatprep.subr.mxu0 0.0
        %1438 = vmatpush1.msra.mxu0 0.0
        %1439 = vmatprep.subr.mxu0 0.0
        %1440 = vmatpush1.msra.mxu0 0.0
        %1441 = vmatprep.subr.mxu0 0.0
        %1442 = vmatpush1.msra.mxu0 0.0
        %1443 = vmatprep.subr.mxu0 0.0
        %1444 = vmatpush1.msra.mxu0 0.0
        %1445 = vmatprep.subr.mxu0 0.0
        %1446 = vmatpush1.msra.mxu0 0.0
        %1447 = vmatprep.subr.mxu0 0.0
        %1448 = vmatpush1.msra.mxu0 0.0
        %1449 = vmatprep.subr.mxu0 0.0
        %1450 = vmatpush1.msra.mxu0 0.0
        %1451 = vmatprep.subr.mxu0 0.0
        %1452 = vmatpush1.msra.mxu0 0.0
        %1453 = vmatprep.subr.mxu0 0.0
        %1454 = vmatpush1.msra.mxu0 0.0
        %1455 = vmatprep.subr.mxu0 0.0
        %1456 = vmatpush1.msra.mxu0 0.0
        %1457 = vmatprep.subr.mxu0 0.0
        %1458 = vmatpush1.msra.mxu0 0.0
        %1459 = vmatprep.subr.mxu0 0.0
        %1460 = vmatpush1.msra.mxu0 %v1430
        %1461 = vmatprep.subr.mxu0 0.0
        %1462 = vmatpush1.msra.mxu0 %v1429
        %1463 = vmatprep.subr.mxu0 0.0
        %1464 = vmatpush1.msra.mxu0 %v1428
        %1465 = vmatprep.subr.mxu0 0.0
        %1466 = vmatpush1.msra.mxu0 %v1427
        %1467 = vmatprep.subr.mxu0 0.0
        %1468 = vmatpush2.msra.mxu0 0.0
        %1469 = vmatprep.subr.mxu0 0.0
        %1470 = vmatpush2.msra.mxu0 0.0
        %1471 = vmatprep.subr.mxu0 0.0
        %1472 = vmatpush2.msra.mxu0 0.0
        %1473 = vmatprep.subr.mxu0 0.0
        %1474 = vmatpush2.msra.mxu0 0.0
        %1475 = vmatprep.subr.mxu0 0.0
        %1476 = vmatpush2.msra.mxu0 0.0
        %1477 = vmatprep.subr.mxu0 0.0
        %1478 = vmatpush2.msra.mxu0 0.0
        %1479 = vmatprep.subr.mxu0 0.0
        %1480 = vmatpush2.msra.mxu0 0.0
        %1481 = vmatprep.subr.mxu0 0.0
        %1482 = vmatpush2.msra.mxu0 0.0
        %1483 = vmatprep.subr.mxu0 0.0
        %1484 = vmatpush2.msra.mxu0 0.0
        %1485 = vmatprep.subr.mxu0 0.0
        %1486 = vmatpush2.msra.mxu0 0.0
        %1487 = vmatprep.subr.mxu0 0.0
        %1488 = vmatpush2.msra.mxu0 0.0
        %1489 = vmatprep.subr.mxu0 0.0
        %1490 = vmatpush2.msra.mxu0 0.0
        %1491 = vmatprep.subr.mxu0 0.0
        %1492 = vmatpush2.msra.mxu0 0.0
        %1493 = vmatprep.subr.mxu0 0.0
        %1494 = vmatpush2.msra.mxu0 0.0
        %1495 = vmatprep.subr.mxu0 0.0
        %1496 = vmatpush2.msra.mxu0 0.0
        %1497 = vmatprep.subr.mxu0 0.0
        %1498 = vmatpush2.msra.mxu0 0.0
        %1499 = vmatprep.mubr.f32.mxu0 0.0
        %1500 = vmatmul.mubr.f32.gmra.mxu0 %v1433
        %v1501 = vpop.f32.mrf.mxu0
        %v1502 = vadd.f32 %v1431, %v1501
        %v1503 = vpop.f32.mrf.mxu0
        %1504 = vdwg.mxu0
        %1505 = vst [vmem:[%s615] sm:$0xff] %v1415
        %1506 = vst.msk [vmem:[%s628] sm:$0xff] %vm641, %v1333
        %1507 = vst [vmem:[%s621] sm:$0x1] %v1502
        %s1508 = sand.u32 %s326, 1
        %s1509 = scalar_lea.sflag [#allocation4], %s1508
        %s1510 = sand.u32 %s326, 1
        %s1511 = smul.addr %s1510, 8
        %s1512 = scalar_lea.vmem [#allocation16], %s1511
        %s1513 = sand.u32 %s40, 1
        %s1514 = scalar_lea.sflag [#allocation18], %s1513
        %s1515 = sand.u32 %s352, 1
        %s1516 = scalar_lea.vmem [#allocation17], %s1515
        %s1517 = sand.u32 %s40, 1
        %s1518 = scalar_lea.sflag [#allocation18], %s1517
        %s1519 = sand.u32 %s378, 1
        %s1520 = smul.addr %s1519, 8
        %s1521 = scalar_lea.vmem [#allocation19], %s1520
        // Predicated region
        $region105: #{tpu_custom_call.1} parent=71 // pred_check
          %p1522 = pneg %p336
        $region106: #{tpu_custom_call.1} parent=71 // pred_check_branch
          %1524 = sbr.rel (%p1522) target = $region108
        $region107: #{tpu_custom_call.1} parent=71 // pred_region
          %s1526 = ssub.s32 128, 128
          %1527 = vsyncadd %s1509, %s1526
          %s1528 = smul.addr %s40, 128
          %s1529 = scalar_lea.hbm %s13, %s1528
          %s1531 = sshll.u32 %s1512, 4
          %s1532 = int_to_ptr.vmem [resolvable:$true] %s1531
          %1534 = dma.vmem_to_hbm [thread:$0]  %s1532, 128, %s1529, %s1509
        $region108: #{tpu_custom_call.1} parent=71 // pred_fallthru
          _
        // Predicated region
        $region109: #{tpu_custom_call.1} parent=71 // pred_check
          %p1535 = pneg %p362
        $region110: #{tpu_custom_call.1} parent=71 // pred_check_branch
          %1537 = sbr.rel (%p1535) target = $region112
        $region111: #{tpu_custom_call.1} parent=71 // pred_region
          %s1539 = ssub.s32 16, 16
          %1540 = vsyncadd %s1514, %s1539
          %s1541 = smul.addr %s40, 16
          %s1542 = scalar_lea.hbm %s14, %s1541
          %s1544 = sshll.u32 %s1516, 4
          %s1545 = int_to_ptr.vmem [resolvable:$true] %s1544
          %1547 = dma.vmem_to_hbm [thread:$0]  %s1545, 16, %s1542, %s1514
        $region112: #{tpu_custom_call.1} parent=71 // pred_fallthru
          _
        // Predicated region
        $region113: #{tpu_custom_call.1} parent=71 // pred_check
          %p1548 = pneg %p388
        $region114: #{tpu_custom_call.1} parent=71 // pred_check_branch
          %1550 = sbr.rel (%p1548) target = $region116
        $region115: #{tpu_custom_call.1} parent=71 // pred_region
          %s1552 = ssub.s32 128, 128
          %1553 = vsyncadd %s1518, %s1552
          %s1554 = smul.addr %s40, 128
          %s1555 = scalar_lea.hbm %s15, %s1554
          %s1557 = sshll.u32 %s1521, 4
          %s1558 = int_to_ptr.vmem [resolvable:$true] %s1557
          %1560 = dma.vmem_to_hbm [thread:$0]  %s1558, 128, %s1555, %s1518
        $region116: #{tpu_custom_call.1} parent=71 // pred_fallthru
          _
      $region72: #{tpu_custom_call.1} parent=5 // pred_fallthru
        _
      %p1561 = scmp.le.s32.totalorder 2, %s35
      // Predicated region
      $region117: #{tpu_custom_call.1} parent=5 // pred_check
        %p1562 = pneg %p1561
      $region118: #{tpu_custom_call.1} parent=5 // pred_check_branch
        %1564 = sbr.rel (%p1562) target = $region120
      $region119: #{tpu_custom_call.1} parent=5 // pred_region
        %s1565 = ssub.s32 %s35, 2
        // Predicated region
        $region121: #{tpu_custom_call.1} parent=119 // pred_check
          %p1566 = pneg %p342
        $region122: #{tpu_custom_call.1} parent=119 // pred_check_branch
          %1568 = sbr.rel (%p1566) target = $region124
        $region123: #{tpu_custom_call.1} parent=119 // pred_region
          %s1569 = sand.u32 %s327, 1
          %s1570 = scalar_lea.sflag [#allocation4], %s1569
          %s1571 = sand.u32 %s327, 1
          %s1572 = smul.addr %s1571, 8
          %s1573 = scalar_lea.vmem [#allocation16], %s1572
          %1574 = dma.done %s1570, 128
        $region124: #{tpu_custom_call.1} parent=119 // pred_fallthru
          _
        // Predicated region
        $region125: #{tpu_custom_call.1} parent=119 // pred_check
          %p1575 = pneg %p368
        $region126: #{tpu_custom_call.1} parent=119 // pred_check_branch
          %1577 = sbr.rel (%p1575) target = $region128
        $region127: #{tpu_custom_call.1} parent=119 // pred_region
          %s1578 = sand.u32 %s41, 1
          %s1579 = scalar_lea.sflag [#allocation18], %s1578
          %s1580 = sand.u32 %s353, 1
          %s1581 = scalar_lea.vmem [#allocation17], %s1580
          %1582 = dma.done %s1579, 16
        $region128: #{tpu_custom_call.1} parent=119 // pred_fallthru
          _
        // Predicated region
        $region129: #{tpu_custom_call.1} parent=119 // pred_check
          %p1583 = pneg %p394
        $region130: #{tpu_custom_call.1} parent=119 // pred_check_branch
          %1585 = sbr.rel (%p1583) target = $region132
        $region131: #{tpu_custom_call.1} parent=119 // pred_region
          %s1586 = sand.u32 %s41, 1
          %s1587 = scalar_lea.sflag [#allocation18], %s1586
          %s1588 = sand.u32 %s379, 1
          %s1589 = smul.addr %s1588, 8
          %s1590 = scalar_lea.vmem [#allocation19], %s1589
          %1591 = dma.done %s1587, 128
        $region132: #{tpu_custom_call.1} parent=119 // pred_fallthru
          _
      $region120: #{tpu_custom_call.1} parent=5 // pred_fallthru
        _
    $region6: #{tpu_custom_call.1} parent=1 // loop_footer
      %s39 = sadd.s32 1, %s35
    $region7: #{tpu_custom_call.1} parent=1 // loop_footer_branch
      %34 = sbr.rel target = $region3
    $region8: #{tpu_custom_call.1} parent=1 // loop_exit
      _
    %1592 = vsyncpa [#allocation3], 1
    %s1593 = scalar_lea.sflag [#allocation3], 1
    %1594 = vsyncpa %s1593, 1
    %1595 = vsyncpa [#allocation6], 1
    %1596 = vsyncpa [#allocation9], 1
    %1597 = vsyncpa [#allocation12], 1
    %1598 = vsyncpa [#allocation15], 1
    %1599 = vsyncpa [#allocation4], 1
    %s1600 = scalar_lea.sflag [#allocation4], 1
    %1601 = vsyncpa %s1600, 1
    %1602 = vsyncpa [#allocation18], 1
    %s1603 = scalar_lea.sflag [#allocation18], 1
    %1604 = vsyncpa %s1603, 1

// kernel: tpu_custom_call.1
$region0: #{tpu_custom_call.1}
  #allocation0 [shape = 'u32[]', space=smem, size = 0x4, offset = 0x4, fixed_abs, tag = 'smem constant byte address 0x4 - core index']
  #allocation1 [shape = 'u32[144,128]{1,0:T(1,128)}', space=vmem, size = 0x12000, scoped, tag = 'internal scratch']
  %s0 = inlined_call_operand.hbm [shape: f32[16,32], index: 0, kind: input, shape index: {}]
  %s1 = inlined_call_operand.hbm [shape: f32[9,9], index: 1, kind: input, shape index: {}]
  %s2 = inlined_call_operand.hbm [shape: f32[32,32], index: 2, kind: input, shape index: {}]
  %s3 = inlined_call_operand.vmem [shape: f32[1,32], index: 3, kind: input, shape index: {}]
  %s4 = inlined_call_operand.hbm [shape: f32[9,32], index: 4, kind: input, shape index: {}]
  %s5 = inlined_call_operand.hbm [shape: f32[32,32], index: 5, kind: input, shape index: {}]
  %s6 = inlined_call_operand.vmem [shape: f32[1,32], index: 6, kind: input, shape index: {}]
  %s7 = inlined_call_operand.hbm [shape: f32[32,32], index: 7, kind: input, shape index: {}]
  %s8 = inlined_call_operand.vmem [shape: f32[1,32], index: 8, kind: input, shape index: {}]
  %s9 = inlined_call_operand.hbm [shape: f32[32,128], index: 9, kind: input, shape index: {}]
  %s10 = inlined_call_operand.vmem [shape: f32[1,128], index: 10, kind: input, shape index: {}]
  %s11 = inlined_call_operand.hbm [shape: f32[32,128], index: 11, kind: input, shape index: {}]
  %s12 = inlined_call_operand.vmem [shape: f32[1,128], index: 12, kind: input, shape index: {}]
  %s13 = inlined_call_operand.hbm [shape: f32[16,128], index: 13, kind: output, shape index: {0}]
  %s14 = inlined_call_operand.hbm [shape: f32[2,1,128], index: 14, kind: output, shape index: {1}]
  %s15 = inlined_call_operand.hbm [shape: f32[16,32], index: 15, kind: output, shape index: {2}]
  %16 = xla_tuple %s13, %s14, %s15
  %s17 = sld [smem:[#allocation0]]
  $region133: #{tpu_custom_call.1} parent=0
    _
  %s19 = ssub.s32 1, %s17
  %s20 = scalar_select 0, %s19, %s17
  $region1: #{tpu_custom_call.1} parent=0
    #allocation2 [shape = 'u8[8192]{0}', space=vmem, size = 0x2000, scoped, tag = 'input window, operand 0']
    #allocation3 [shape = 's32[2]{0}', space=sflag, size = 0x8, scoped, tag = 'scoped memory for tpu_custom_call.1']
    #allocation4 [shape = 's32[2]{0}', space=sflag, size = 0x8, scoped, tag = 'scoped memory for tpu_custom_call.1']
    #allocation5 [shape = 'u8[8192]{0}', space=vmem, size = 0x2000, scoped, tag = 'input window, operand 1, single buffered']
    #allocation6 [shape = 's32[1]{0}', space=sflag, size = 0x4, scoped, tag = 'scoped memory for tpu_custom_call.1']
    #allocation7 [shape = 'u8[16384]{0}', space=vmem, size = 0x4000, scoped, tag = 'input window, operand 2, single buffered']
    #allocation8 [shape = 'u8[8192]{0}', space=vmem, size = 0x2000, scoped, tag = 'input window, operand 4, single buffered']
    #allocation9 [shape = 's32[1]{0}', space=sflag, size = 0x4, scoped, tag = 'scoped memory for tpu_custom_call.1']
    #allocation10 [shape = 'u8[16384]{0}', space=vmem, size = 0x4000, scoped, tag = 'input window, operand 5, single buffered']
    #allocation11 [shape = 'u8[16384]{0}', space=vmem, size = 0x4000, scoped, tag = 'input window, operand 7, single buffered']
    #allocation12 [shape = 's32[1]{0}', space=sflag, size = 0x4, scoped, tag = 'scoped memory for tpu_custom_call.1']
    #allocation13 [shape = 'u8[16384]{0}', space=vmem, size = 0x4000, scoped, tag = 'input window, operand 9, single buffered']
    #allocation14 [shape = 'u8[16384]{0}', space=vmem, size = 0x4000, scoped, tag = 'input window, operand 11, single buffered']
    #allocation15 [shape = 's32[1]{0}', space=sflag, size = 0x4, scoped, tag = 'scoped memory for tpu_custom_call.1']
    #allocation16 [shape = 'u8[8192]{0}', space=vmem, size = 0x2000, scoped, tag = 'output window, operand 0']
    #allocation17 [shape = 'u8[1024]{0}', space=vmem, size = 0x400, scoped, tag = 'output window, operand 1']
    #allocation18 [shape = 's32[2]{0}', space=sflag, size = 0x8, scoped, tag = 'scoped memory for tpu_custom_call.1']
    #allocation19 [shape = 'u8[8192]{0}', space=vmem, size = 0x2000, scoped, tag = 'output window, operand 2']
    %21 = vsyncpa [#allocation3], 0
    %s22 = scalar_lea.sflag [#allocation3], 1
    %23 = vsyncpa %s22, 0
    %24 = vsyncpa [#allocation6], 0
    %25 = vsyncpa [#allocation9], 0
    %26 = vsyncpa [#allocation12], 0
    %27 = vsyncpa [#allocation15], 0
    %28 = vsyncpa [#allocation4], 0
    %s29 = scalar_lea.sflag [#allocation4], 1
    %30 = vsyncpa %s29, 0
    %31 = vsyncpa [#allocation18], 0
    %s32 = scalar_lea.sflag [#allocation18], 1
    %33 = vsyncpa %s32, 0
    loop: start=0, step=1, limit=4
    $region2: #{tpu_custom_call.1} parent=1 // loop_pre_header
      _
    $region3: #{tpu_custom_call.1} parent=1 // loop_header
      %s35 = sphi 0, %s39
      %p36 = scmp.ge.s32.totalorder %s35, 4
      %s45 = sphi 0, %s47
      %s48 = sphi 0, %s45
      %s49 = sphi 0, %s48
      %s65 = sphi 0, %s49
      %s69 = sphi 0, %s69
      %s71 = sphi 0, %s69
      %s72 = sphi 0, %s71
      %s86 = sphi 0, %s72
      %s90 = sphi 0, %s90
      %s92 = sphi 0, %s90
      %s93 = sphi 0, %s92
      %s107 = sphi 0, %s93
      %s111 = sphi 0, %s111
      %s113 = sphi 0, %s111
      %s114 = sphi 0, %s113
      %s128 = sphi 0, %s114
      %s132 = sphi 0, %s132
      %s134 = sphi 0, %s132
      %s135 = sphi 0, %s134
      %s149 = sphi 0, %s135
      %s153 = sphi 0, %s153
      %s155 = sphi 0, %s153
      %s156 = sphi 0, %s155
      %s170 = sphi 0, %s156
      %s174 = sphi 0, %s174
      %s176 = sphi 0, %s174
      %s177 = sphi 0, %s176
      %s191 = sphi 0, %s177
      %s195 = sphi 0, %s195
      %s197 = sphi 0, %s195
      %s198 = sphi 0, %s197
      %s212 = sphi 0, %s198
      %s216 = sphi 0, %s216
      %s218 = sphi 0, %s216
      %s219 = sphi 0, %s218
      %s233 = sphi 0, %s219
      %s237 = sphi 0, %s237
      %s239 = sphi 0, %s237
      %s240 = sphi 0, %s239
      %s254 = sphi 0, %s240
      %s258 = sphi 0, %s258
      %s260 = sphi 0, %s258
      %s261 = sphi 0, %s260
      %s275 = sphi 0, %s261
      %s279 = sphi 0, %s279
      %s281 = sphi 0, %s279
      %s282 = sphi 0, %s281
      %s296 = sphi 0, %s282
      %s300 = sphi 0, %s300
      %s302 = sphi 0, %s300
      %s303 = sphi 0, %s302
      %s317 = sphi 0, %s303
      %s323 = sphi 0, %s325
      %s326 = sphi 0, %s323
      %s327 = sphi 0, %s326
      %s343 = sphi 0, %s327
      %s349 = sphi 0, %s351
      %s352 = sphi 0, %s349
      %s353 = sphi 0, %s352
      %s369 = sphi 0, %s353
      %s375 = sphi 0, %s377
      %s378 = sphi 0, %s375
      %s379 = sphi 0, %s378
      %s395 = sphi 0, %s379
    $region4: #{tpu_custom_call.1} parent=1 // loop_header_branch
      %38 = sbr.rel (%p36) target = $region8
    $region5: #{tpu_custom_call.1} parent=1 // loop_body
      %s40 = ssub.s32 %s35, 1
      %s41 = ssub.s32 %s35, 2
      %s42 = sadd.s32 %s35, 1
      %s43 = ssub.s32 %s35, %s42
      %p44 = scmp.eq.s32.totalorder %s43, 0
      %s46 = sadd.s32 %s45, 1
      %s47 = scalar_select %p44, %s45, %s46
      %p50 = pneg %p44
      %p51 = scmp.eq.s32.totalorder %s35, 1
      %p52 = por %p50, %p51
      %p53 = scmp.ne.s32.totalorder %s45, %s48
      %p54 = scmp.eq.s32.totalorder %s35, 0
      %p55 = por %p53, %p54
      %p56 = scmp.ne.s32.totalorder %s45, %s48
      %p57 = scmp.eq.s32.totalorder %s40, 1
      %p58 = por %p56, %p57
      %p59 = scmp.ne.s32.totalorder %s48, %s49
      %p60 = scmp.eq.s32.totalorder %s40, 0
      %p61 = por %p59, %p60
      %p62 = scmp.ne.s32.totalorder %s48, %s49
      %p63 = scmp.eq.s32.totalorder %s41, 1
      %p64 = por %p62, %p63
      %p66 = scmp.ne.s32.totalorder %s49, %s65
      %p67 = scmp.eq.s32.totalorder %s41, 0
      %p68 = por %p66, %p67
      %s70 = sadd.s32 %s69, 1
      %p73 = scmp.eq.s32.totalorder %s35, 1
      %p74 = scmp.ne.s32.totalorder %s69, %s71
      %p75 = scmp.eq.s32.totalorder %s35, 0
      %p76 = por %p74, %p75
      %p77 = scmp.ne.s32.totalorder %s69, %s71
      %p78 = scmp.eq.s32.totalorder %s40, 1
      %p79 = por %p77, %p78
      %p80 = scmp.ne.s32.totalorder %s71, %s72
      %p81 = scmp.eq.s32.totalorder %s40, 0
      %p82 = por %p80, %p81
      %p83 = scmp.ne.s32.totalorder %s71, %s72
      %p84 = scmp.eq.s32.totalorder %s41, 1
      %p85 = por %p83, %p84
      %p87 = scmp.ne.s32.totalorder %s72, %s86
      %p88 = scmp.eq.s32.totalorder %s41, 0
      %p89 = por %p87, %p88
      %s91 = sadd.s32 %s90, 1
      %p94 = scmp.eq.s32.totalorder %s35, 1
      %p95 = scmp.ne.s32.totalorder %s90, %s92
      %p96 = scmp.eq.s32.totalorder %s35, 0
      %p97 = por %p95, %p96
      %p98 = scmp.ne.s32.totalorder %s90, %s92
      %p99 = scmp.eq.s32.totalorder %s40, 1
      %p100 = por %p98, %p99
      %p101 = scmp.ne.s32.totalorder %s92, %s93
      %p102 = scmp.eq.s32.totalorder %s40, 0
      %p103 = por %p101, %p102
      %p104 = scmp.ne.s32.totalorder %s92, %s93
      %p105 = scmp.eq.s32.totalorder %s41, 1
      %p106 = por %p104, %p105
      %p108 = scmp.ne.s32.totalorder %s93, %s107
      %p109 = scmp.eq.s32.totalorder %s41, 0
      %p110 = por %p108, %p109
      %s112 = sadd.s32 %s111, 1
      %p115 = scmp.eq.s32.totalorder %s35, 1
      %p116 = scmp.ne.s32.totalorder %s111, %s113
      %p117 = scmp.eq.s32.totalorder %s35, 0
      %p118 = por %p116, %p117
      %p119 = scmp.ne.s32.totalorder %s111, %s113
      %p120 = scmp.eq.s32.totalorder %s40, 1
      %p121 = por %p119, %p120
      %p122 = scmp.ne.s32.totalorder %s113, %s114
      %p123 = scmp.eq.s32.totalorder %s40, 0
      %p124 = por %p122, %p123
      %p125 = scmp.ne.s32.totalorder %s113, %s114
      %p126 = scmp.eq.s32.totalorder %s41, 1
      %p127 = por %p125, %p126
      %p129 = scmp.ne.s32.totalorder %s114, %s128
      %p130 = scmp.eq.s32.totalorder %s41, 0
      %p131 = por %p129, %p130
      %s133 = sadd.s32 %s132, 1
      %p136 = scmp.eq.s32.totalorder %s35, 1
      %p137 = scmp.ne.s32.totalorder %s132, %s134
      %p138 = scmp.eq.s32.totalorder %s35, 0
      %p139 = por %p137, %p138
      %p140 = scmp.ne.s32.totalorder %s132, %s134
      %p141 = scmp.eq.s32.totalorder %s40, 1
      %p142 = por %p140, %p141
      %p143 = scmp.ne.s32.totalorder %s134, %s135
      %p144 = scmp.eq.s32.totalorder %s40, 0
      %p145 = por %p143, %p144
      %p146 = scmp.ne.s32.totalorder %s134, %s135
      %p147 = scmp.eq.s32.totalorder %s41, 1
      %p148 = por %p146, %p147
      %p150 = scmp.ne.s32.totalorder %s135, %s149
      %p151 = scmp.eq.s32.totalorder %s41, 0
      %p152 = por %p150, %p151
      %s154 = sadd.s32 %s153, 1
      %p157 = scmp.eq.s32.totalorder %s35, 1
      %p158 = scmp.ne.s32.totalorder %s153, %s155
      %p159 = scmp.eq.s32.totalorder %s35, 0
      %p160 = por %p158, %p159
      %p161 = scmp.ne.s32.totalorder %s153, %s155
      %p162 = scmp.eq.s32.totalorder %s40, 1
      %p163 = por %p161, %p162
      %p164 = scmp.ne.s32.totalorder %s155, %s156
      %p165 = scmp.eq.s32.totalorder %s40, 0
      %p166 = por %p164, %p165
      %p167 = scmp.ne.s32.totalorder %s155, %s156
      %p168 = scmp.eq.s32.totalorder %s41, 1
      %p169 = por %p167, %p168
      %p171 = scmp.ne.s32.totalorder %s156, %s170
      %p172 = scmp.eq.s32.totalorder %s41, 0
      %p173 = por %p171, %p172
      %s175 = sadd.s32 %s174, 1
      %p178 = scmp.eq.s32.totalorder %s35, 1
      %p179 = scmp.ne.s32.totalorder %s174, %s176
      %p180 = scmp.eq.s32.totalorder %s35, 0
      %p181 = por %p179, %p180
      %p182 = scmp.ne.s32.totalorder %s174, %s176
      %p183 = scmp.eq.s32.totalorder %s40, 1
      %p184 = por %p182, %p183
      %p185 = scmp.ne.s32.totalorder %s176, %s177
      %p186 = scmp.eq.s32.totalorder %s40, 0
      %p187 = por %p185, %p186
      %p188 = scmp.ne.s32.totalorder %s176, %s177
      %p189 = scmp.eq.s32.totalorder %s41, 1
      %p190 = por %p188, %p189
      %p192 = scmp.ne.s32.totalorder %s177, %s191
      %p193 = scmp.eq.s32.totalorder %s41, 0
      %p194 = por %p192, %p193
      %s196 = sadd.s32 %s195, 1
      %p199 = scmp.eq.s32.totalorder %s35, 1
      %p200 = scmp.ne.s32.totalorder %s195, %s197
      %p201 = scmp.eq.s32.totalorder %s35, 0
      %p202 = por %p200, %p201
      %p203 = scmp.ne.s32.totalorder %s195, %s197
      %p204 = scmp.eq.s32.totalorder %s40, 1
      %p205 = por %p203, %p204
      %p206 = scmp.ne.s32.totalorder %s197, %s198
      %p207 = scmp.eq.s32.totalorder %s40, 0
      %p208 = por %p206, %p207
      %p209 = scmp.ne.s32.totalorder %s197, %s198
      %p210 = scmp.eq.s32.totalorder %s41, 1
      %p211 = por %p209, %p210
      %p213 = scmp.ne.s32.totalorder %s198, %s212
      %p214 = scmp.eq.s32.totalorder %s41, 0
      %p215 = por %p213, %p214
      %s217 = sadd.s32 %s216, 1
      %p220 = scmp.eq.s32.totalorder %s35, 1
      %p221 = scmp.ne.s32.totalorder %s216, %s218
      %p222 = scmp.eq.s32.totalorder %s35, 0
      %p223 = por %p221, %p222
      %p224 = scmp.ne.s32.totalorder %s216, %s218
      %p225 = scmp.eq.s32.totalorder %s40, 1
      %p226 = por %p224, %p225
      %p227 = scmp.ne.s32.totalorder %s218, %s219
      %p228 = scmp.eq.s32.totalorder %s40, 0
      %p229 = por %p227, %p228
      %p230 = scmp.ne.s32.totalorder %s218, %s219
      %p231 = scmp.eq.s32.totalorder %s41, 1
      %p232 = por %p230, %p231
      %p234 = scmp.ne.s32.totalorder %s219, %s233
      %p235 = scmp.eq.s32.totalorder %s41, 0
      %p236 = por %p234, %p235
      %s238 = sadd.s32 %s237, 1
      %p241 = scmp.eq.s32.totalorder %s35, 1
      %p242 = scmp.ne.s32.totalorder %s237, %s239
      %p243 = scmp.eq.s32.totalorder %s35, 0
      %p244 = por %p242, %p243
      %p245 = scmp.ne.s32.totalorder %s237, %s239
      %p246 = scmp.eq.s32.totalorder %s40, 1
      %p247 = por %p245, %p246
      %p248 = scmp.ne.s32.totalorder %s239, %s240
      %p249 = scmp.eq.s32.totalorder %s40, 0
      %p250 = por %p248, %p249
      %p251 = scmp.ne.s32.totalorder %s239, %s240
      %p252 = scmp.eq.s32.totalorder %s41, 1
      %p253 = por %p251, %p252
      %p255 = scmp.ne.s32.totalorder %s240, %s254
      %p256 = scmp.eq.s32.totalorder %s41, 0
      %p257 = por %p255, %p256
      %s259 = sadd.s32 %s258, 1
      %p262 = scmp.eq.s32.totalorder %s35, 1
      %p263 = scmp.ne.s32.totalorder %s258, %s260
      %p264 = scmp.eq.s32.totalorder %s35, 0
      %p265 = por %p263, %p264
      %p266 = scmp.ne.s32.totalorder %s258, %s260
      %p267 = scmp.eq.s32.totalorder %s40, 1
      %p268 = por %p266, %p267
      %p269 = scmp.ne.s32.totalorder %s260, %s261
      %p270 = scmp.eq.s32.totalorder %s40, 0
      %p271 = por %p269, %p270
      %p272 = scmp.ne.s32.totalorder %s260, %s261
      %p273 = scmp.eq.s32.totalorder %s41, 1
      %p274 = por %p272, %p273
      %p276 = scmp.ne.s32.totalorder %s261, %s275
      %p277 = scmp.eq.s32.totalorder %s41, 0
      %p278 = por %p276, %p277
      %s280 = sadd.s32 %s279, 1
      %p283 = scmp.eq.s32.totalorder %s35, 1
      %p284 = scmp.ne.s32.totalorder %s279, %s281
      %p285 = scmp.eq.s32.totalorder %s35, 0
      %p286 = por %p284, %p285
      %p287 = scmp.ne.s32.totalorder %s279, %s281
      %p288 = scmp.eq.s32.totalorder %s40, 1
      %p289 = por %p287, %p288
      %p290 = scmp.ne.s32.totalorder %s281, %s282
      %p291 = scmp.eq.s32.totalorder %s40, 0
      %p292 = por %p290, %p291
      %p293 = scmp.ne.s32.totalorder %s281, %s282
      %p294 = scmp.eq.s32.totalorder %s41, 1
      %p295 = por %p293, %p294
      %p297 = scmp.ne.s32.totalorder %s282, %s296
      %p298 = scmp.eq.s32.totalorder %s41, 0
      %p299 = por %p297, %p298
      %s301 = sadd.s32 %s300, 1
      %p304 = scmp.eq.s32.totalorder %s35, 1
      %p305 = scmp.ne.s32.totalorder %s300, %s302
      %p306 = scmp.eq.s32.totalorder %s35, 0
      %p307 = por %p305, %p306
      %p308 = scmp.ne.s32.totalorder %s300, %s302
      %p309 = scmp.eq.s32.totalorder %s40, 1
      %p310 = por %p308, %p309
      %p311 = scmp.ne.s32.totalorder %s302, %s303
      %p312 = scmp.eq.s32.totalorder %s40, 0
      %p313 = por %p311, %p312
      %p314 = scmp.ne.s32.totalorder %s302, %s303
      %p315 = scmp.eq.s32.totalorder %s41, 1
      %p316 = por %p314, %p315
      %p318 = scmp.ne.s32.totalorder %s303, %s317
      %p319 = scmp.eq.s32.totalorder %s41, 0
      %p320 = por %p318, %p319
      %s321 = ssub.s32 %s35, %s42
      %p322 = scmp.eq.s32.totalorder %s321, 0
      %s324 = sadd.s32 %s323, 1
      %s325 = scalar_select %p322, %s323, %s324
      %p328 = pneg %p322
      %p329 = scmp.eq.s32.totalorder %s35, 1
      %p330 = por %p328, %p329
      %p331 = scmp.ne.s32.totalorder %s323, %s326
      %p332 = scmp.eq.s32.totalorder %s35, 0
      %p333 = por %p331, %p332
      %p334 = scmp.ne.s32.totalorder %s323, %s326
      %p335 = scmp.eq.s32.totalorder %s40, 1
      %p336 = por %p334, %p335
      %p337 = scmp.ne.s32.totalorder %s326, %s327
      %p338 = scmp.eq.s32.totalorder %s40, 0
      %p339 = por %p337, %p338
      %p340 = scmp.ne.s32.totalorder %s326, %s327
      %p341 = scmp.eq.s32.totalorder %s41, 1
      %p342 = por %p340, %p341
      %p344 = scmp.ne.s32.totalorder %s327, %s343
      %p345 = scmp.eq.s32.totalorder %s41, 0
      %p346 = por %p344, %p345
      %s347 = ssub.s32 %s35, %s42
      %p348 = scmp.eq.s32.totalorder %s347, 0
      %s350 = sadd.s32 %s349, 1
      %s351 = scalar_select %p348, %s349, %s350
      %p354 = pneg %p348
      %p355 = scmp.eq.s32.totalorder %s35, 1
      %p356 = por %p354, %p355
      %p357 = scmp.ne.s32.totalorder %s349, %s352
      %p358 = scmp.eq.s32.totalorder %s35, 0
      %p359 = por %p357, %p358
      %p360 = scmp.ne.s32.totalorder %s349, %s352
      %p361 = scmp.eq.s32.totalorder %s40, 1
      %p362 = por %p360, %p361
      %p363 = scmp.ne.s32.totalorder %s352, %s353
      %p364 = scmp.eq.s32.totalorder %s40, 0
      %p365 = por %p363, %p364
      %p366 = scmp.ne.s32.totalorder %s352, %s353
      %p367 = scmp.eq.s32.totalorder %s41, 1
      %p368 = por %p366, %p367
      %p370 = scmp.ne.s32.totalorder %s353, %s369
      %p371 = scmp.eq.s32.totalorder %s41, 0
      %p372 = por %p370, %p371
      %s373 = ssub.s32 %s35, %s42
      %p374 = scmp.eq.s32.totalorder %s373, 0
      %s376 = sadd.s32 %s375, 1
      %s377 = scalar_select %p374, %s375, %s376
      %p380 = pneg %p374
      %p381 = scmp.eq.s32.totalorder %s35, 1
      %p382 = por %p380, %p381
      %p383 = scmp.ne.s32.totalorder %s375, %s378
      %p384 = scmp.eq.s32.totalorder %s35, 0
      %p385 = por %p383, %p384
      %p386 = scmp.ne.s32.totalorder %s375, %s378
      %p387 = scmp.eq.s32.totalorder %s40, 1
      %p388 = por %p386, %p387
      %p389 = scmp.ne.s32.totalorder %s378, %s379
      %p390 = scmp.eq.s32.totalorder %s40, 0
      %p391 = por %p389, %p390
      %p392 = scmp.ne.s32.totalorder %s378, %s379
      %p393 = scmp.eq.s32.totalorder %s41, 1
      %p394 = por %p392, %p393
      %p396 = scmp.ne.s32.totalorder %s379, %s395
      %p397 = scmp.eq.s32.totalorder %s41, 0
      %p398 = por %p396, %p397
      %p399 = scmp.le.s32.totalorder 1, %s35
      %p400 = scmp.lt.s32.totalorder %s35, 3
      %p401 = pnand %p399, %p400
      %p402 = pneg %p401
      // Predicated region
      $region9: #{tpu_custom_call.1} parent=5 // pred_check
        _
      $region10: #{tpu_custom_call.1} parent=5 // pred_check_branch
        %404 = sbr.rel (%p401) target = $region12
      $region11: #{tpu_custom_call.1} parent=5 // pred_region
        %s405 = ssub.s32 %s35, 1
        // Predicated region
        $region13: #{tpu_custom_call.1} parent=11 // pred_check
          %p406 = pneg %p82
        $region14: #{tpu_custom_call.1} parent=11 // pred_check_branch
          %408 = sbr.rel (%p406) target = $region16
        $region15: #{tpu_custom_call.1} parent=11 // pred_region
          %s410 = ssub.s32 256, 256
          %411 = vsyncadd [#allocation6], %s410
          %s412 = sshll.u32 [#allocation5], 4
          %s413 = int_to_ptr.vmem [resolvable:$true] %s412
          %418 = dma.hbm_to_vmem [thread:$0]  %s1, 256, %s413, [#allocation6], 128, 128, 8
        $region16: #{tpu_custom_call.1} parent=11 // pred_fallthru
          _
        // Predicated region
        $region17: #{tpu_custom_call.1} parent=11 // pred_check
          %p419 = pneg %p103
        $region18: #{tpu_custom_call.1} parent=11 // pred_check_branch
          %421 = sbr.rel (%p419) target = $region20
        $region19: #{tpu_custom_call.1} parent=11 // pred_region
          %s423 = ssub.s32 512, 512
          %424 = vsyncadd [#allocation6], %s423
          %s425 = sshll.u32 [#allocation7], 4
          %s426 = int_to_ptr.vmem [resolvable:$true] %s425
          %431 = dma.hbm_to_vmem [thread:$0]  %s2, 512, %s426, [#allocation6], 128, 128, 8
        $region20: #{tpu_custom_call.1} parent=11 // pred_fallthru
          _
        // Predicated region
        $region21: #{tpu_custom_call.1} parent=11 // pred_check
          %p432 = pneg %p124
        $region22: #{tpu_custom_call.1} parent=11 // pred_check_branch
          %434 = sbr.rel (%p432) target = $region24
        $region23: #{tpu_custom_call.1} parent=11 // pred_region
          _
        $region24: #{tpu_custom_call.1} parent=11 // pred_fallthru
          _
        // Predicated region
        $region25: #{tpu_custom_call.1} parent=11 // pred_check
          %p435 = pneg %p145
        $region26: #{tpu_custom_call.1} parent=11 // pred_check_branch
          %437 = sbr.rel (%p435) target = $region28
        $region27: #{tpu_custom_call.1} parent=11 // pred_region
          %s439 = ssub.s32 256, 256
          %440 = vsyncadd [#allocation9], %s439
          %s441 = sshll.u32 [#allocation8], 4
          %s442 = int_to_ptr.vmem [resolvable:$true] %s441
          %447 = dma.hbm_to_vmem [thread:$0]  %s4, 256, %s442, [#allocation9], 128, 128, 8
        $region28: #{tpu_custom_call.1} parent=11 // pred_fallthru
          _
        // Predicated region
        $region29: #{tpu_custom_call.1} parent=11 // pred_check
          %p448 = pneg %p166
        $region30: #{tpu_custom_call.1} parent=11 // pred_check_branch
          %450 = sbr.rel (%p448) target = $region32
        $region31: #{tpu_custom_call.1} parent=11 // pred_region
          %s452 = ssub.s32 512, 512
          %453 = vsyncadd [#allocation9], %s452
          %s454 = sshll.u32 [#allocation10], 4
          %s455 = int_to_ptr.vmem [resolvable:$true] %s454
          %460 = dma.hbm_to_vmem [thread:$0]  %s5, 512, %s455, [#allocation9], 128, 128, 8
        $region32: #{tpu_custom_call.1} parent=11 // pred_fallthru
          _
        // Predicated region
        $region33: #{tpu_custom_call.1} parent=11 // pred_check
          %p461 = pneg %p187
        $region34: #{tpu_custom_call.1} parent=11 // pred_check_branch
          %463 = sbr.rel (%p461) target = $region36
        $region35: #{tpu_custom_call.1} parent=11 // pred_region
          _
        $region36: #{tpu_custom_call.1} parent=11 // pred_fallthru
          _
        // Predicated region
        $region37: #{tpu_custom_call.1} parent=11 // pred_check
          %p464 = pneg %p208
        $region38: #{tpu_custom_call.1} parent=11 // pred_check_branch
          %466 = sbr.rel (%p464) target = $region40
        $region39: #{tpu_custom_call.1} parent=11 // pred_region
          %s468 = ssub.s32 512, 512
          %469 = vsyncadd [#allocation12], %s468
          %s470 = sshll.u32 [#allocation11], 4
          %s471 = int_to_ptr.vmem [resolvable:$true] %s470
          %476 = dma.hbm_to_vmem [thread:$0]  %s7, 512, %s471, [#allocation12], 128, 128, 8
        $region40: #{tpu_custom_call.1} parent=11 // pred_fallthru
          _
        // Predicated region
        $region41: #{tpu_custom_call.1} parent=11 // pred_check
          %p477 = pneg %p229
        $region42: #{tpu_custom_call.1} parent=11 // pred_check_branch
          %479 = sbr.rel (%p477) target = $region44
        $region43: #{tpu_custom_call.1} parent=11 // pred_region
          _
        $region44: #{tpu_custom_call.1} parent=11 // pred_fallthru
          _
        // Predicated region
        $region45: #{tpu_custom_call.1} parent=11 // pred_check
          %p480 = pneg %p250
        $region46: #{tpu_custom_call.1} parent=11 // pred_check_branch
          %482 = sbr.rel (%p480) target = $region48
        $region47: #{tpu_custom_call.1} parent=11 // pred_region
          %s484 = ssub.s32 512, 512
          %485 = vsyncadd [#allocation12], %s484
          %s486 = sshll.u32 [#allocation13], 4
          %s487 = int_to_ptr.vmem [resolvable:$true] %s486
          %492 = dma.hbm_to_vmem [thread:$0]  %s9, 512, %s487, [#allocation12], 128, 128, 8
        $region48: #{tpu_custom_call.1} parent=11 // pred_fallthru
          _
        // Predicated region
        $region49: #{tpu_custom_call.1} parent=11 // pred_check
          %p493 = pneg %p271
        $region50: #{tpu_custom_call.1} parent=11 // pred_check_branch
          %495 = sbr.rel (%p493) target = $region52
        $region51: #{tpu_custom_call.1} parent=11 // pred_region
          _
        $region52: #{tpu_custom_call.1} parent=11 // pred_fallthru
          _
        // Predicated region
        $region53: #{tpu_custom_call.1} parent=11 // pred_check
          %p496 = pneg %p292
        $region54: #{tpu_custom_call.1} parent=11 // pred_check_branch
          %498 = sbr.rel (%p496) target = $region56
        $region55: #{tpu_custom_call.1} parent=11 // pred_region
          %s500 = ssub.s32 512, 512
          %501 = vsyncadd [#allocation15], %s500
          %s502 = sshll.u32 [#allocation14], 4
          %s503 = int_to_ptr.vmem [resolvable:$true] %s502
          %508 = dma.hbm_to_vmem [thread:$0]  %s11, 512, %s503, [#allocation15], 128, 128, 8
        $region56: #{tpu_custom_call.1} parent=11 // pred_fallthru
          _
        // Predicated region
        $region57: #{tpu_custom_call.1} parent=11 // pred_check
          %p509 = pneg %p313
        $region58: #{tpu_custom_call.1} parent=11 // pred_check_branch
          %511 = sbr.rel (%p509) target = $region60
        $region59: #{tpu_custom_call.1} parent=11 // pred_region
          _
        $region60: #{tpu_custom_call.1} parent=11 // pred_fallthru
          _
      $region12: #{tpu_custom_call.1} parent=5 // pred_fallthru
        _
      %p512 = scmp.lt.s32.totalorder %s35, 2
      // Predicated region
      $region61: #{tpu_custom_call.1} parent=5 // pred_check
        %p513 = pneg %p512
      $region62: #{tpu_custom_call.1} parent=5 // pred_check_branch
        %515 = sbr.rel (%p513) target = $region64
      $region63: #{tpu_custom_call.1} parent=5 // pred_region
        // Predicated region
        $region65: #{tpu_custom_call.1} parent=63 // pred_check
          %p516 = pneg %p55
        $region66: #{tpu_custom_call.1} parent=63 // pred_check_branch
          %518 = sbr.rel (%p516) target = $region68
        $region67: #{tpu_custom_call.1} parent=63 // pred_region
          %s519 = sand.u32 %s45, 1
          %s520 = scalar_lea.sflag [#allocation3], %s519
          %s521 = sand.u32 %s45, 1
          %s522 = smul.addr %s521, 8
          %s523 = scalar_lea.vmem [#allocation2], %s522
          %s525 = ssub.s32 128, 128
          %526 = vsyncadd %s520, %s525
          %s527 = smul.addr %s35, 128
          %s528 = scalar_lea.hbm %s0, %s527
          %s530 = sshll.u32 %s523, 4
          %s531 = int_to_ptr.vmem [resolvable:$true] %s530
          %533 = dma.hbm_to_vmem [thread:$0]  %s528, 128, %s531, %s520
        $region68: #{tpu_custom_call.1} parent=63 // pred_fallthru
          _
      $region64: #{tpu_custom_call.1} parent=5 // pred_fallthru
        _
      %p534 = scmp.le.s32.totalorder 1, %s35
      %p535 = scmp.lt.s32.totalorder %s35, 3
      %p536 = pnand %p534, %p535
      %p537 = pneg %p536
      // Predicated region
      $region69: #{tpu_custom_call.1} parent=5 // pred_check
        _
      $region70: #{tpu_custom_call.1} parent=5 // pred_check_branch
        %539 = sbr.rel (%p536) target = $region72
      $region71: #{tpu_custom_call.1} parent=5 // pred_region
        %s540 = ssub.s32 %s35, 1
        %s541 = sand.u32 %s48, 1
        %s542 = scalar_lea.sflag [#allocation3], %s541
        %s543 = sand.u32 %s48, 1
        %s544 = smul.addr %s543, 8
        %s545 = scalar_lea.vmem [#allocation2], %s544
        // Predicated region
        $region73: #{tpu_custom_call.1} parent=71 // pred_check
          %p546 = pneg %p61
        $region74: #{tpu_custom_call.1} parent=71 // pred_check_branch
          %548 = sbr.rel (%p546) target = $region76
        $region75: #{tpu_custom_call.1} parent=71 // pred_region
          %549 = dma.done %s542, 128
        $region76: #{tpu_custom_call.1} parent=71 // pred_fallthru
          _
        // Predicated region
        $region77: #{tpu_custom_call.1} parent=71 // pred_check
          %p550 = pneg %p82
        $region78: #{tpu_custom_call.1} parent=71 // pred_check_branch
          %552 = sbr.rel (%p550) target = $region80
        $region79: #{tpu_custom_call.1} parent=71 // pred_region
          %553 = dma.done [#allocation6], 256
        $region80: #{tpu_custom_call.1} parent=71 // pred_fallthru
          _
        // Predicated region
        $region81: #{tpu_custom_call.1} parent=71 // pred_check
          %p554 = pneg %p103
        $region82: #{tpu_custom_call.1} parent=71 // pred_check_branch
          %556 = sbr.rel (%p554) target = $region84
        $region83: #{tpu_custom_call.1} parent=71 // pred_region
          %557 = dma.done [#allocation6], 512
        $region84: #{tpu_custom_call.1} parent=71 // pred_fallthru
          _
        // Predicated region
        $region85: #{tpu_custom_call.1} parent=71 // pred_check
          %p558 = pneg %p145
        $region86: #{tpu_custom_call.1} parent=71 // pred_check_branch
          %560 = sbr.rel (%p558) target = $region88
        $region87: #{tpu_custom_call.1} parent=71 // pred_region
          %561 = dma.done [#allocation9], 256
        $region88: #{tpu_custom_call.1} parent=71 // pred_fallthru
          _
        // Predicated region
        $region89: #{tpu_custom_call.1} parent=71 // pred_check
          %p562 = pneg %p166
        $region90: #{tpu_custom_call.1} parent=71 // pred_check_branch
          %564 = sbr.rel (%p562) target = $region92
        $region91: #{tpu_custom_call.1} parent=71 // pred_region
          %565 = dma.done [#allocation9], 512
        $region92: #{tpu_custom_call.1} parent=71 // pred_fallthru
          _
        // Predicated region
        $region93: #{tpu_custom_call.1} parent=71 // pred_check
          %p566 = pneg %p208
        $region94: #{tpu_custom_call.1} parent=71 // pred_check_branch
          %568 = sbr.rel (%p566) target = $region96
        $region95: #{tpu_custom_call.1} parent=71 // pred_region
          %569 = dma.done [#allocation12], 512
        $region96: #{tpu_custom_call.1} parent=71 // pred_fallthru
          _
        // Predicated region
        $region97: #{tpu_custom_call.1} parent=71 // pred_check
          %p570 = pneg %p250
        $region98: #{tpu_custom_call.1} parent=71 // pred_check_branch
          %572 = sbr.rel (%p570) target = $region100
        $region99: #{tpu_custom_call.1} parent=71 // pred_region
          %573 = dma.done [#allocation12], 512
        $region100: #{tpu_custom_call.1} parent=71 // pred_fallthru
          _
        // Predicated region
        $region101: #{tpu_custom_call.1} parent=71 // pred_check
          %p574 = pneg %p292
        $region102: #{tpu_custom_call.1} parent=71 // pred_check_branch
          %576 = sbr.rel (%p574) target = $region104
        $region103: #{tpu_custom_call.1} parent=71 // pred_region
          %577 = dma.done [#allocation15], 512
        $region104: #{tpu_custom_call.1} parent=71 // pred_fallthru
          _
        %s578 = sand.u32 %s48, 1
        %s579 = scalar_lea.sflag [#allocation3], %s578
        %s580 = sand.u32 %s48, 1
        %s581 = smul.addr %s580, 8
        %s582 = scalar_lea.vmem [#allocation2], %s581
        %p583 = pneg %p61
        %p584 = pneg %p58
        %p585 = pneg %p82
        %p586 = pneg %p79
        %p587 = pneg %p103
        %p588 = pneg %p100
        %p589 = pneg %p124
        %p590 = pneg %p121
        %p591 = pneg %p145
        %p592 = pneg %p142
        %p593 = pneg %p166
        %p594 = pneg %p163
        %p595 = pneg %p187
        %p596 = pneg %p184
        %p597 = pneg %p208
        %p598 = pneg %p205
        %p599 = pneg %p229
        %p600 = pneg %p226
        %p601 = pneg %p250
        %p602 = pneg %p247
        %p603 = pneg %p271
        %p604 = pneg %p268
        %p605 = pneg %p292
        %p606 = pneg %p289
        %p607 = pneg %p313
        %p608 = pneg %p310
        %p609 = pneg %p339
        %p610 = pneg %p336
        %s611 = sand.u32 %s326, 1
        %s612 = scalar_lea.sflag [#allocation4], %s611
        %s613 = sand.u32 %s326, 1
        %s614 = smul.addr %s613, 8
        %s615 = scalar_lea.vmem [#allocation16], %s614
        %p616 = pneg %p365
        %p617 = pneg %p362
        %s618 = sand.u32 %s40, 1
        %s619 = scalar_lea.sflag [#allocation18], %s618
        %s620 = sand.u32 %s352, 1
        %s621 = scalar_lea.vmem [#allocation17], %s620
        %p622 = pneg %p391
        %p623 = pneg %p388
        %s624 = sand.u32 %s40, 1
        %s625 = scalar_lea.sflag [#allocation18], %s624
        %s626 = sand.u32 %s378, 1
        %s627 = smul.addr %s626, 8
        %s628 = scalar_lea.vmem [#allocation19], %s627
        %v629 = vld [vmem:[%s545] sm:$0xff]
        %v630 = vld [vmem:[#allocation7] sm:$0xff]
        %v631 = vld [vmem:[#allocation7 + $0x8] sm:$0xff]
        %v632 = vld [vmem:[#allocation7 + $0x10] sm:$0xff]
        %v633 = vld [vmem:[#allocation7 + $0x18] sm:$0xff]
        %v634 = vld [vmem:[%s3] sm:$0x1]
        %v636 = vlaneseq
        %v637 = vshrl.u32 %v636, 7
        %v638 = vsub.s32 0, %v637
        %v639 = vrot.slane %v634, %v638
        %vm641 = vcmask 261120
        %v643 = vsel %vm641, %v629, 0
        %645 = vmatprep.subr.mxu0 0.0
        %646 = vmatpush1.msra.mxu0 0.0
        %647 = vmatprep.subr.mxu0 0.0
        %648 = vmatpush1.msra.mxu0 0.0
        %649 = vmatprep.subr.mxu0 0.0
        %650 = vmatpush1.msra.mxu0 0.0
        %651 = vmatprep.subr.mxu0 0.0
        %652 = vmatpush1.msra.mxu0 0.0
        %653 = vmatprep.subr.mxu0 0.0
        %654 = vmatpush1.msra.mxu0 0.0
        %655 = vmatprep.subr.mxu0 0.0
        %656 = vmatpush1.msra.mxu0 0.0
        %657 = vmatprep.subr.mxu0 0.0
        %658 = vmatpush1.msra.mxu0 0.0
        %659 = vmatprep.subr.mxu0 0.0
        %660 = vmatpush1.msra.mxu0 0.0
        %661 = vmatprep.subr.mxu0 0.0
        %662 = vmatpush1.msra.mxu0 0.0
        %663 = vmatprep.subr.mxu0 0.0
        %664 = vmatpush1.msra.mxu0 0.0
        %665 = vmatprep.subr.mxu0 0.0
        %666 = vmatpush1.msra.mxu0 0.0
        %667 = vmatprep.subr.mxu0 0.0
        %668 = vmatpush1.msra.mxu0 0.0
        %669 = vmatprep.subr.mxu0 0.0
        %670 = vmatpush1.msra.mxu0 %v633
        %671 = vmatprep.subr.mxu0 0.0
        %672 = vmatpush1.msra.mxu0 %v632
        %673 = vmatprep.subr.mxu0 0.0
        %674 = vmatpush1.msra.mxu0 %v631
        %675 = vmatprep.subr.mxu0 0.0
        %676 = vmatpush1.msra.mxu0 %v630
        %677 = vmatprep.subr.mxu0 0.0
        %678 = vmatpush2.msra.mxu0 0.0
        %679 = vmatprep.subr.mxu0 0.0
        %680 = vmatpush2.msra.mxu0 0.0
        %681 = vmatprep.subr.mxu0 0.0
        %682 = vmatpush2.msra.mxu0 0.0
        %683 = vmatprep.subr.mxu0 0.0
        %684 = vmatpush2.msra.mxu0 0.0
        %685 = vmatprep.subr.mxu0 0.0
        %686 = vmatpush2.msra.mxu0 0.0
        %687 = vmatprep.subr.mxu0 0.0
        %688 = vmatpush2.msra.mxu0 0.0
        %689 = vmatprep.subr.mxu0 0.0
        %690 = vmatpush2.msra.mxu0 0.0
        %691 = vmatprep.subr.mxu0 0.0
        %692 = vmatpush2.msra.mxu0 0.0
        %693 = vmatprep.subr.mxu0 0.0
        %694 = vmatpush2.msra.mxu0 0.0
        %695 = vmatprep.subr.mxu0 0.0
        %696 = vmatpush2.msra.mxu0 0.0
        %697 = vmatprep.subr.mxu0 0.0
        %698 = vmatpush2.msra.mxu0 0.0
        %699 = vmatprep.subr.mxu0 0.0
        %700 = vmatpush2.msra.mxu0 0.0
        %701 = vmatprep.subr.mxu0 0.0
        %702 = vmatpush2.msra.mxu0 0.0
        %703 = vmatprep.subr.mxu0 0.0
        %704 = vmatpush2.msra.mxu0 0.0
        %705 = vmatprep.subr.mxu0 0.0
        %706 = vmatpush2.msra.mxu0 0.0
        %707 = vmatprep.subr.mxu0 0.0
        %708 = vmatpush2.msra.mxu0 0.0
        %709 = vmatprep.mubr.f32.mxu0 0.0
        %710 = vmatmul.mubr.f32.gmra.mxu0 %v643
        %v711 = vpop.f32.mrf.mxu0
        %v712 = vadd.f32 %v639, %v711
        %v713 = vpop.f32.mrf.mxu0
        %714 = vdwg.mxu0
        %v715 = vld [vmem:[#allocation8] sm:$0xff]
        %v716 = vld [vmem:[#allocation8 + $0x8] sm:$0x1]
        %v718 = vsel %vm641, %v715, 0
        %v721 = vsel %vm641, %v716, 0
        %v724 = vsel %vm641, %v712, 0
        %726 = vmatprep.subr.mxu0 0.0
        %727 = vmatpush1.xpose.msra.mxu0 0.0
        %728 = vmatprep.subr.mxu0 0.0
        %729 = vmatpush1.xpose.msra.mxu0 0.0
        %730 = vmatprep.subr.mxu0 0.0
        %731 = vmatpush1.xpose.msra.mxu0 0.0
        %732 = vmatprep.subr.mxu0 0.0
        %733 = vmatpush1.xpose.msra.mxu0 0.0
        %734 = vmatprep.subr.mxu0 0.0
        %735 = vmatpush1.xpose.msra.mxu0 0.0
        %736 = vmatprep.subr.mxu0 0.0
        %737 = vmatpush1.xpose.msra.mxu0 0.0
        %738 = vmatprep.subr.mxu0 0.0
        %739 = vmatpush1.xpose.msra.mxu0 0.0
        %740 = vmatprep.subr.mxu0 0.0
        %741 = vmatpush1.xpose.msra.mxu0 0.0
        %742 = vmatprep.subr.mxu0 0.0
        %743 = vmatpush1.xpose.msra.mxu0 0.0
        %744 = vmatprep.subr.mxu0 0.0
        %745 = vmatpush1.xpose.msra.mxu0 0.0
        %746 = vmatprep.subr.mxu0 0.0
        %747 = vmatpush1.xpose.msra.mxu0 0.0
        %748 = vmatprep.subr.mxu0 0.0
        %749 = vmatpush1.xpose.msra.mxu0 0.0
        %750 = vmatprep.subr.mxu0 0.0
        %751 = vmatpush1.xpose.msra.mxu0 0.0
        %752 = vmatprep.subr.mxu0 0.0
        %753 = vmatpush1.xpose.msra.mxu0 0.0
        %754 = vmatprep.subr.mxu0 0.0
        %755 = vmatpush1.xpose.msra.mxu0 0.0
        %756 = vmatprep.subr.mxu0 0.0
        %757 = vmatpush1.xpose.msra.mxu0 %v724
        %758 = vmatprep.subr.mxu0 0.0
        %759 = vmatpush2.xpose.msra.mxu0 0.0
        %760 = vmatprep.subr.mxu0 0.0
        %761 = vmatpush2.xpose.msra.mxu0 0.0
        %762 = vmatprep.subr.mxu0 0.0
        %763 = vmatpush2.xpose.msra.mxu0 0.0
        %764 = vmatprep.subr.mxu0 0.0
        %765 = vmatpush2.xpose.msra.mxu0 0.0
        %766 = vmatprep.subr.mxu0 0.0
        %767 = vmatpush2.xpose.msra.mxu0 0.0
        %768 = vmatprep.subr.mxu0 0.0
        %769 = vmatpush2.xpose.msra.mxu0 0.0
        %770 = vmatprep.subr.mxu0 0.0
        %771 = vmatpush2.xpose.msra.mxu0 0.0
        %772 = vmatprep.subr.mxu0 0.0
        %773 = vmatpush2.xpose.msra.mxu0 0.0
        %774 = vmatprep.subr.mxu0 0.0
        %775 = vmatpush2.xpose.msra.mxu0 0.0
        %776 = vmatprep.subr.mxu0 0.0
        %777 = vmatpush2.xpose.msra.mxu0 0.0
        %778 = vmatprep.subr.mxu0 0.0
        %779 = vmatpush2.xpose.msra.mxu0 0.0
        %780 = vmatprep.subr.mxu0 0.0
        %781 = vmatpush2.xpose.msra.mxu0 0.0
        %782 = vmatprep.subr.mxu0 0.0
        %783 = vmatpush2.xpose.msra.mxu0 0.0
        %784 = vmatprep.subr.mxu0 0.0
        %785 = vmatpush2.xpose.msra.mxu0 0.0
        %786 = vmatprep.subr.mxu0 0.0
        %787 = vmatpush2.xpose.msra.mxu0 0.0
        %788 = vmatprep.subr.mxu0 0.0
        %789 = vmatpush2.xpose.msra.mxu0 0.0
        %790 = vmatprep.mubr.f32.mxu0 0.0
        %791 = vmatmul.mubr.f32.gmra.mxu0 %v718
        %v792 = vpop.f32.mrf.mxu0
        %v793 = vadd.f32 0.0, %v792
        %v794 = vpop.f32.mrf.mxu0
        %795 = vmatprep.mubr.f32.mxu0 0.0
        %796 = vmatmul.mubr.f32.gmra.mxu0 %v721
        %v797 = vpop.f32.mrf.mxu0
        %v798 = vadd.f32 0.0, %v797
        %v799 = vpop.f32.mrf.mxu0
        %800 = vdwg.mxu0
        %vm801 = vcmask 64512
        %v802 = vsel %vm801, %v793, -inf
        %803 = vmax.xlane.f32.xlu0 %v802
        %v804 = vpop.xlane.xlu0 %803
        %vm805 = vcmask 57344
        %v806 = vsel %vm805, %v798, -inf
        %807 = vmax.xlane.f32.xlu0 %v806
        %v808 = vpop.xlane.xlu0 %807
        %v809 = vsub.f32 %v793, %v804
        %v810 = vsub.f32 %v798, %v808
        %v811 = vmul.f32 %v809, 1.442695
        %v812 = vpow.pop %v811
        %v813 = vmul.f32 %v810, 1.442695
        %v814 = vpow.pop %v813
        %v815 = vsel %vm801, %v812, 0.0
        %816 = vadd.xlane.f32.xlu0 %v815
        %v817 = vpop.xlane.xlu0 %816
        %v818 = vsel %vm805, %v814, 0.0
        %819 = vadd.xlane.f32.xlu0 %v818
        %v820 = vpop.xlane.xlu0 %819
        %v821 = vrcp.pop %v817
        %v822 = vmul.f32 %v812, %v821
        %v823 = vrcp.pop %v820
        %v824 = vmul.f32 %v814, %v823
        %v826 = vsel %vm801, %v822, 0
        %v829 = vsel %vm801, %v824, 0
        %831 = vmatprep.subr.mxu0 0.0
        %832 = vmatpush1.msra.mxu0 0.0
        %833 = vmatprep.subr.mxu0 0.0
        %834 = vmatpush1.msra.mxu0 0.0
        %835 = vmatprep.subr.mxu0 0.0
        %836 = vmatpush1.msra.mxu0 0.0
        %837 = vmatprep.subr.mxu0 0.0
        %838 = vmatpush1.msra.mxu0 0.0
        %839 = vmatprep.subr.mxu0 0.0
        %840 = vmatpush1.msra.mxu0 0.0
        %841 = vmatprep.subr.mxu0 0.0
        %842 = vmatpush1.msra.mxu0 0.0
        %843 = vmatprep.subr.mxu0 0.0
        %844 = vmatpush1.msra.mxu0 0.0
        %845 = vmatprep.subr.mxu0 0.0
        %846 = vmatpush1.msra.mxu0 0.0
        %847 = vmatprep.subr.mxu0 0.0
        %848 = vmatpush1.msra.mxu0 0.0
        %849 = vmatprep.subr.mxu0 0.0
        %850 = vmatpush1.msra.mxu0 0.0
        %851 = vmatprep.subr.mxu0 0.0
        %852 = vmatpush1.msra.mxu0 0.0
        %853 = vmatprep.subr.mxu0 0.0
        %854 = vmatpush1.msra.mxu0 0.0
        %855 = vmatprep.subr.mxu0 0.0
        %856 = vmatpush1.msra.mxu0 0.0
        %857 = vmatprep.subr.mxu0 0.0
        %858 = vmatpush1.msra.mxu0 0.0
        %859 = vmatprep.subr.mxu0 0.0
        %860 = vmatpush1.msra.mxu0 0.0
        %861 = vmatprep.subr.mxu0 0.0
        %862 = vmatpush1.msra.mxu0 %v712
        %863 = vmatprep.subr.mxu0 0.0
        %864 = vmatpush2.msra.mxu0 0.0
        %865 = vmatprep.subr.mxu0 0.0
        %866 = vmatpush2.msra.mxu0 0.0
        %867 = vmatprep.subr.mxu0 0.0
        %868 = vmatpush2.msra.mxu0 0.0
        %869 = vmatprep.subr.mxu0 0.0
        %870 = vmatpush2.msra.mxu0 0.0
        %871 = vmatprep.subr.mxu0 0.0
        %872 = vmatpush2.msra.mxu0 0.0
        %873 = vmatprep.subr.mxu0 0.0
        %874 = vmatpush2.msra.mxu0 0.0
        %875 = vmatprep.subr.mxu0 0.0
        %876 = vmatpush2.msra.mxu0 0.0
        %877 = vmatprep.subr.mxu0 0.0
        %878 = vmatpush2.msra.mxu0 0.0
        %879 = vmatprep.subr.mxu0 0.0
        %880 = vmatpush2.msra.mxu0 0.0
        %881 = vmatprep.subr.mxu0 0.0
        %882 = vmatpush2.msra.mxu0 0.0
        %883 = vmatprep.subr.mxu0 0.0
        %884 = vmatpush2.msra.mxu0 0.0
        %885 = vmatprep.subr.mxu0 0.0
        %886 = vmatpush2.msra.mxu0 0.0
        %887 = vmatprep.subr.mxu0 0.0
        %888 = vmatpush2.msra.mxu0 0.0
        %889 = vmatprep.subr.mxu0 0.0
        %890 = vmatpush2.msra.mxu0 0.0
        %891 = vmatprep.subr.mxu0 0.0
        %892 = vmatpush2.msra.mxu0 0.0
        %893 = vmatprep.subr.mxu0 0.0
        %894 = vmatpush2.msra.mxu0 0.0
        %895 = vmatprep.mubr.f32.mxu0 0.0
        %896 = vmatmul.mubr.f32.gmra.mxu0 %v826
        %v897 = vpop.f32.mrf.mxu0
        %v898 = vadd.f32 0.0, %v897
        %v899 = vpop.f32.mrf.mxu0
        %900 = vmatprep.mubr.f32.mxu0 0.0
        %901 = vmatmul.mubr.f32.gmra.mxu0 %v829
        %v902 = vpop.f32.mrf.mxu0
        %v903 = vadd.f32 0.0, %v902
        %v904 = vpop.f32.mrf.mxu0
        %905 = vdwg.mxu0
        %v906 = vld [vmem:[#allocation10] sm:$0xff]
        %v907 = vld [vmem:[#allocation10 + $0x8] sm:$0xff]
        %v908 = vld [vmem:[#allocation10 + $0x10] sm:$0xff]
        %v909 = vld [vmem:[#allocation10 + $0x18] sm:$0xff]
        %v911 = vsel %vm641, %v898, 0
        %v914 = vsel %vm641, %v903, 0
        %916 = vmatprep.subr.mxu0 0.0
        %917 = vmatpush1.msra.mxu0 0.0
        %918 = vmatprep.subr.mxu0 0.0
        %919 = vmatpush1.msra.mxu0 0.0
        %920 = vmatprep.subr.mxu0 0.0
        %921 = vmatpush1.msra.mxu0 0.0
        %922 = vmatprep.subr.mxu0 0.0
        %923 = vmatpush1.msra.mxu0 0.0
        %924 = vmatprep.subr.mxu0 0.0
        %925 = vmatpush1.msra.mxu0 0.0
        %926 = vmatprep.subr.mxu0 0.0
        %927 = vmatpush1.msra.mxu0 0.0
        %928 = vmatprep.subr.mxu0 0.0
        %929 = vmatpush1.msra.mxu0 0.0
        %930 = vmatprep.subr.mxu0 0.0
        %931 = vmatpush1.msra.mxu0 0.0
        %932 = vmatprep.subr.mxu0 0.0
        %933 = vmatpush1.msra.mxu0 0.0
        %934 = vmatprep.subr.mxu0 0.0
        %935 = vmatpush1.msra.mxu0 0.0
        %936 = vmatprep.subr.mxu0 0.0
        %937 = vmatpush1.msra.mxu0 0.0
        %938 = vmatprep.subr.mxu0 0.0
        %939 = vmatpush1.msra.mxu0 0.0
        %940 = vmatprep.subr.mxu0 0.0
        %941 = vmatpush1.msra.mxu0 %v909
        %942 = vmatprep.subr.mxu0 0.0
        %943 = vmatpush1.msra.mxu0 %v908
        %944 = vmatprep.subr.mxu0 0.0
        %945 = vmatpush1.msra.mxu0 %v907
        %946 = vmatprep.subr.mxu0 0.0
        %947 = vmatpush1.msra.mxu0 %v906
        %948 = vmatprep.subr.mxu0 0.0
        %949 = vmatpush2.msra.mxu0 0.0
        %950 = vmatprep.subr.mxu0 0.0
        %951 = vmatpush2.msra.mxu0 0.0
        %952 = vmatprep.subr.mxu0 0.0
        %953 = vmatpush2.msra.mxu0 0.0
        %954 = vmatprep.subr.mxu0 0.0
        %955 = vmatpush2.msra.mxu0 0.0
        %956 = vmatprep.subr.mxu0 0.0
        %957 = vmatpush2.msra.mxu0 0.0
        %958 = vmatprep.subr.mxu0 0.0
        %959 = vmatpush2.msra.mxu0 0.0
        %960 = vmatprep.subr.mxu0 0.0
        %961 = vmatpush2.msra.mxu0 0.0
        %962 = vmatprep.subr.mxu0 0.0
        %963 = vmatpush2.msra.mxu0 0.0
        %964 = vmatprep.subr.mxu0 0.0
        %965 = vmatpush2.msra.mxu0 0.0
        %966 = vmatprep.subr.mxu0 0.0
        %967 = vmatpush2.msra.mxu0 0.0
        %968 = vmatprep.subr.mxu0 0.0
        %969 = vmatpush2.msra.mxu0 0.0
        %970 = vmatprep.subr.mxu0 0.0
        %971 = vmatpush2.msra.mxu0 0.0
        %972 = vmatprep.subr.mxu0 0.0
        %973 = vmatpush2.msra.mxu0 0.0
        %974 = vmatprep.subr.mxu0 0.0
        %975 = vmatpush2.msra.mxu0 0.0
        %976 = vmatprep.subr.mxu0 0.0
        %977 = vmatpush2.msra.mxu0 0.0
        %978 = vmatprep.subr.mxu0 0.0
        %979 = vmatpush2.msra.mxu0 0.0
        %980 = vmatprep.mubr.f32.mxu0 0.0
        %981 = vmatmul.mubr.f32.gmra.mxu0 %v911
        %v982 = vpop.f32.mrf.mxu0
        %v983 = vadd.f32 0.0, %v982
        %v984 = vpop.f32.mrf.mxu0
        %985 = vmatprep.mubr.f32.mxu0 0.0
        %986 = vmatmul.mubr.f32.gmra.mxu0 %v914
        %v987 = vpop.f32.mrf.mxu0
        %v988 = vadd.f32 0.0, %v987
        %v989 = vpop.f32.mrf.mxu0
        %990 = vdwg.mxu0
        %v991 = vld [vmem:[#allocation5] sm:$0xff]
        %v992 = vld [vmem:[#allocation5 + $0x8] sm:$0x1]
        %v993 = vld [vmem:[%s6] sm:$0x1]
        %v995 = vlaneseq
        %v996 = vshrl.u32 %v995, 7
        %v997 = vsub.s32 0, %v996
        %v998 = vrot.slane %v993, %v997
        %vm1000 = vcmask 72704
        %v1002 = vsel %vm1000, %v991, 0
        %v1005 = vsel %vm1000, %v992, 0
        %vm1007 = vcmask 1040384
        %v1009 = vsel %vm1007, %v988, 0
        %1011 = vmatprep.subr.mxu0 0.0
        %1012 = vmatpush1.msra.mxu0 0.0
        %1013 = vmatprep.subr.mxu0 0.0
        %1014 = vmatpush1.msra.mxu0 0.0
        %1015 = vmatprep.subr.mxu0 0.0
        %1016 = vmatpush1.msra.mxu0 0.0
        %1017 = vmatprep.subr.mxu0 0.0
        %1018 = vmatpush1.msra.mxu0 0.0
        %1019 = vmatprep.subr.mxu0 0.0
        %1020 = vmatpush1.msra.mxu0 0.0
        %1021 = vmatprep.subr.mxu0 0.0
        %1022 = vmatpush1.msra.mxu0 0.0
        %1023 = vmatprep.subr.mxu0 0.0
        %1024 = vmatpush1.msra.mxu0 0.0
        %1025 = vmatprep.subr.mxu0 0.0
        %1026 = vmatpush1.msra.mxu0 0.0
        %1027 = vmatprep.subr.mxu0 0.0
        %1028 = vmatpush1.msra.mxu0 0.0
        %1029 = vmatprep.subr.mxu0 0.0
        %1030 = vmatpush1.msra.mxu0 0.0
        %1031 = vmatprep.subr.mxu0 0.0
        %1032 = vmatpush1.msra.mxu0 0.0
        %1033 = vmatprep.subr.mxu0 0.0
        %1034 = vmatpush1.msra.mxu0 0.0
        %1035 = vmatprep.subr.mxu0 0.0
        %1036 = vmatpush1.msra.mxu0 0.0
        %1037 = vmatprep.subr.mxu0 0.0
        %1038 = vmatpush1.msra.mxu0 0.0
        %1039 = vmatprep.subr.mxu0 0.0
        %1040 = vmatpush1.msra.mxu0 %v1009
        %1041 = vmatprep.subr.mxu0 0.0
        %1042 = vmatpush1.msra.mxu0 %v983
        %1043 = vmatprep.subr.mxu0 0.0
        %1044 = vmatpush2.msra.mxu0 0.0
        %1045 = vmatprep.subr.mxu0 0.0
        %1046 = vmatpush2.msra.mxu0 0.0
        %1047 = vmatprep.subr.mxu0 0.0
        %1048 = vmatpush2.msra.mxu0 0.0
        %1049 = vmatprep.subr.mxu0 0.0
        %1050 = vmatpush2.msra.mxu0 0.0
        %1051 = vmatprep.subr.mxu0 0.0
        %1052 = vmatpush2.msra.mxu0 0.0
        %1053 = vmatprep.subr.mxu0 0.0
        %1054 = vmatpush2.msra.mxu0 0.0
        %1055 = vmatprep.subr.mxu0 0.0
        %1056 = vmatpush2.msra.mxu0 0.0
        %1057 = vmatprep.subr.mxu0 0.0
        %1058 = vmatpush2.msra.mxu0 0.0
        %1059 = vmatprep.subr.mxu0 0.0
        %1060 = vmatpush2.msra.mxu0 0.0
        %1061 = vmatprep.subr.mxu0 0.0
        %1062 = vmatpush2.msra.mxu0 0.0
        %1063 = vmatprep.subr.mxu0 0.0
        %1064 = vmatpush2.msra.mxu0 0.0
        %1065 = vmatprep.subr.mxu0 0.0
        %1066 = vmatpush2.msra.mxu0 0.0
        %1067 = vmatprep.subr.mxu0 0.0
        %1068 = vmatpush2.msra.mxu0 0.0
        %1069 = vmatprep.subr.mxu0 0.0
        %1070 = vmatpush2.msra.mxu0 0.0
        %1071 = vmatprep.subr.mxu0 0.0
        %1072 = vmatpush2.msra.mxu0 0.0
        %1073 = vmatprep.subr.mxu0 0.0
        %1074 = vmatpush2.msra.mxu0 0.0
        %1075 = vmatprep.mubr.f32.mxu0 0.0
        %1076 = vmatmul.mubr.f32.gmra.mxu0 %v1002
        %v1077 = vpop.f32.mrf.mxu0
        %v1078 = vadd.f32 %v998, %v1077
        %v1079 = vpop.f32.mrf.mxu0
        %1080 = vmatprep.mubr.f32.mxu0 0.0
        %1081 = vmatmul.mubr.f32.gmra.mxu0 %v1005
        %v1082 = vpop.f32.mrf.mxu0
        %v1083 = vadd.f32 %v998, %v1082
        %v1084 = vpop.f32.mrf.mxu0
        %1085 = vdwg.mxu0
        %v1087 = vsel %vm641, %v1078, 0
        %v1090 = vsel %vm641, %v1083, 0
        %1092 = vmatprep.subr.mxu0 0.0
        %1093 = vmatpush1.xpose.msra.mxu0 0.0
        %1094 = vmatprep.subr.mxu0 0.0
        %1095 = vmatpush1.xpose.msra.mxu0 0.0
        %1096 = vmatprep.subr.mxu0 0.0
        %1097 = vmatpush1.xpose.msra.mxu0 0.0
        %1098 = vmatprep.subr.mxu0 0.0
        %1099 = vmatpush1.xpose.msra.mxu0 0.0
        %1100 = vmatprep.subr.mxu0 0.0
        %1101 = vmatpush1.xpose.msra.mxu0 0.0
        %1102 = vmatprep.subr.mxu0 0.0
        %1103 = vmatpush1.xpose.msra.mxu0 0.0
        %1104 = vmatprep.subr.mxu0 0.0
        %1105 = vmatpush1.xpose.msra.mxu0 0.0
        %1106 = vmatprep.subr.mxu0 0.0
        %1107 = vmatpush1.xpose.msra.mxu0 0.0
        %1108 = vmatprep.subr.mxu0 0.0
        %1109 = vmatpush1.xpose.msra.mxu0 0.0
        %1110 = vmatprep.subr.mxu0 0.0
        %1111 = vmatpush1.xpose.msra.mxu0 0.0
        %1112 = vmatprep.subr.mxu0 0.0
        %1113 = vmatpush1.xpose.msra.mxu0 0.0
        %1114 = vmatprep.subr.mxu0 0.0
        %1115 = vmatpush1.xpose.msra.mxu0 0.0
        %1116 = vmatprep.subr.mxu0 0.0
        %1117 = vmatpush1.xpose.msra.mxu0 0.0
        %1118 = vmatprep.subr.mxu0 0.0
        %1119 = vmatpush1.xpose.msra.mxu0 0.0
        %1120 = vmatprep.subr.mxu0 0.0
        %1121 = vmatpush1.xpose.msra.mxu0 %v1090
        %1122 = vmatprep.subr.mxu0 0.0
        %1123 = vmatpush1.xpose.msra.mxu0 %v1087
        %1124 = vmatprep.subr.mxu0 0.0
        %1125 = vmatpush2.xpose.msra.mxu0 0.0
        %1126 = vmatprep.subr.mxu0 0.0
        %1127 = vmatpush2.xpose.msra.mxu0 0.0
        %1128 = vmatprep.subr.mxu0 0.0
        %1129 = vmatpush2.xpose.msra.mxu0 0.0
        %1130 = vmatprep.subr.mxu0 0.0
        %1131 = vmatpush2.xpose.msra.mxu0 0.0
        %1132 = vmatprep.subr.mxu0 0.0
        %1133 = vmatpush2.xpose.msra.mxu0 0.0
        %1134 = vmatprep.subr.mxu0 0.0
        %1135 = vmatpush2.xpose.msra.mxu0 0.0
        %1136 = vmatprep.subr.mxu0 0.0
        %1137 = vmatpush2.xpose.msra.mxu0 0.0
        %1138 = vmatprep.subr.mxu0 0.0
        %1139 = vmatpush2.xpose.msra.mxu0 0.0
        %1140 = vmatprep.subr.mxu0 0.0
        %1141 = vmatpush2.xpose.msra.mxu0 0.0
        %1142 = vmatprep.subr.mxu0 0.0
        %1143 = vmatpush2.xpose.msra.mxu0 0.0
        %1144 = vmatprep.subr.mxu0 0.0
        %1145 = vmatpush2.xpose.msra.mxu0 0.0
        %1146 = vmatprep.subr.mxu0 0.0
        %1147 = vmatpush2.xpose.msra.mxu0 0.0
        %1148 = vmatprep.subr.mxu0 0.0
        %1149 = vmatpush2.xpose.msra.mxu0 0.0
        %1150 = vmatprep.subr.mxu0 0.0
        %1151 = vmatpush2.xpose.msra.mxu0 0.0
        %1152 = vmatprep.subr.mxu0 0.0
        %1153 = vmatpush2.xpose.msra.mxu0 0.0
        %1154 = vmatprep.subr.mxu0 0.0
        %1155 = vmatpush2.xpose.msra.mxu0 0.0
        %1156 = vmatprep.mubr.f32.mxu0 0.0
        %1157 = vmatmul.mubr.f32.gmra.mxu0 %v724
        %v1158 = vpop.f32.mrf.mxu0
        %v1159 = vadd.f32 0.0, %v1158
        %v1160 = vpop.f32.mrf.mxu0
        %1161 = vdwg.mxu0
        %v1162 = vsel %vm1000, %v1159, -inf
        %1163 = vmax.xlane.f32.xlu0 %v1162
        %v1164 = vpop.xlane.xlu0 %1163
        %v1165 = vsub.f32 %v1159, %v1164
        %v1166 = vmul.f32 %v1165, 1.442695
        %v1167 = vpow.pop %v1166
        %v1168 = vsel %vm1000, %v1167, 0.0
        %1169 = vadd.xlane.f32.xlu0 %v1168
        %v1170 = vpop.xlane.xlu0 %1169
        %v1171 = vrcp.pop %v1170
        %v1172 = vmul.f32 %v1167, %v1171
        %v1174 = vsel %vm1000, %v1172, 0
        %v1176 = vsel %vm1007, %v1083, 0
        %1178 = vmatprep.subr.mxu0 0.0
        %1179 = vmatpush1.msra.mxu0 0.0
        %1180 = vmatprep.subr.mxu0 0.0
        %1181 = vmatpush1.msra.mxu0 0.0
        %1182 = vmatprep.subr.mxu0 0.0
        %1183 = vmatpush1.msra.mxu0 0.0
        %1184 = vmatprep.subr.mxu0 0.0
        %1185 = vmatpush1.msra.mxu0 0.0
        %1186 = vmatprep.subr.mxu0 0.0
        %1187 = vmatpush1.msra.mxu0 0.0
        %1188 = vmatprep.subr.mxu0 0.0
        %1189 = vmatpush1.msra.mxu0 0.0
        %1190 = vmatprep.subr.mxu0 0.0
        %1191 = vmatpush1.msra.mxu0 0.0
        %1192 = vmatprep.subr.mxu0 0.0
        %1193 = vmatpush1.msra.mxu0 0.0
        %1194 = vmatprep.subr.mxu0 0.0
        %1195 = vmatpush1.msra.mxu0 0.0
        %1196 = vmatprep.subr.mxu0 0.0
        %1197 = vmatpush1.msra.mxu0 0.0
        %1198 = vmatprep.subr.mxu0 0.0
        %1199 = vmatpush1.msra.mxu0 0.0
        %1200 = vmatprep.subr.mxu0 0.0
        %1201 = vmatpush1.msra.mxu0 0.0
        %1202 = vmatprep.subr.mxu0 0.0
        %1203 = vmatpush1.msra.mxu0 0.0
        %1204 = vmatprep.subr.mxu0 0.0
        %1205 = vmatpush1.msra.mxu0 0.0
        %1206 = vmatprep.subr.mxu0 0.0
        %1207 = vmatpush1.msra.mxu0 %v1176
        %1208 = vmatprep.subr.mxu0 0.0
        %1209 = vmatpush1.msra.mxu0 %v1078
        %1210 = vmatprep.subr.mxu0 0.0
        %1211 = vmatpush2.msra.mxu0 0.0
        %1212 = vmatprep.subr.mxu0 0.0
        %1213 = vmatpush2.msra.mxu0 0.0
        %1214 = vmatprep.subr.mxu0 0.0
        %1215 = vmatpush2.msra.mxu0 0.0
        %1216 = vmatprep.subr.mxu0 0.0
        %1217 = vmatpush2.msra.mxu0 0.0
        %1218 = vmatprep.subr.mxu0 0.0
        %1219 = vmatpush2.msra.mxu0 0.0
        %1220 = vmatprep.subr.mxu0 0.0
        %1221 = vmatpush2.msra.mxu0 0.0
        %1222 = vmatprep.subr.mxu0 0.0
        %1223 = vmatpush2.msra.mxu0 0.0
        %1224 = vmatprep.subr.mxu0 0.0
        %1225 = vmatpush2.msra.mxu0 0.0
        %1226 = vmatprep.subr.mxu0 0.0
        %1227 = vmatpush2.msra.mxu0 0.0
        %1228 = vmatprep.subr.mxu0 0.0
        %1229 = vmatpush2.msra.mxu0 0.0
        %1230 = vmatprep.subr.mxu0 0.0
        %1231 = vmatpush2.msra.mxu0 0.0
        %1232 = vmatprep.subr.mxu0 0.0
        %1233 = vmatpush2.msra.mxu0 0.0
        %1234 = vmatprep.subr.mxu0 0.0
        %1235 = vmatpush2.msra.mxu0 0.0
        %1236 = vmatprep.subr.mxu0 0.0
        %1237 = vmatpush2.msra.mxu0 0.0
        %1238 = vmatprep.subr.mxu0 0.0
        %1239 = vmatpush2.msra.mxu0 0.0
        %1240 = vmatprep.subr.mxu0 0.0
        %1241 = vmatpush2.msra.mxu0 0.0
        %1242 = vmatprep.mubr.f32.mxu0 0.0
        %1243 = vmatmul.mubr.f32.gmra.mxu0 %v1174
        %v1244 = vpop.f32.mrf.mxu0
        %v1245 = vadd.f32 0.0, %v1244
        %v1246 = vpop.f32.mrf.mxu0
        %1247 = vdwg.mxu0
        %v1248 = vld [vmem:[#allocation11] sm:$0xff]
        %v1249 = vld [vmem:[#allocation11 + $0x8] sm:$0xff]
        %v1250 = vld [vmem:[#allocation11 + $0x10] sm:$0xff]
        %v1251 = vld [vmem:[#allocation11 + $0x18] sm:$0xff]
        %v1253 = vsel %vm641, %v1245, 0
        %1255 = vmatprep.subr.mxu0 0.0
        %1256 = vmatpush1.msra.mxu0 0.0
        %1257 = vmatprep.subr.mxu0 0.0
        %1258 = vmatpush1.msra.mxu0 0.0
        %1259 = vmatprep.subr.mxu0 0.0
        %1260 = vmatpush1.msra.mxu0 0.0
        %1261 = vmatprep.subr.mxu0 0.0
        %1262 = vmatpush1.msra.mxu0 0.0
        %1263 = vmatprep.subr.mxu0 0.0
        %1264 = vmatpush1.msra.mxu0 0.0
        %1265 = vmatprep.subr.mxu0 0.0
        %1266 = vmatpush1.msra.mxu0 0.0
        %1267 = vmatprep.subr.mxu0 0.0
        %1268 = vmatpush1.msra.mxu0 0.0
        %1269 = vmatprep.subr.mxu0 0.0
        %1270 = vmatpush1.msra.mxu0 0.0
        %1271 = vmatprep.subr.mxu0 0.0
        %1272 = vmatpush1.msra.mxu0 0.0
        %1273 = vmatprep.subr.mxu0 0.0
        %1274 = vmatpush1.msra.mxu0 0.0
        %1275 = vmatprep.subr.mxu0 0.0
        %1276 = vmatpush1.msra.mxu0 0.0
        %1277 = vmatprep.subr.mxu0 0.0
        %1278 = vmatpush1.msra.mxu0 0.0
        %1279 = vmatprep.subr.mxu0 0.0
        %1280 = vmatpush1.msra.mxu0 %v1251
        %1281 = vmatprep.subr.mxu0 0.0
        %1282 = vmatpush1.msra.mxu0 %v1250
        %1283 = vmatprep.subr.mxu0 0.0
        %1284 = vmatpush1.msra.mxu0 %v1249
        %1285 = vmatprep.subr.mxu0 0.0
        %1286 = vmatpush1.msra.mxu0 %v1248
        %1287 = vmatprep.subr.mxu0 0.0
        %1288 = vmatpush2.msra.mxu0 0.0
        %1289 = vmatprep.subr.mxu0 0.0
        %1290 = vmatpush2.msra.mxu0 0.0
        %1291 = vmatprep.subr.mxu0 0.0
        %1292 = vmatpush2.msra.mxu0 0.0
        %1293 = vmatprep.subr.mxu0 0.0
        %1294 = vmatpush2.msra.mxu0 0.0
        %1295 = vmatprep.subr.mxu0 0.0
        %1296 = vmatpush2.msra.mxu0 0.0
        %1297 = vmatprep.subr.mxu0 0.0
        %1298 = vmatpush2.msra.mxu0 0.0
        %1299 = vmatprep.subr.mxu0 0.0
        %1300 = vmatpush2.msra.mxu0 0.0
        %1301 = vmatprep.subr.mxu0 0.0
        %1302 = vmatpush2.msra.mxu0 0.0
        %1303 = vmatprep.subr.mxu0 0.0
        %1304 = vmatpush2.msra.mxu0 0.0
        %1305 = vmatprep.subr.mxu0 0.0
        %1306 = vmatpush2.msra.mxu0 0.0
        %1307 = vmatprep.subr.mxu0 0.0
        %1308 = vmatpush2.msra.mxu0 0.0
        %1309 = vmatprep.subr.mxu0 0.0
        %1310 = vmatpush2.msra.mxu0 0.0
        %1311 = vmatprep.subr.mxu0 0.0
        %1312 = vmatpush2.msra.mxu0 0.0
        %1313 = vmatprep.subr.mxu0 0.0
        %1314 = vmatpush2.msra.mxu0 0.0
        %1315 = vmatprep.subr.mxu0 0.0
        %1316 = vmatpush2.msra.mxu0 0.0
        %1317 = vmatprep.subr.mxu0 0.0
        %1318 = vmatpush2.msra.mxu0 0.0
        %1319 = vmatprep.mubr.f32.mxu0 0.0
        %1320 = vmatmul.mubr.f32.gmra.mxu0 %v1253
        %v1321 = vpop.f32.mrf.mxu0
        %v1322 = vadd.f32 0.0, %v1321
        %v1323 = vpop.f32.mrf.mxu0
        %1324 = vdwg.mxu0
        %v1325 = vadd.f32 %v629, %v1322
        %v1326 = vld [vmem:[%s8] sm:$0x1]
        %v1328 = vlaneseq
        %v1329 = vshrl.u32 %v1328, 7
        %v1330 = vsub.s32 0, %v1329
        %v1331 = vrot.slane %v1326, %v1330
        %v1333 = vadd.f32 %v1325, %v1331
        %v1334 = vld [vmem:[#allocation13] sm:$0xff]
        %v1335 = vld [vmem:[#allocation13 + $0x8] sm:$0xff]
        %v1336 = vld [vmem:[#allocation13 + $0x10] sm:$0xff]
        %v1337 = vld [vmem:[#allocation13 + $0x18] sm:$0xff]
        %v1338 = vld [vmem:[%s10] sm:$0x1]
        %v1340 = vlaneseq
        %v1341 = vshrl.u32 %v1340, 7
        %v1342 = vsub.s32 0, %v1341
        %v1343 = vrot.slane %v1338, %v1342
        %v1346 = vsel %vm641, %v1333, 0
        %1348 = vmatprep.subr.mxu0 0.0
        %1349 = vmatpush1.msra.mxu0 0.0
        %1350 = vmatprep.subr.mxu0 0.0
        %1351 = vmatpush1.msra.mxu0 0.0
        %1352 = vmatprep.subr.mxu0 0.0
        %1353 = vmatpush1.msra.mxu0 0.0
        %1354 = vmatprep.subr.mxu0 0.0
        %1355 = vmatpush1.msra.mxu0 0.0
        %1356 = vmatprep.subr.mxu0 0.0
        %1357 = vmatpush1.msra.mxu0 0.0
        %1358 = vmatprep.subr.mxu0 0.0
        %1359 = vmatpush1.msra.mxu0 0.0
        %1360 = vmatprep.subr.mxu0 0.0
        %1361 = vmatpush1.msra.mxu0 0.0
        %1362 = vmatprep.subr.mxu0 0.0
        %1363 = vmatpush1.msra.mxu0 0.0
        %1364 = vmatprep.subr.mxu0 0.0
        %1365 = vmatpush1.msra.mxu0 0.0
        %1366 = vmatprep.subr.mxu0 0.0
        %1367 = vmatpush1.msra.mxu0 0.0
        %1368 = vmatprep.subr.mxu0 0.0
        %1369 = vmatpush1.msra.mxu0 0.0
        %1370 = vmatprep.subr.mxu0 0.0
        %1371 = vmatpush1.msra.mxu0 0.0
        %1372 = vmatprep.subr.mxu0 0.0
        %1373 = vmatpush1.msra.mxu0 %v1337
        %1374 = vmatprep.subr.mxu0 0.0
        %1375 = vmatpush1.msra.mxu0 %v1336
        %1376 = vmatprep.subr.mxu0 0.0
        %1377 = vmatpush1.msra.mxu0 %v1335
        %1378 = vmatprep.subr.mxu0 0.0
        %1379 = vmatpush1.msra.mxu0 %v1334
        %1380 = vmatprep.subr.mxu0 0.0
        %1381 = vmatpush2.msra.mxu0 0.0
        %1382 = vmatprep.subr.mxu0 0.0
        %1383 = vmatpush2.msra.mxu0 0.0
        %1384 = vmatprep.subr.mxu0 0.0
        %1385 = vmatpush2.msra.mxu0 0.0
        %1386 = vmatprep.subr.mxu0 0.0
        %1387 = vmatpush2.msra.mxu0 0.0
        %1388 = vmatprep.subr.mxu0 0.0
        %1389 = vmatpush2.msra.mxu0 0.0
        %1390 = vmatprep.subr.mxu0 0.0
        %1391 = vmatpush2.msra.mxu0 0.0
        %1392 = vmatprep.subr.mxu0 0.0
        %1393 = vmatpush2.msra.mxu0 0.0
        %1394 = vmatprep.subr.mxu0 0.0
        %1395 = vmatpush2.msra.mxu0 0.0
        %1396 = vmatprep.subr.mxu0 0.0
        %1397 = vmatpush2.msra.mxu0 0.0
        %1398 = vmatprep.subr.mxu0 0.0
        %1399 = vmatpush2.msra.mxu0 0.0
        %1400 = vmatprep.subr.mxu0 0.0
        %1401 = vmatpush2.msra.mxu0 0.0
        %1402 = vmatprep.subr.mxu0 0.0
        %1403 = vmatpush2.msra.mxu0 0.0
        %1404 = vmatprep.subr.mxu0 0.0
        %1405 = vmatpush2.msra.mxu0 0.0
        %1406 = vmatprep.subr.mxu0 0.0
        %1407 = vmatpush2.msra.mxu0 0.0
        %1408 = vmatprep.subr.mxu0 0.0
        %1409 = vmatpush2.msra.mxu0 0.0
        %1410 = vmatprep.subr.mxu0 0.0
        %1411 = vmatpush2.msra.mxu0 0.0
        %1412 = vmatprep.mubr.f32.mxu0 0.0
        %1413 = vmatmul.mubr.f32.gmra.mxu0 %v1346
        %v1414 = vpop.f32.mrf.mxu0
        %v1415 = vadd.f32 %v1343, %v1414
        %v1416 = vpop.f32.mrf.mxu0
        %1417 = vdwg.mxu0
        %v1418 = vsel %vm641, %v1333, 0.0
        %v1419 = vrot.slane %v1418, 4
        %v1420 = vadd.f32 %v1418, %v1419
        %v1421 = vrot.slane %v1420, 2
        %v1422 = vadd.f32 %v1420, %v1421
        %v1423 = vrot.slane %v1422, 1
        %v1424 = vadd.f32 %v1422, %v1423
        %v1425 = vrcp.pop 8.0
        %v1426 = vmul.f32 %v1424, %v1425
        %v1427 = vld [vmem:[#allocation14] sm:$0xff]
        %v1428 = vld [vmem:[#allocation14 + $0x8] sm:$0xff]
        %v1429 = vld [vmem:[#allocation14 + $0x10] sm:$0xff]
        %v1430 = vld [vmem:[#allocation14 + $0x18] sm:$0xff]
        %v1431 = vld [vmem:[%s12] sm:$0x1]
        %v1433 = vsel %vm641, %v1426, 0
        %1435 = vmatprep.subr.mxu0 0.0
        %1436 = vmatpush1.msra.mxu0 0.0
        %1437 = vmatprep.subr.mxu0 0.0
        %1438 = vmatpush1.msra.mxu0 0.0
        %1439 = vmatprep.subr.mxu0 0.0
        %1440 = vmatpush1.msra.mxu0 0.0
        %1441 = vmatprep.subr.mxu0 0.0
        %1442 = vmatpush1.msra.mxu0 0.0
        %1443 = vmatprep.subr.mxu0 0.0
        %1444 = vmatpush1.msra.mxu0 0.0
        %1445 = vmatprep.subr.mxu0 0.0
        %1446 = vmatpush1.msra.mxu0 0.0
        %1447 = vmatprep.subr.mxu0 0.0
        %1448 = vmatpush1.msra.mxu0 0.0
        %1449 = vmatprep.subr.mxu0 0.0
        %1450 = vmatpush1.msra.mxu0 0.0
        %1451 = vmatprep.subr.mxu0 0.0
        %1452 = vmatpush1.msra.mxu0 0.0
        %1453 = vmatprep.subr.mxu0 0.0
        %1454 = vmatpush1.msra.mxu0 0.0
        %1455 = vmatprep.subr.mxu0 0.0
        %1456 = vmatpush1.msra.mxu0 0.0
        %1457 = vmatprep.subr.mxu0 0.0
        %1458 = vmatpush1.msra.mxu0 0.0
        %1459 = vmatprep.subr.mxu0 0.0
        %1460 = vmatpush1.msra.mxu0 %v1430
        %1461 = vmatprep.subr.mxu0 0.0
        %1462 = vmatpush1.msra.mxu0 %v1429
        %1463 = vmatprep.subr.mxu0 0.0
        %1464 = vmatpush1.msra.mxu0 %v1428
        %1465 = vmatprep.subr.mxu0 0.0
        %1466 = vmatpush1.msra.mxu0 %v1427
        %1467 = vmatprep.subr.mxu0 0.0
        %1468 = vmatpush2.msra.mxu0 0.0
        %1469 = vmatprep.subr.mxu0 0.0
        %1470 = vmatpush2.msra.mxu0 0.0
        %1471 = vmatprep.subr.mxu0 0.0
        %1472 = vmatpush2.msra.mxu0 0.0
        %1473 = vmatprep.subr.mxu0 0.0
        %1474 = vmatpush2.msra.mxu0 0.0
        %1475 = vmatprep.subr.mxu0 0.0
        %1476 = vmatpush2.msra.mxu0 0.0
        %1477 = vmatprep.subr.mxu0 0.0
        %1478 = vmatpush2.msra.mxu0 0.0
        %1479 = vmatprep.subr.mxu0 0.0
        %1480 = vmatpush2.msra.mxu0 0.0
        %1481 = vmatprep.subr.mxu0 0.0
        %1482 = vmatpush2.msra.mxu0 0.0
        %1483 = vmatprep.subr.mxu0 0.0
        %1484 = vmatpush2.msra.mxu0 0.0
        %1485 = vmatprep.subr.mxu0 0.0
        %1486 = vmatpush2.msra.mxu0 0.0
        %1487 = vmatprep.subr.mxu0 0.0
        %1488 = vmatpush2.msra.mxu0 0.0
        %1489 = vmatprep.subr.mxu0 0.0
        %1490 = vmatpush2.msra.mxu0 0.0
        %1491 = vmatprep.subr.mxu0 0.0
        %1492 = vmatpush2.msra.mxu0 0.0
        %1493 = vmatprep.subr.mxu0 0.0
        %1494 = vmatpush2.msra.mxu0 0.0
        %1495 = vmatprep.subr.mxu0 0.0
        %1496 = vmatpush2.msra.mxu0 0.0
        %1497 = vmatprep.subr.mxu0 0.0
        %1498 = vmatpush2.msra.mxu0 0.0
        %1499 = vmatprep.mubr.f32.mxu0 0.0
        %1500 = vmatmul.mubr.f32.gmra.mxu0 %v1433
        %v1501 = vpop.f32.mrf.mxu0
        %v1502 = vadd.f32 %v1431, %v1501
        %v1503 = vpop.f32.mrf.mxu0
        %1504 = vdwg.mxu0
        %1505 = vst [vmem:[%s615] sm:$0xff] %v1415
        %1506 = vst.msk [vmem:[%s628] sm:$0xff] %vm641, %v1333
        %1507 = vst [vmem:[%s621] sm:$0x1] %v1502
        %s1508 = sand.u32 %s326, 1
        %s1509 = scalar_lea.sflag [#allocation4], %s1508
        %s1510 = sand.u32 %s326, 1
        %s1511 = smul.addr %s1510, 8
        %s1512 = scalar_lea.vmem [#allocation16], %s1511
        %s1513 = sand.u32 %s40, 1
        %s1514 = scalar_lea.sflag [#allocation18], %s1513
        %s1515 = sand.u32 %s352, 1
        %s1516 = scalar_lea.vmem [#allocation17], %s1515
        %s1517 = sand.u32 %s40, 1
        %s1518 = scalar_lea.sflag [#allocation18], %s1517
        %s1519 = sand.u32 %s378, 1
        %s1520 = smul.addr %s1519, 8
        %s1521 = scalar_lea.vmem [#allocation19], %s1520
        // Predicated region
        $region105: #{tpu_custom_call.1} parent=71 // pred_check
          %p1522 = pneg %p336
        $region106: #{tpu_custom_call.1} parent=71 // pred_check_branch
          %1524 = sbr.rel (%p1522) target = $region108
        $region107: #{tpu_custom_call.1} parent=71 // pred_region
          %s1526 = ssub.s32 128, 128
          %1527 = vsyncadd %s1509, %s1526
          %s1528 = smul.addr %s40, 128
          %s1529 = scalar_lea.hbm %s13, %s1528
          %s1531 = sshll.u32 %s1512, 4
          %s1532 = int_to_ptr.vmem [resolvable:$true] %s1531
          %1534 = dma.vmem_to_hbm [thread:$0]  %s1532, 128, %s1529, %s1509
        $region108: #{tpu_custom_call.1} parent=71 // pred_fallthru
          _
        // Predicated region
        $region109: #{tpu_custom_call.1} parent=71 // pred_check
          %p1535 = pneg %p362
        $region110: #{tpu_custom_call.1} parent=71 // pred_check_branch
          %1537 = sbr.rel (%p1535) target = $region112
        $region111: #{tpu_custom_call.1} parent=71 // pred_region
          %s1539 = ssub.s32 16, 16
          %1540 = vsyncadd %s1514, %s1539
          %s1541 = smul.addr %s40, 16
          %s1542 = scalar_lea.hbm %s14, %s1541
          %s1544 = sshll.u32 %s1516, 4
          %s1545 = int_to_ptr.vmem [resolvable:$true] %s1544
          %1547 = dma.vmem_to_hbm [thread:$0]  %s1545, 16, %s1542, %s1514
        $region112: #{tpu_custom_call.1} parent=71 // pred_fallthru
          _
        // Predicated region
        $region113: #{tpu_custom_call.1} parent=71 // pred_check
          %p1548 = pneg %p388
        $region114: #{tpu_custom_call.1} parent=71 // pred_check_branch
          %1550 = sbr.rel (%p1548) target = $region116
        $region115: #{tpu_custom_call.1} parent=71 // pred_region
          %s1552 = ssub.s32 128, 128
          %1553 = vsyncadd %s1518, %s1552
          %s1554 = smul.addr %s40, 128
          %s1555 = scalar_lea.hbm %s15, %s1554
          %s1557 = sshll.u32 %s1521, 4
          %s1558 = int_to_ptr.vmem [resolvable:$true] %s1557
          %1560 = dma.vmem_to_hbm [thread:$0]  %s1558, 128, %s1555, %s1518
        $region116: #{tpu_custom_call.1} parent=71 // pred_fallthru
          _
      $region72: #{tpu_custom_call.1} parent=5 // pred_fallthru
        _
      %p1561 = scmp.le.s32.totalorder 2, %s35
      // Predicated region
      $region117: #{tpu_custom_call.1} parent=5 // pred_check
        %p1562 = pneg %p1561
      $region118: #{tpu_custom_call.1} parent=5 // pred_check_branch
        %1564 = sbr.rel (%p1562) target = $region120
      $region119: #{tpu_custom_call.1} parent=5 // pred_region
        %s1565 = ssub.s32 %s35, 2
        // Predicated region
        $region121: #{tpu_custom_call.1} parent=119 // pred_check
          %p1566 = pneg %p342
        $region122: #{tpu_custom_call.1} parent=119 // pred_check_branch
          %1568 = sbr.rel (%p1566) target = $region124
        $region123: #{tpu_custom_call.1} parent=119 // pred_region
          %s1569 = sand.u32 %s327, 1
          %s1570 = scalar_lea.sflag [#allocation4], %s1569
          %s1571 = sand.u32 %s327, 1
          %s1572 = smul.addr %s1571, 8
          %s1573 = scalar_lea.vmem [#allocation16], %s1572
          %1574 = dma.done %s1570, 128
        $region124: #{tpu_custom_call.1} parent=119 // pred_fallthru
          _
        // Predicated region
        $region125: #{tpu_custom_call.1} parent=119 // pred_check
          %p1575 = pneg %p368
        $region126: #{tpu_custom_call.1} parent=119 // pred_check_branch
          %1577 = sbr.rel (%p1575) target = $region128
        $region127: #{tpu_custom_call.1} parent=119 // pred_region
          %s1578 = sand.u32 %s41, 1
          %s1579 = scalar_lea.sflag [#allocation18], %s1578
          %s1580 = sand.u32 %s353, 1
          %s1581 = scalar_lea.vmem [#allocation17], %s1580
          %1582 = dma.done %s1579, 16
        $region128: #{tpu_custom_call.1} parent=119 // pred_fallthru
          _
        // Predicated region
        $region129: #{tpu_custom_call.1} parent=119 // pred_check
          %p1583 = pneg %p394
        $region130: #{tpu_custom_call.1} parent=119 // pred_check_branch
          %1585 = sbr.rel (%p1583) target = $region132
        $region131: #{tpu_custom_call.1} parent=119 // pred_region
          %s1586 = sand.u32 %s41, 1
          %s1587 = scalar_lea.sflag [#allocation18], %s1586
          %s1588 = sand.u32 %s379, 1
          %s1589 = smul.addr %s1588, 8
          %s1590 = scalar_lea.vmem [#allocation19], %s1589
          %1591 = dma.done %s1587, 128
        $region132: #{tpu_custom_call.1} parent=119 // pred_fallthru
          _
      $region120: #{tpu_custom_call.1} parent=5 // pred_fallthru
        _
    $region6: #{tpu_custom_call.1} parent=1 // loop_footer
      %s39 = sadd.s32 1, %s35
    $region7: #{tpu_custom_call.1} parent=1 // loop_footer_branch
      %34 = sbr.rel target = $region3
    $region8: #{tpu_custom_call.1} parent=1 // loop_exit
      _
    %1592 = vsyncpa [#allocation3], 1
    %s1593 = scalar_lea.sflag [#allocation3], 1
    %1594 = vsyncpa %s1593, 1
    %1595 = vsyncpa [#allocation6], 1
    %1596 = vsyncpa [#allocation9], 1
    %1597 = vsyncpa [#allocation12], 1
    %1598 = vsyncpa [#allocation15], 1
    %1599 = vsyncpa [#allocation4], 1
    %s1600 = scalar_lea.sflag [#allocation4], 1
    %1601 = vsyncpa %s1600, 1
    %1602 = vsyncpa [#allocation18], 1
    %s1603 = scalar_lea.sflag [#allocation18], 1
    %1604 = vsyncpa %s1603, 1

</llo_original>
